<compile_context>
chip_gen: v7x
topology: tpu7x:2x2x1
jax: 0.10.0
libtpu: 0.0.40
codegen_flags: <defaults>
</compile_context>

<pallas_src>
import math

import jax
import jax.numpy as jnp
from jax.experimental import pallas as pl
from jax.experimental.pallas import tpu as pltpu

# ------------------------- configuration (args) -----------------------------
BSZ = 2          # batch size
VOCAB = 50       # vocabulary size of the frozen word embedding
EMB = 300        # args.word_embedding (forced by reshape(..., -1, 300))
L = 8            # review length (words per document); must be a power of two
H1 = 10          # args.h1 (forced by the hard-coded 3*10 in ANR_ARL)
H2 = 8           # args.h2 (free)
K = 5            # args.K  (forced by range(5) and Linear(15, 5))
NUM_USERS = 7
NUM_ITEMS = 9
E_CONST = 2.71828182845          # torch code uses pow(e, x) with this constant
LN_E = math.log(E_CONST)

NDOC = 2 * BSZ                   # user docs then item docs
R = NDOC * L                     # flattened rows: (doc, t)
KH1 = K * H1

assert L & (L - 1) == 0, "L must be a power of two (in-kernel mod via bitmask)"

# ------------------------- parameter slab layout -----------------------------
# All small parameters live in one lane-dense (rows, 128) f32 slab (one DMA).
_SLAB_ENTRIES = (
    ('W_win',  (KH1, 3 * K)),     # block window weights: [a*H1+h, w*K+a]
    ('W_a',    (H1, H1)),
    ('W_u',    (H2, H1)),
    ('W_i',    (H2, H1)),
    ('w_hu',   (1, H2)),
    ('w_hi',   (1, H2)),
    ('Lu',     (K, K)),           # Linear(15,5) split: u_impt block
    ('Li',     (K, K)),           #                     i_impt block
    ('Lr',     (K, K)),           #                     asp_dot block
    ('lin_b',  (1, K)),
    ('MV',     (K, 2 * K)),       # [mean_fun.W^T | var_fun.W^T]
    ('mv_b',   (1, 2 * K)),       # [mean_b | var_b]
    ('C0',     (K, K)),           # conv1d taps (over [out1, out2, feat])
    ('C1',     (K, K)),
    ('C2',     (K, K)),
    ('conv_b', (1, K)),
    ('M1',     (K, K)),           # mlp1
    ('M2',     (K, K)),           # mlp2
    ('m1_b',   (1, K)),
    ('m2_b',   (1, K)),
    ('rating', (1, K)),           # [1,2,3,4,5]
)


def _build_slab_layout():
    layout = {}
    row = 0
    for name, (r, c) in _SLAB_ENTRIES:
        layout[name] = (row, r, c)
        row += ((r + 7) // 8) * 8          # 8-sublane aligned row blocks
    return layout, row


_SLAB_LAYOUT, _SLAB_ROWS = _build_slab_layout()


# --------------------------- fused ANR kernel --------------------------------
def anr_fused_kernel(ids_ref, rr_ref, emb_ref, projS_ref, slab_ref,
                     out_ref, rep3_ref):
    f32 = jnp.float32

    def param(name):
        r0, nr, nc = _SLAB_LAYOUT[name]
        return slab_ref[r0:r0 + nr, 0:nc]

    # ---------------- in-kernel constants (no extra DMAs) --------------------
    # One-hot word ids for the embedding gather (gather done as a matmul).
    ids = ids_ref[...]                                          # (R, 1) int32
    v_iota = jax.lax.broadcasted_iota(jnp.int32, (R, VOCAB), 1)
    onehot = jnp.where(ids == v_iota, 1.0, 0.0).astype(f32)     # (R, VOCAB)

    # Zero-padded window shifts over the flattened (doc, t) rows.  Rows r-1 /
    # r+1 belong to the same document iff t = r mod L is not at the boundary.
    row = jax.lax.broadcasted_iota(jnp.int32, (R, R), 0)
    col = jax.lax.broadcasted_iota(jnp.int32, (R, R), 1)
    t_of_row = row & (L - 1)
    s_prev = jnp.where((col == row - 1) & (t_of_row != 0),
                       1.0, 0.0).astype(f32)                    # (R, R)
    s_next = jnp.where((col == row + 1) & (t_of_row != L - 1),
                       1.0, 0.0).astype(f32)                    # (R, R)

    # Aspect lane-expander: expand[k, k*H1 + h] = 1.
    k_iota = jax.lax.broadcasted_iota(jnp.int32, (K, KH1), 0)
    n_iota = jax.lax.broadcasted_iota(jnp.int32, (K, KH1), 1)
    expand = jnp.where((n_iota >= k_iota * H1) & (n_iota < (k_iota + 1) * H1),
                       1.0, 0.0).astype(f32)                    # (K, K*H1)

    # ------------------------------ ANR_ARL -----------------------------------
    # User + item documents processed together in one flattened row space.
    docs = jnp.dot(onehot, emb_ref[...], preferred_element_type=f32)  # (R, EMB)
    xp = jnp.dot(docs, projS_ref[...], preferred_element_type=f32)    # (R, K*H1)

    # All window scores for all aspects in one dot; columns grouped by window.
    y = jnp.dot(xp, param('W_win'), preferred_element_type=f32)       # (R, 3K)
    y0 = y[:, 0:K]            # window t-1, per aspect
    y1 = y[:, K:2 * K]        # window t
    y2 = y[:, 2 * K:3 * K]    # window t+1
    logits = (jnp.dot(s_prev, y0, preferred_element_type=f32) + y1 +
              jnp.dot(s_next, y2, preferred_element_type=f32))        # (R, K)

    # Softmax over the sequence dim, batched over (doc, aspect).
    logits3 = logits.reshape(NDOC, L, K)
    m = jnp.max(logits3, axis=1, keepdims=True)
    e = jnp.exp(logits3 - m)
    attn3 = e / jnp.sum(e, axis=1, keepdims=True)                     # (NDOC, L, K)
    attn = attn3.reshape(R, K)

    # Weighted sum back to the stacked per-document representation.
    attn_exp = jnp.dot(attn, expand, preferred_element_type=f32)      # (R, K*H1)
    weighted = attn_exp * xp
    rep_st = jnp.sum(weighted.reshape(NDOC, L, KH1), axis=1)          # (NDOC, K*H1)

    # Lane -> sublane unstack to (doc, aspect, h1) via a tiny staging scratch
    # (K static stores; avoids relying on a general lane-splitting reshape).
    for k in range(K):
        rep3_ref[:, k:k + 1, :] = rep_st[:, k * H1:(k + 1) * H1][:, None, :]
    u3 = rep3_ref[0:BSZ, :, :]                                        # (B, K, H1)
    it3 = rep3_ref[BSZ:NDOC, :, :]                                    # (B, K, H1)

    # ------------------------------ ANR_AIE -----------------------------------
    Wa = param('W_a')                                                 # (H1, H1)
    Wu = param('W_u')                                                 # (H2, H1)
    Wi = param('W_i')                                                 # (H2, H1)
    whu = param('w_hu')                                               # (1, H2)
    whi = param('w_hi')                                               # (1, H2)

    uWa = jnp.einsum('bkh,hg->bkg', u3, Wa, preferred_element_type=f32)
    aff = jnp.maximum(
        jnp.einsum('bkg,bjg->bkj', uWa, it3, preferred_element_type=f32), 0.0)
    Q = jnp.einsum('bkh,ch->bkc', u3, Wu, preferred_element_type=f32)   # W_u u^T
    P = jnp.einsum('bjh,ch->bjc', it3, Wi, preferred_element_type=f32)  # W_i i^T
    Hu = jnp.maximum(
        Q + jnp.einsum('bkj,bjc->bkc', aff, P, preferred_element_type=f32), 0.0)
    Hi = jnp.maximum(
        P + jnp.einsum('bkj,bkc->bjc', aff, Q, preferred_element_type=f32), 0.0)
    ulog = jnp.sum(Hu * whu[None, :, :], axis=-1)                     # (B, K)
    ilog = jnp.sum(Hi * whi[None, :, :], axis=-1)                     # (B, K)

    def softmax_k(z):                                                 # over K
        mz = jnp.max(z, axis=1, keepdims=True)
        ez = jnp.exp(z - mz)
        return ez / jnp.sum(ez, axis=1, keepdims=True)

    u_impt = softmax_k(ulog)
    i_impt = softmax_k(ilog)

    # ----------------------- ANR_RatingPred + Gumbel --------------------------
    asp_dot = jnp.sum(u3 * it3, axis=-1)                              # (B, K)
    # Linear(15 -> 5) on concat(u_impt, i_impt, asp_dot), decomposed.
    feat = (jnp.dot(u_impt, param('Lu'), preferred_element_type=f32)
            + jnp.dot(i_impt, param('Li'), preferred_element_type=f32)
            + jnp.dot(asp_dot, param('Lr'), preferred_element_type=f32)
            + param('lin_b'))                                         # (B, K)

    rating = param('rating')                                          # (1, K)
    rr = rr_ref[...]                                                  # (2B, K)
    # Both Gumbel pdf calls share one fused mean|var dot on the stacked ratios.
    mv = jnp.dot(rr, param('MV'), preferred_element_type=f32) + param('mv_b')
    mean = mv[:, 0:K]
    var = mv[:, K:2 * K]
    var = var * var + 0.2
    l1 = jnp.exp(LN_E * (rating - mean) / var)    # torch.pow(e, +(r - mean)/var)
    l2 = jnp.exp(-LN_E * l1)
    pdf = (1.0 / var) * l1 * l2                                       # (2B, K)
    out1 = pdf[0:BSZ]                                                 # user pdf
    out2 = pdf[BSZ:NDOC]                                              # item pdf

    # Conv1d(5, 5, kernel=3) over the length-3 sequence [out1, out2, feat].
    conv = (jnp.dot(out1, param('C0'), preferred_element_type=f32)
            + jnp.dot(out2, param('C1'), preferred_element_type=f32)
            + jnp.dot(feat, param('C2'), preferred_element_type=f32)
            + param('conv_b'))                                        # (B, K)

    urr = rr[0:BSZ]
    irr = rr[BSZ:NDOC]
    urr_lin = jnp.dot(urr, param('M1'), preferred_element_type=f32) + param('m1_b')
    irr_lin = jnp.dot(irr, param('M2'), preferred_element_type=f32) + param('m2_b')
    out_ref[...] = jnp.sum(conv * urr_lin * irr_lin, axis=-1, keepdims=True)


# ------------------------------- ANR forward ---------------------------------
def anr_forward(params, batch_uid, batch_iid, user_review, item_review,
                u_rating_ratio, i_rating_ratio):
    # uid/iid offset embeddings + globalOffset are computed-but-unused in the
    # reference's Gumbel path, so they are omitted here.
    del batch_uid, batch_iid

    # Tiny host-side glue: stack user+item word ids / rating ratios so the
    # kernel sees one flattened row space and two data DMAs total.
    ids = jnp.concatenate([user_review, item_review], axis=0)
    ids = ids.reshape(R, 1).astype(jnp.int32)                        # (R, 1)
    rr = jnp.concatenate([u_rating_ratio, i_rating_ratio],
                         axis=0).astype(jnp.float32)                 # (2B, 5)

    out = pl.pallas_call(
        anr_fused_kernel,
        out_shape=jax.ShapeDtypeStruct((BSZ, 1), jnp.float32),
        scratch_shapes=[pltpu.VMEM((NDOC, K, H1), jnp.float32)],     # unstack buf
        compiler_params=pltpu.CompilerParams(
            vmem_limit_bytes=8 * 1024 * 1024),
        # TODO(synk): add a batch grid axis + dimension_semantics=("parallel",)
        # once BSZ grows beyond toy scale (shards across both v7x TensorCores).
    )(ids, rr, params['word_emb'], params['aspProjStacked'], params['slab'])
    return out[:, 0]            # .squeeze() -> (bsz,)


# ----------------------------- parameter setup --------------------------------
def _uniform(key, shape, lo, hi):
    return jax.random.uniform(key, shape, jnp.float32, lo, hi)


def init_params(key):
    ks = jax.random.split(key, 20)
    p = {}
    p['word_emb'] = _uniform(ks[0], (VOCAB, EMB), -0.1, 0.1)          # frozen

    # ANR_ARL : aspEmbed flattened as [h, window] -> h*3+w ; aspProj stacked.
    aspEmbed = _uniform(ks[1], (K, 3 * H1), -0.01, 0.01)
    E = aspEmbed.reshape(K, H1, 3)                                    # [a, h, w]
    aspProj = _uniform(ks[2], (K, EMB, H1), -0.01, 0.01)
    # stacked projection: column a*H1+h of projS == aspProj[a, :, h]
    p['aspProjStacked'] = jnp.transpose(aspProj, (1, 0, 2)).reshape(EMB, KH1)
    # block window-score weights: W_win[a*H1+h, w*K+a] = E[a, h, w]
    W_win = jnp.zeros((KH1, 3 * K), jnp.float32)
    for a in range(K):
        for w in range(3):
            W_win = W_win.at[a * H1:(a + 1) * H1, w * K + a].set(E[a, :, w])

    # ANR_AIE
    W_a = _uniform(ks[3], (H1, H1), -0.01, 0.01)
    W_u = _uniform(ks[4], (H2, H1), -0.01, 0.01)
    w_hu = _uniform(ks[5], (H2, 1), -0.01, 0.01)
    W_i = _uniform(ks[6], (H2, H1), -0.01, 0.01)
    w_hi = _uniform(ks[7], (H2, 1), -0.01, 0.01)

    # ANR_RatingPred.linear (Linear(15,5)) + Gumbel sub-module params.
    b15 = 1.0 / math.sqrt(15.0)
    lin_w = _uniform(ks[8], (5, 15), -b15, b15)                       # (out, in)
    lin_b = _uniform(ks[9], (5,), -b15, b15)
    b5 = 1.0 / math.sqrt(5.0)
    mw, mb = _uniform(ks[10], (5, 5), -b5, b5), _uniform(ks[11], (5,), -b5, b5)
    vw, vb = _uniform(ks[12], (5, 5), -b5, b5), _uniform(ks[13], (5,), -b5, b5)
    m1w, m1b = _uniform(ks[14], (5, 5), -b5, b5), _uniform(ks[15], (5,), -b5, b5)
    m2w, m2b = _uniform(ks[16], (5, 5), -b5, b5), _uniform(ks[17], (5,), -b5, b5)
    bc = 1.0 / math.sqrt(5.0 * 3.0)
    conv_w = _uniform(ks[18], (5, 5, 3), -bc, bc)                     # (oc, ic, k)
    conv_b = _uniform(ks[19], (5,), -bc, bc)

    entries = {
        'W_win': W_win,
        'W_a': W_a,
        'W_u': W_u,
        'W_i': W_i,
        'w_hu': w_hu[:, 0][None, :],
        'w_hi': w_hi[:, 0][None, :],
        'Lu': lin_w[:, 0:5].T,
        'Li': lin_w[:, 5:10].T,
        'Lr': lin_w[:, 10:15].T,
        'lin_b': lin_b[None, :],
        'MV': jnp.concatenate([mw.T, vw.T], axis=1),
        'mv_b': jnp.concatenate([mb, vb])[None, :],
        'C0': conv_w[:, :, 0].T,
        'C1': conv_w[:, :, 1].T,
        'C2': conv_w[:, :, 2].T,
        'conv_b': conv_b[None, :],
        'M1': m1w.T,
        'M2': m2w.T,
        'm1_b': m1b[None, :],
        'm2_b': m2b[None, :],
        'rating': jnp.array([[1.0, 2.0, 3.0, 4.0, 5.0]], dtype=jnp.float32),
    }
    slab = jnp.zeros((_SLAB_ROWS, 128), jnp.float32)
    for name, arr in entries.items():
        r0, nr, nc = _SLAB_LAYOUT[name]
        assert arr.shape == (nr, nc), (name, arr.shape, (nr, nc))
        slab = slab.at[r0:r0 + nr, 0:nc].set(arr.astype(jnp.float32))
    p['slab'] = slab
    return p


if __name__ == "__main__":
    key = jax.random.PRNGKey(0)
    kp, k1, k2, k3, k4, k5, k6 = jax.random.split(key, 7)
    params = init_params(kp)

    user_review = jax.random.randint(k1, (BSZ, L), 0, VOCAB)
    item_review = jax.random.randint(k2, (BSZ, L), 0, VOCAB)
    batch_uid = jax.random.randint(k3, (BSZ,), 0, NUM_USERS)
    batch_iid = jax.random.randint(k4, (BSZ,), 0, NUM_ITEMS)
    u_rating_ratio = jax.nn.softmax(jax.random.normal(k5, (BSZ, 5)), axis=-1)
    i_rating_ratio = jax.nn.softmax(jax.random.normal(k6, (BSZ, 5)), axis=-1)

    fwd = jax.jit(anr_forward)
    out = fwd(params, batch_uid, batch_iid, user_review, item_review,
              u_rating_ratio, i_rating_ratio)
    jax.block_until_ready(out)
    assert out.shape == (BSZ,)
    print("KERNEL_OK")
</pallas_src>

<mosaic_0001>
module attributes {stable_mosaic.version = 11 : i64} {
  func.func @anr_fused_kernel(%arg0: memref<32x1xi32, #tpu.memory_space<vmem>>, %arg1: memref<4x5xf32, #tpu.memory_space<vmem>>, %arg2: memref<50x300xf32, #tpu.memory_space<vmem>>, %arg3: memref<300x50xf32, #tpu.memory_space<vmem>>, %arg4: memref<224x128xf32, #tpu.memory_space<vmem>>, %arg5: memref<2x1xf32, #tpu.memory_space<vmem>>, %arg6: memref<4x5x10xf32, #tpu.memory_space<vmem>>) attributes {dimension_semantics = [], scalar_prefetch = 0 : i64, scratch_operands = 1 : i64, tpu.core_type = #tpu.core_type<tc>} {
    %c0 = arith.constant 0 : index
    %c0_0 = arith.constant 0 : index
    %0 = vector.load %arg0[%c0, %c0_0] : memref<32x1xi32, #tpu.memory_space<vmem>>, vector<32x1xi32>
    %1 = tpu.iota {dimensions = array<i32: 1>} : vector<32x50xi32>
    %2 = vector.broadcast %0 : vector<32x1xi32> to vector<32x50xi32>
    %3 = arith.cmpi eq, %2, %1 : vector<32x50xi32>
    %cst = arith.constant 1.000000e+00 : f32
    %cst_1 = arith.constant 0.000000e+00 : f32
    %4 = vector.broadcast %cst : f32 to vector<32x50xf32>
    %5 = vector.broadcast %cst_1 : f32 to vector<32x50xf32>
    %6 = arith.select %3, %4, %5 : vector<32x50xi1>, vector<32x50xf32>
    %7 = tpu.iota {dimensions = array<i32: 0>} : vector<32x32xi32>
    %8 = tpu.iota {dimensions = array<i32: 1>} : vector<32x32xi32>
    %c7_i32 = arith.constant 7 : i32
    %9 = vector.broadcast %c7_i32 : i32 to vector<32x32xi32>
    %10 = arith.andi %7, %9 : vector<32x32xi32>
    %c1_i32 = arith.constant 1 : i32
    %11 = vector.broadcast %c1_i32 : i32 to vector<32x32xi32>
    %12 = arith.subi %7, %11 : vector<32x32xi32>
    %13 = arith.cmpi eq, %8, %12 : vector<32x32xi32>
    %c0_i32 = arith.constant 0 : i32
    %14 = vector.broadcast %c0_i32 : i32 to vector<32x32xi32>
    %15 = arith.cmpi ne, %10, %14 : vector<32x32xi32>
    %16 = arith.andi %13, %15 : vector<32x32xi1>
    %cst_2 = arith.constant 1.000000e+00 : f32
    %cst_3 = arith.constant 0.000000e+00 : f32
    %17 = vector.broadcast %cst_2 : f32 to vector<32x32xf32>
    %18 = vector.broadcast %cst_3 : f32 to vector<32x32xf32>
    %19 = arith.select %16, %17, %18 : vector<32x32xi1>, vector<32x32xf32>
    %c1_i32_4 = arith.constant 1 : i32
    %20 = vector.broadcast %c1_i32_4 : i32 to vector<32x32xi32>
    %21 = arith.addi %7, %20 : vector<32x32xi32>
    %22 = arith.cmpi eq, %8, %21 : vector<32x32xi32>
    %c7_i32_5 = arith.constant 7 : i32
    %23 = vector.broadcast %c7_i32_5 : i32 to vector<32x32xi32>
    %24 = arith.cmpi ne, %10, %23 : vector<32x32xi32>
    %25 = arith.andi %22, %24 : vector<32x32xi1>
    %cst_6 = arith.constant 1.000000e+00 : f32
    %cst_7 = arith.constant 0.000000e+00 : f32
    %26 = vector.broadcast %cst_6 : f32 to vector<32x32xf32>
    %27 = vector.broadcast %cst_7 : f32 to vector<32x32xf32>
    %28 = arith.select %25, %26, %27 : vector<32x32xi1>, vector<32x32xf32>
    %29 = tpu.iota {dimensions = array<i32: 0>} : vector<5x50xi32>
    %30 = tpu.iota {dimensions = array<i32: 1>} : vector<5x50xi32>
    %c10_i32 = arith.constant 10 : i32
    %31 = vector.broadcast %c10_i32 : i32 to vector<5x50xi32>
    %32 = arith.muli %29, %31 : vector<5x50xi32>
    %33 = arith.cmpi sge, %30, %32 : vector<5x50xi32>
    %c1_i32_8 = arith.constant 1 : i32
    %34 = vector.broadcast %c1_i32_8 : i32 to vector<5x50xi32>
    %35 = arith.addi %29, %34 : vector<5x50xi32>
    %c10_i32_9 = arith.constant 10 : i32
    %36 = vector.broadcast %c10_i32_9 : i32 to vector<5x50xi32>
    %37 = arith.muli %35, %36 : vector<5x50xi32>
    %38 = arith.cmpi slt, %30, %37 : vector<5x50xi32>
    %39 = arith.andi %33, %38 : vector<5x50xi1>
    %cst_10 = arith.constant 1.000000e+00 : f32
    %cst_11 = arith.constant 0.000000e+00 : f32
    %40 = vector.broadcast %cst_10 : f32 to vector<5x50xf32>
    %41 = vector.broadcast %cst_11 : f32 to vector<5x50xf32>
    %42 = arith.select %39, %40, %41 : vector<5x50xi1>, vector<5x50xf32>
    %c0_12 = arith.constant 0 : index
    %c0_13 = arith.constant 0 : index
    %43 = vector.load %arg2[%c0_12, %c0_13] : memref<50x300xf32, #tpu.memory_space<vmem>>, vector<50x300xf32>
    %cst_14 = arith.constant dense<0.000000e+00> : vector<32x300xf32>
    %44 = tpu.matmul %6, %43, %cst_14 {dimension_numbers = #tpu.dot_dimension_numbers<[1], [0], [0], [1], [0, 0, 1, 1], [], []>} : vector<32x50xf32>, vector<50x300xf32>, vector<32x300xf32> -> vector<32x300xf32>
    %c0_15 = arith.constant 0 : index
    %c0_16 = arith.constant 0 : index
    %45 = vector.load %arg3[%c0_15, %c0_16] : memref<300x50xf32, #tpu.memory_space<vmem>>, vector<300x50xf32>
    %cst_17 = arith.constant dense<0.000000e+00> : vector<32x50xf32>
    %46 = tpu.matmul %44, %45, %cst_17 {dimension_numbers = #tpu.dot_dimension_numbers<[1], [0], [0], [1], [0, 0, 1, 1], [], []>} : vector<32x300xf32>, vector<300x50xf32>, vector<32x50xf32> -> vector<32x50xf32>
    %c0_18 = arith.constant 0 : index
    %c0_19 = arith.constant 0 : index
    %47 = vector.load %arg4[%c0_18, %c0_19] : memref<224x128xf32, #tpu.memory_space<vmem>>, vector<50x15xf32>
    %cst_20 = arith.constant dense<0.000000e+00> : vector<32x15xf32>
    %48 = tpu.matmul %46, %47, %cst_20 {dimension_numbers = #tpu.dot_dimension_numbers<[1], [0], [0], [1], [0, 0, 1, 1], [], []>} : vector<32x50xf32>, vector<50x15xf32>, vector<32x15xf32> -> vector<32x15xf32>
    %49 = vector.extract_strided_slice %48 {offsets = [0, 0], sizes = [32, 5], strides = [1, 1]} : vector<32x15xf32> to vector<32x5xf32>
    %50 = vector.extract_strided_slice %48 {offsets = [0, 5], sizes = [32, 5], strides = [1, 1]} : vector<32x15xf32> to vector<32x5xf32>
    %51 = vector.extract_strided_slice %48 {offsets = [0, 10], sizes = [32, 5], strides = [1, 1]} : vector<32x15xf32> to vector<32x5xf32>
    %cst_21 = arith.constant dense<0.000000e+00> : vector<32x5xf32>
    %52 = tpu.matmul %19, %49, %cst_21 {dimension_numbers = #tpu.dot_dimension_numbers<[1], [0], [0], [1], [0, 0, 1, 1], [], []>} : vector<32x32xf32>, vector<32x5xf32>, vector<32x5xf32> -> vector<32x5xf32>
    %53 = arith.addf %52, %50 : vector<32x5xf32>
    %cst_22 = arith.constant dense<0.000000e+00> : vector<32x5xf32>
    %54 = tpu.matmul %28, %51, %cst_22 {dimension_numbers = #tpu.dot_dimension_numbers<[1], [0], [0], [1], [0, 0, 1, 1], [], []>} : vector<32x32xf32>, vector<32x5xf32>, vector<32x5xf32> -> vector<32x5xf32>
    %55 = arith.addf %53, %54 : vector<32x5xf32>
    %56 = vector.shape_cast %55 : vector<32x5xf32> to vector<4x8x5xf32>
    %cst_23 = arith.constant dense<0xFF800000> : vector<4x5xf32>
    %57 = vector.multi_reduction <maximumf>, %56, %cst_23 [1] : vector<4x8x5xf32> to vector<4x5xf32>
    %58 = vector.shape_cast %57 : vector<4x5xf32> to vector<4x1x5xf32>
    %59 = vector.broadcast %58 : vector<4x1x5xf32> to vector<4x8x5xf32>
    %60 = arith.subf %56, %59 : vector<4x8x5xf32>
    %61 = math.exp %60 : vector<4x8x5xf32>
    %cst_24 = arith.constant dense<0.000000e+00> : vector<4x5xf32>
    %62 = vector.multi_reduction <add>, %61, %cst_24 [1] : vector<4x8x5xf32> to vector<4x5xf32>
    %63 = vector.shape_cast %62 : vector<4x5xf32> to vector<4x1x5xf32>
    %64 = vector.broadcast %63 : vector<4x1x5xf32> to vector<4x8x5xf32>
    %65 = arith.divf %61, %64 : vector<4x8x5xf32>
    %66 = vector.shape_cast %65 : vector<4x8x5xf32> to vector<32x5xf32>
    %cst_25 = arith.constant dense<0.000000e+00> : vector<32x50xf32>
    %67 = tpu.matmul %66, %42, %cst_25 {dimension_numbers = #tpu.dot_dimension_numbers<[1], [0], [0], [1], [0, 0, 1, 1], [], []>} : vector<32x5xf32>, vector<5x50xf32>, vector<32x50xf32> -> vector<32x50xf32>
    %68 = arith.mulf %67, %46 : vector<32x50xf32>
    %69 = vector.shape_cast %68 : vector<32x50xf32> to vector<4x8x50xf32>
    %cst_26 = arith.constant dense<0.000000e+00> : vector<4x50xf32>
    %70 = vector.multi_reduction <add>, %69, %cst_26 [1] : vector<4x8x50xf32> to vector<4x50xf32>
    %71 = vector.extract_strided_slice %70 {offsets = [0, 0], sizes = [4, 10], strides = [1, 1]} : vector<4x50xf32> to vector<4x10xf32>
    %72 = vector.shape_cast %71 : vector<4x10xf32> to vector<4x1x10xf32>
    %c0_27 = arith.constant 0 : index
    %c0_28 = arith.constant 0 : index
    %c0_29 = arith.constant 0 : index
    %73 = vector.load %arg6[%c0_27, %c0_28, %c0_29] : memref<4x5x10xf32, #tpu.memory_space<vmem>>, vector<4x1x10xf32>
    tpu.vector_store %arg6[%c0_27, %c0_28, %c0_29], %72 {strides = array<i32>} : memref<4x5x10xf32, #tpu.memory_space<vmem>>, vector<4x1x10xf32>,
    %74 = vector.extract_strided_slice %70 {offsets = [0, 10], sizes = [4, 10], strides = [1, 1]} : vector<4x50xf32> to vector<4x10xf32>
    %75 = vector.shape_cast %74 : vector<4x10xf32> to vector<4x1x10xf32>
    %c0_30 = arith.constant 0 : index
    %c1 = arith.constant 1 : index
    %c0_31 = arith.constant 0 : index
    %76 = vector.load %arg6[%c0_30, %c1, %c0_31] : memref<4x5x10xf32, #tpu.memory_space<vmem>>, vector<4x1x10xf32>
    tpu.vector_store %arg6[%c0_30, %c1, %c0_31], %75 {strides = array<i32>} : memref<4x5x10xf32, #tpu.memory_space<vmem>>, vector<4x1x10xf32>,
    %77 = vector.extract_strided_slice %70 {offsets = [0, 20], sizes = [4, 10], strides = [1, 1]} : vector<4x50xf32> to vector<4x10xf32>
    %78 = vector.shape_cast %77 : vector<4x10xf32> to vector<4x1x10xf32>
    %c0_32 = arith.constant 0 : index
    %c2 = arith.constant 2 : index
    %c0_33 = arith.constant 0 : index
    %79 = vector.load %arg6[%c0_32, %c2, %c0_33] : memref<4x5x10xf32, #tpu.memory_space<vmem>>, vector<4x1x10xf32>
    tpu.vector_store %arg6[%c0_32, %c2, %c0_33], %78 {strides = array<i32>} : memref<4x5x10xf32, #tpu.memory_space<vmem>>, vector<4x1x10xf32>,
    %80 = vector.extract_strided_slice %70 {offsets = [0, 30], sizes = [4, 10], strides = [1, 1]} : vector<4x50xf32> to vector<4x10xf32>
    %81 = vector.shape_cast %80 : vector<4x10xf32> to vector<4x1x10xf32>
    %c0_34 = arith.constant 0 : index
    %c3 = arith.constant 3 : index
    %c0_35 = arith.constant 0 : index
    %82 = vector.load %arg6[%c0_34, %c3, %c0_35] : memref<4x5x10xf32, #tpu.memory_space<vmem>>, vector<4x1x10xf32>
    tpu.vector_store %arg6[%c0_34, %c3, %c0_35], %81 {strides = array<i32>} : memref<4x5x10xf32, #tpu.memory_space<vmem>>, vector<4x1x10xf32>,
    %83 = vector.extract_strided_slice %70 {offsets = [0, 40], sizes = [4, 10], strides = [1, 1]} : vector<4x50xf32> to vector<4x10xf32>
    %84 = vector.shape_cast %83 : vector<4x10xf32> to vector<4x1x10xf32>
    %c0_36 = arith.constant 0 : index
    %c4 = arith.constant 4 : index
    %c0_37 = arith.constant 0 : index
    %85 = vector.load %arg6[%c0_36, %c4, %c0_37] : memref<4x5x10xf32, #tpu.memory_space<vmem>>, vector<4x1x10xf32>
    tpu.vector_store %arg6[%c0_36, %c4, %c0_37], %84 {strides = array<i32>} : memref<4x5x10xf32, #tpu.memory_space<vmem>>, vector<4x1x10xf32>,
    %c0_38 = arith.constant 0 : index
    %c0_39 = arith.constant 0 : index
    %c0_40 = arith.constant 0 : index
    %86 = vector.load %arg6[%c0_38, %c0_39, %c0_40] : memref<4x5x10xf32, #tpu.memory_space<vmem>>, vector<2x5x10xf32>
    %c2_41 = arith.constant 2 : index
    %c0_42 = arith.constant 0 : index
    %c0_43 = arith.constant 0 : index
    %87 = vector.load %arg6[%c2_41, %c0_42, %c0_43] : memref<4x5x10xf32, #tpu.memory_space<vmem>>, vector<2x5x10xf32>
    %c56 = arith.constant 56 : index
    %c0_44 = arith.constant 0 : index
    %88 = vector.load %arg4[%c56, %c0_44] : memref<224x128xf32, #tpu.memory_space<vmem>>, vector<10x10xf32>
    %c72 = arith.constant 72 : index
    %c0_45 = arith.constant 0 : index
    %89 = vector.load %arg4[%c72, %c0_45] : memref<224x128xf32, #tpu.memory_space<vmem>>, vector<8x10xf32>
    %c80 = arith.constant 80 : index
    %c0_46 = arith.constant 0 : index
    %90 = vector.load %arg4[%c80, %c0_46] : memref<224x128xf32, #tpu.memory_space<vmem>>, vector<8x10xf32>
    %c88 = arith.constant 88 : index
    %c0_47 = arith.constant 0 : index
    %91 = vector.load %arg4[%c88, %c0_47] : memref<224x128xf32, #tpu.memory_space<vmem>>, vector<1x8xf32>
    %c96 = arith.constant 96 : index
    %c0_48 = arith.constant 0 : index
    %92 = vector.load %arg4[%c96, %c0_48] : memref<224x128xf32, #tpu.memory_space<vmem>>, vector<1x8xf32>
    "tpu.trace_start"() <{level = 10 : i32, message = "bkh,hg->bkg"}> : () -> ()
    %cst_49 = arith.constant dense<0.000000e+00> : vector<2x5x10xf32>
    %93 = tpu.matmul %86, %88, %cst_49 {dimension_numbers = #tpu.dot_dimension_numbers<[2], [0], [0, 1], [1], [0, 0, 0, 1, 1, 1], [], []>} : vector<2x5x10xf32>, vector<10x10xf32>, vector<2x5x10xf32> -> vector<2x5x10xf32>
    "tpu.trace_stop"() : () -> ()
    "tpu.trace_start"() <{level = 10 : i32, message = "bkg,bjg->bkj"}> : () -> ()
    %cst_50 = arith.constant dense<0.000000e+00> : vector<2x5x5xf32>
    %94 = tpu.matmul %93, %87, %cst_50 {dimension_numbers = #tpu.dot_dimension_numbers<[2], [2], [1], [1], [0, 0, 0, 1, 1, 1], [0], [0]>} : vector<2x5x10xf32>, vector<2x5x10xf32>, vector<2x5x5xf32> -> vector<2x5x5xf32>
    "tpu.trace_stop"() : () -> ()
    %cst_51 = arith.constant 0.000000e+00 : f32
    %95 = vector.broadcast %cst_51 : f32 to vector<2x5x5xf32>
    %96 = arith.maximumf %94, %95 : vector<2x5x5xf32>
    "tpu.trace_start"() <{level = 10 : i32, message = "bkh,ch->bkc"}> : () -> ()
    %cst_52 = arith.constant dense<0.000000e+00> : vector<2x5x8xf32>
    %97 = tpu.matmul %86, %89, %cst_52 {dimension_numbers = #tpu.dot_dimension_numbers<[2], [1], [0, 1], [0], [0, 0, 0, 1, 1, 0], [], []>} : vector<2x5x10xf32>, vector<8x10xf32>, vector<2x5x8xf32> -> vector<2x5x8xf32>
    "tpu.trace_stop"() : () -> ()
    "tpu.trace_start"() <{level = 10 : i32, message = "bjh,ch->bjc"}> : () -> ()
    %cst_53 = arith.constant dense<0.000000e+00> : vector<2x5x8xf32>
    %98 = tpu.matmul %87, %90, %cst_53 {dimension_numbers = #tpu.dot_dimension_numbers<[2], [1], [0, 1], [0], [0, 0, 0, 1, 1, 0], [], []>} : vector<2x5x10xf32>, vector<8x10xf32>, vector<2x5x8xf32> -> vector<2x5x8xf32>
    "tpu.trace_stop"() : () -> ()
    "tpu.trace_start"() <{level = 10 : i32, message = "bkj,bjc->bkc"}> : () -> ()
    %cst_54 = arith.constant dense<0.000000e+00> : vector<2x5x8xf32>
    %99 = tpu.matmul %96, %98, %cst_54 {dimension_numbers = #tpu.dot_dimension_numbers<[2], [1], [1], [2], [0, 0, 0, 1, 1, 2], [0], [0]>} : vector<2x5x5xf32>, vector<2x5x8xf32>, vector<2x5x8xf32> -> vector<2x5x8xf32>
    "tpu.trace_stop"() : () -> ()
    %100 = arith.addf %97, %99 : vector<2x5x8xf32>
    %cst_55 = arith.constant 0.000000e+00 : f32
    %101 = vector.broadcast %cst_55 : f32 to vector<2x5x8xf32>
    %102 = arith.maximumf %100, %101 : vector<2x5x8xf32>
    "tpu.trace_start"() <{level = 10 : i32, message = "bkj,bkc->bjc"}> : () -> ()
    %cst_56 = arith.constant dense<0.000000e+00> : vector<2x5x8xf32>
    %103 = tpu.matmul %96, %97, %cst_56 {dimension_numbers = #tpu.dot_dimension_numbers<[1], [1], [2], [2], [0, 0, 0, 2, 1, 2], [0], [0]>} : vector<2x5x5xf32>, vector<2x5x8xf32>, vector<2x5x8xf32> -> vector<2x5x8xf32>
    "tpu.trace_stop"() : () -> ()
    %104 = arith.addf %98, %103 : vector<2x5x8xf32>
    %cst_57 = arith.constant 0.000000e+00 : f32
    %105 = vector.broadcast %cst_57 : f32 to vector<2x5x8xf32>
    %106 = arith.maximumf %104, %105 : vector<2x5x8xf32>
    %107 = vector.shape_cast %91 : vector<1x8xf32> to vector<1x1x8xf32>
    %108 = vector.broadcast %107 : vector<1x1x8xf32> to vector<2x5x8xf32>
    %109 = arith.mulf %102, %108 : vector<2x5x8xf32>
    %cst_58 = arith.constant dense<0.000000e+00> : vector<2x5xf32>
    %110 = vector.multi_reduction <add>, %109, %cst_58 [2] : vector<2x5x8xf32> to vector<2x5xf32>
    %111 = vector.shape_cast %92 : vector<1x8xf32> to vector<1x1x8xf32>
    %112 = vector.broadcast %111 : vector<1x1x8xf32> to vector<2x5x8xf32>
    %113 = arith.mulf %106, %112 : vector<2x5x8xf32>
    %cst_59 = arith.constant dense<0.000000e+00> : vector<2x5xf32>
    %114 = vector.multi_reduction <add>, %113, %cst_59 [2] : vector<2x5x8xf32> to vector<2x5xf32>
    %cst_60 = arith.constant dense<0xFF800000> : vector<2xf32>
    %115 = vector.multi_reduction <maximumf>, %110, %cst_60 [1] : vector<2x5xf32> to vector<2xf32>
    %116 = vector.shape_cast %115 : vector<2xf32> to vector<2x1xf32>
    %117 = vector.broadcast %116 : vector<2x1xf32> to vector<2x5xf32>
    %118 = arith.subf %110, %117 : vector<2x5xf32>
    %119 = math.exp %118 : vector<2x5xf32>
    %cst_61 = arith.constant dense<0.000000e+00> : vector<2xf32>
    %120 = vector.multi_reduction <add>, %119, %cst_61 [1] : vector<2x5xf32> to vector<2xf32>
    %121 = vector.shape_cast %120 : vector<2xf32> to vector<2x1xf32>
    %122 = vector.broadcast %121 : vector<2x1xf32> to vector<2x5xf32>
    %123 = arith.divf %119, %122 : vector<2x5xf32>
    %cst_62 = arith.constant dense<0xFF800000> : vector<2xf32>
    %124 = vector.multi_reduction <maximumf>, %114, %cst_62 [1] : vector<2x5xf32> to vector<2xf32>
    %125 = vector.shape_cast %124 : vector<2xf32> to vector<2x1xf32>
    %126 = vector.broadcast %125 : vector<2x1xf32> to vector<2x5xf32>
    %127 = arith.subf %114, %126 : vector<2x5xf32>
    %128 = math.exp %127 : vector<2x5xf32>
    %cst_63 = arith.constant dense<0.000000e+00> : vector<2xf32>
    %129 = vector.multi_reduction <add>, %128, %cst_63 [1] : vector<2x5xf32> to vector<2xf32>
    %130 = vector.shape_cast %129 : vector<2xf32> to vector<2x1xf32>
    %131 = vector.broadcast %130 : vector<2x1xf32> to vector<2x5xf32>
    %132 = arith.divf %128, %131 : vector<2x5xf32>
    %133 = arith.mulf %86, %87 : vector<2x5x10xf32>
    %cst_64 = arith.constant dense<0.000000e+00> : vector<2x5xf32>
    %134 = vector.multi_reduction <add>, %133, %cst_64 [2] : vector<2x5x10xf32> to vector<2x5xf32>
    %c104 = arith.constant 104 : index
    %c0_65 = arith.constant 0 : index
    %135 = vector.load %arg4[%c104, %c0_65] : memref<224x128xf32, #tpu.memory_space<vmem>>, vector<5x5xf32>
    %cst_66 = arith.constant dense<0.000000e+00> : vector<2x5xf32>
    %136 = tpu.matmul %123, %135, %cst_66 {dimension_numbers = #tpu.dot_dimension_numbers<[1], [0], [0], [1], [0, 0, 1, 1], [], []>} : vector<2x5xf32>, vector<5x5xf32>, vector<2x5xf32> -> vector<2x5xf32>
    %c112 = arith.constant 112 : index
    %c0_67 = arith.constant 0 : index
    %137 = vector.load %arg4[%c112, %c0_67] : memref<224x128xf32, #tpu.memory_space<vmem>>, vector<5x5xf32>
    %cst_68 = arith.constant dense<0.000000e+00> : vector<2x5xf32>
    %138 = tpu.matmul %132, %137, %cst_68 {dimension_numbers = #tpu.dot_dimension_numbers<[1], [0], [0], [1], [0, 0, 1, 1], [], []>} : vector<2x5xf32>, vector<5x5xf32>, vector<2x5xf32> -> vector<2x5xf32>
    %139 = arith.addf %136, %138 : vector<2x5xf32>
    %c120 = arith.constant 120 : index
    %c0_69 = arith.constant 0 : index
    %140 = vector.load %arg4[%c120, %c0_69] : memref<224x128xf32, #tpu.memory_space<vmem>>, vector<5x5xf32>
    %cst_70 = arith.constant dense<0.000000e+00> : vector<2x5xf32>
    %141 = tpu.matmul %134, %140, %cst_70 {dimension_numbers = #tpu.dot_dimension_numbers<[1], [0], [0], [1], [0, 0, 1, 1], [], []>} : vector<2x5xf32>, vector<5x5xf32>, vector<2x5xf32> -> vector<2x5xf32>
    %142 = arith.addf %139, %141 : vector<2x5xf32>
    %c128 = arith.constant 128 : index
    %c0_71 = arith.constant 0 : index
    %143 = vector.load %arg4[%c128, %c0_71] : memref<224x128xf32, #tpu.memory_space<vmem>>, vector<1x5xf32>
    %144 = vector.broadcast %143 : vector<1x5xf32> to vector<2x5xf32>
    %145 = arith.addf %142, %144 : vector<2x5xf32>
    %c216 = arith.constant 216 : index
    %c0_72 = arith.constant 0 : index
    %146 = vector.load %arg4[%c216, %c0_72] : memref<224x128xf32, #tpu.memory_space<vmem>>, vector<1x5xf32>
    %c0_73 = arith.constant 0 : index
    %c0_74 = arith.constant 0 : index
    %147 = vector.load %arg1[%c0_73, %c0_74] : memref<4x5xf32, #tpu.memory_space<vmem>>, vector<4x5xf32>
    %c136 = arith.constant 136 : index
    %c0_75 = arith.constant 0 : index
    %148 = vector.load %arg4[%c136, %c0_75] : memref<224x128xf32, #tpu.memory_space<vmem>>, vector<5x10xf32>
    %cst_76 = arith.constant dense<0.000000e+00> : vector<4x10xf32>
    %149 = tpu.matmul %147, %148, %cst_76 {dimension_numbers = #tpu.dot_dimension_numbers<[1], [0], [0], [1], [0, 0, 1, 1], [], []>} : vector<4x5xf32>, vector<5x10xf32>, vector<4x10xf32> -> vector<4x10xf32>
    %c144 = arith.constant 144 : index
    %c0_77 = arith.constant 0 : index
    %150 = vector.load %arg4[%c144, %c0_77] : memref<224x128xf32, #tpu.memory_space<vmem>>, vector<1x10xf32>
    %151 = vector.broadcast %150 : vector<1x10xf32> to vector<4x10xf32>
    %152 = arith.addf %149, %151 : vector<4x10xf32>
    %153 = vector.extract_strided_slice %152 {offsets = [0, 0], sizes = [4, 5], strides = [1, 1]} : vector<4x10xf32> to vector<4x5xf32>
    %154 = vector.extract_strided_slice %152 {offsets = [0, 5], sizes = [4, 5], strides = [1, 1]} : vector<4x10xf32> to vector<4x5xf32>
    %155 = arith.mulf %154, %154 : vector<4x5xf32>
    %cst_78 = arith.constant 2.000000e-01 : f32
    %156 = vector.broadcast %cst_78 : f32 to vector<4x5xf32>
    %157 = arith.addf %155, %156 : vector<4x5xf32>
    %158 = vector.broadcast %146 : vector<1x5xf32> to vector<4x5xf32>
    %159 = arith.subf %158, %153 : vector<4x5xf32>
    %cst_79 = arith.constant 1.000000e+00 : f32
    %160 = vector.broadcast %cst_79 : f32 to vector<4x5xf32>
    %161 = arith.mulf %160, %159 : vector<4x5xf32>
    %162 = arith.divf %161, %157 : vector<4x5xf32>
    %163 = math.exp %162 : vector<4x5xf32>
    %cst_80 = arith.constant -1.000000e+00 : f32
    %164 = vector.broadcast %cst_80 : f32 to vector<4x5xf32>
    %165 = arith.mulf %164, %163 : vector<4x5xf32>
    %166 = math.exp %165 : vector<4x5xf32>
    %cst_81 = arith.constant 1.000000e+00 : f32
    %167 = vector.broadcast %cst_81 : f32 to vector<4x5xf32>
    %168 = arith.divf %167, %157 : vector<4x5xf32>
    %169 = arith.mulf %168, %163 : vector<4x5xf32>
    %170 = arith.mulf %169, %166 : vector<4x5xf32>
    %171 = vector.extract_strided_slice %170 {offsets = [0, 0], sizes = [2, 5], strides = [1, 1]} : vector<4x5xf32> to vector<2x5xf32>
    %172 = vector.extract_strided_slice %170 {offsets = [2, 0], sizes = [2, 5], strides = [1, 1]} : vector<4x5xf32> to vector<2x5xf32>
    %c152 = arith.constant 152 : index
    %c0_82 = arith.constant 0 : index
    %173 = vector.load %arg4[%c152, %c0_82] : memref<224x128xf32, #tpu.memory_space<vmem>>, vector<5x5xf32>
    %cst_83 = arith.constant dense<0.000000e+00> : vector<2x5xf32>
    %174 = tpu.matmul %171, %173, %cst_83 {dimension_numbers = #tpu.dot_dimension_numbers<[1], [0], [0], [1], [0, 0, 1, 1], [], []>} : vector<2x5xf32>, vector<5x5xf32>, vector<2x5xf32> -> vector<2x5xf32>
    %c160 = arith.constant 160 : index
    %c0_84 = arith.constant 0 : index
    %175 = vector.load %arg4[%c160, %c0_84] : memref<224x128xf32, #tpu.memory_space<vmem>>, vector<5x5xf32>
    %cst_85 = arith.constant dense<0.000000e+00> : vector<2x5xf32>
    %176 = tpu.matmul %172, %175, %cst_85 {dimension_numbers = #tpu.dot_dimension_numbers<[1], [0], [0], [1], [0, 0, 1, 1], [], []>} : vector<2x5xf32>, vector<5x5xf32>, vector<2x5xf32> -> vector<2x5xf32>
    %177 = arith.addf %174, %176 : vector<2x5xf32>
    %c168 = arith.constant 168 : index
    %c0_86 = arith.constant 0 : index
    %178 = vector.load %arg4[%c168, %c0_86] : memref<224x128xf32, #tpu.memory_space<vmem>>, vector<5x5xf32>
    %cst_87 = arith.constant dense<0.000000e+00> : vector<2x5xf32>
    %179 = tpu.matmul %145, %178, %cst_87 {dimension_numbers = #tpu.dot_dimension_numbers<[1], [0], [0], [1], [0, 0, 1, 1], [], []>} : vector<2x5xf32>, vector<5x5xf32>, vector<2x5xf32> -> vector<2x5xf32>
    %180 = arith.addf %177, %179 : vector<2x5xf32>
    %c176 = arith.constant 176 : index
    %c0_88 = arith.constant 0 : index
    %181 = vector.load %arg4[%c176, %c0_88] : memref<224x128xf32, #tpu.memory_space<vmem>>, vector<1x5xf32>
    %182 = vector.broadcast %181 : vector<1x5xf32> to vector<2x5xf32>
    %183 = arith.addf %180, %182 : vector<2x5xf32>
    %184 = vector.extract_strided_slice %147 {offsets = [0, 0], sizes = [2, 5], strides = [1, 1]} : vector<4x5xf32> to vector<2x5xf32>
    %185 = vector.extract_strided_slice %147 {offsets = [2, 0], sizes = [2, 5], strides = [1, 1]} : vector<4x5xf32> to vector<2x5xf32>
    %c184 = arith.constant 184 : index
    %c0_89 = arith.constant 0 : index
    %186 = vector.load %arg4[%c184, %c0_89] : memref<224x128xf32, #tpu.memory_space<vmem>>, vector<5x5xf32>
    %cst_90 = arith.constant dense<0.000000e+00> : vector<2x5xf32>
    %187 = tpu.matmul %184, %186, %cst_90 {dimension_numbers = #tpu.dot_dimension_numbers<[1], [0], [0], [1], [0, 0, 1, 1], [], []>} : vector<2x5xf32>, vector<5x5xf32>, vector<2x5xf32> -> vector<2x5xf32>
    %c200 = arith.constant 200 : index
    %c0_91 = arith.constant 0 : index
    %188 = vector.load %arg4[%c200, %c0_91] : memref<224x128xf32, #tpu.memory_space<vmem>>, vector<1x5xf32>
    %189 = vector.broadcast %188 : vector<1x5xf32> to vector<2x5xf32>
    %190 = arith.addf %187, %189 : vector<2x5xf32>
    %c192 = arith.constant 192 : index
    %c0_92 = arith.constant 0 : index
    %191 = vector.load %arg4[%c192, %c0_92] : memref<224x128xf32, #tpu.memory_space<vmem>>, vector<5x5xf32>
    %cst_93 = arith.constant dense<0.000000e+00> : vector<2x5xf32>
    %192 = tpu.matmul %185, %191, %cst_93 {dimension_numbers = #tpu.dot_dimension_numbers<[1], [0], [0], [1], [0, 0, 1, 1], [], []>} : vector<2x5xf32>, vector<5x5xf32>, vector<2x5xf32> -> vector<2x5xf32>
    %c208 = arith.constant 208 : index
    %c0_94 = arith.constant 0 : index
    %193 = vector.load %arg4[%c208, %c0_94] : memref<224x128xf32, #tpu.memory_space<vmem>>, vector<1x5xf32>
    %194 = vector.broadcast %193 : vector<1x5xf32> to vector<2x5xf32>
    %195 = arith.addf %192, %194 : vector<2x5xf32>
    %196 = arith.mulf %183, %190 : vector<2x5xf32>
    %197 = arith.mulf %196, %195 : vector<2x5xf32>
    %cst_95 = arith.constant dense<0.000000e+00> : vector<2xf32>
    %198 = vector.multi_reduction <add>, %197, %cst_95 [1] : vector<2x5xf32> to vector<2xf32>
    %199 = vector.shape_cast %198 : vector<2xf32> to vector<2x1xf32>
    %c0_96 = arith.constant 0 : index
    %c0_97 = arith.constant 0 : index
    %200 = vector.load %arg5[%c0_96, %c0_97] : memref<2x1xf32, #tpu.memory_space<vmem>>, vector<2x1xf32>
    tpu.vector_store %arg5[%c0_96, %c0_97], %199 {strides = array<i32>} : memref<2x1xf32, #tpu.memory_space<vmem>>, vector<2x1xf32>,
    return
  }
}

</mosaic_0001>

<llo_original>
// kernel: anr_forward.1
$region0: #{anr_forward.1}
  #allocation0 [shape = 'u32[]', space=smem, size = 0x4, offset = 0x4, fixed_abs, tag = 'smem constant byte address 0x4 - core index']
  #allocation1 [shape = 'u32[144,128]{1,0:T(1,128)}', space=vmem, size = 0x12000, scoped, tag = 'internal scratch']
  #allocation2 [shape = 'f32[4,5,10]{2,1,0:T(8,128)}', space=vmem, size = 0x4000, scoped, tag = 'scratch operand']
  %s0 = inlined_call_operand.vmem [shape: s32[32,1], index: 0, kind: input, shape index: {}]
  %s1 = inlined_call_operand.vmem [shape: f32[4,5], index: 1, kind: input, shape index: {}]
  %s2 = inlined_call_operand.vmem [shape: f32[50,300], index: 2, kind: input, shape index: {}]
  %s3 = inlined_call_operand.vmem [shape: f32[300,50], index: 3, kind: input, shape index: {}]
  %s4 = inlined_call_operand.vmem [shape: f32[224,128], index: 4, kind: input, shape index: {}]
  %s5 = inlined_call_operand.vmem [shape: f32[2,1], index: 5, kind: output, shape index: {}]
  %s6 = sld [smem:[#allocation0]]
  $region30: #{anr_forward.1} parent=0
    _
  %s8 = ssub.s32 1, %s6
  %s9 = scalar_select 0, %s8, %s6
  // Predicated region
  $region2: #{anr_forward.1} parent=0 // pred_check
    _
  $region3: #{anr_forward.1} parent=0 // pred_check_branch
    %11 = sbr.rel (0) target = $region5
  $region4: #{anr_forward.1} parent=0 // pred_region
    _
  $region5: #{anr_forward.1} parent=0 // pred_fallthru
    _
  // Predicated region
  $region6: #{anr_forward.1} parent=0 // pred_check
    _
  $region7: #{anr_forward.1} parent=0 // pred_check_branch
    %13 = sbr.rel (0) target = $region9
  $region8: #{anr_forward.1} parent=0 // pred_region
    _
  $region9: #{anr_forward.1} parent=0 // pred_fallthru
    _
  // Predicated region
  $region10: #{anr_forward.1} parent=0 // pred_check
    _
  $region11: #{anr_forward.1} parent=0 // pred_check_branch
    %15 = sbr.rel (0) target = $region13
  $region12: #{anr_forward.1} parent=0 // pred_region
    _
  $region13: #{anr_forward.1} parent=0 // pred_fallthru
    _
  // Predicated region
  $region14: #{anr_forward.1} parent=0 // pred_check
    _
  $region15: #{anr_forward.1} parent=0 // pred_check_branch
    %17 = sbr.rel (0) target = $region17
  $region16: #{anr_forward.1} parent=0 // pred_region
    _
  $region17: #{anr_forward.1} parent=0 // pred_fallthru
    _
  // Predicated region
  $region18: #{anr_forward.1} parent=0 // pred_check
    _
  $region19: #{anr_forward.1} parent=0 // pred_check_branch
    %19 = sbr.rel (0) target = $region21
  $region20: #{anr_forward.1} parent=0 // pred_region
    _
  $region21: #{anr_forward.1} parent=0 // pred_fallthru
    _
  %v20 = vld [vmem:[%s0] sm:$0xff]
  %v21 = vld [vmem:[%s0 + $0x8] sm:$0xff]
  %v22 = vld [vmem:[%s0 + $0x10] sm:$0xff]
  %v23 = vld [vmem:[%s0 + $0x18] sm:$0xff]
  %v24 = vlaneseq
  %v25 = vand.u32 %v24, 127
  %26 = vset.pattern.permute.xlu0 0
  %27 = vperm.xlu0 %26, %v20
  %v28 = vpop.permute.xlu0 %27
  %29 = vset.pattern.permute.xlu0 0
  %30 = vperm.xlu0 %29, %v21
  %v31 = vpop.permute.xlu0 %30
  %32 = vset.pattern.permute.xlu0 0
  %33 = vperm.xlu0 %32, %v22
  %v34 = vpop.permute.xlu0 %33
  %35 = vset.pattern.permute.xlu0 0
  %36 = vperm.xlu0 %35, %v23
  %v37 = vpop.permute.xlu0 %36
  %vm38 = vcmp.eq.s32.totalorder %v28, %v25
  %vm39 = vcmp.eq.s32.totalorder %v31, %v25
  %vm40 = vcmp.eq.s32.totalorder %v34, %v25
  %vm41 = vcmp.eq.s32.totalorder %v37, %v25
  %v42 = vsel %vm38, 1.0, 0.0
  %v43 = vsel %vm39, 1.0, 0.0
  %v44 = vsel %vm40, 1.0, 0.0
  %v45 = vsel %vm41, 1.0, 0.0
  %v46 = vlaneseq
  %v47 = vshrl.u32 %v46, 7
  %v48 = vadd.s32 %v47, 8
  %v49 = vadd.s32 %v47, 16
  %v50 = vadd.s32 %v47, 24
  %v51 = vand.u32 %v47, 7
  %v52 = vand.u32 %v48, 7
  %v53 = vand.u32 %v49, 7
  %v54 = vand.u32 %v50, 7
  %v55 = vsub.s32 %v47, 1
  %v56 = vsub.s32 %v48, 1
  %v57 = vsub.s32 %v49, 1
  %v58 = vsub.s32 %v50, 1
  %vm59 = vcmp.eq.s32.totalorder %v25, %v55
  %vm60 = vcmp.eq.s32.totalorder %v25, %v56
  %vm61 = vcmp.eq.s32.totalorder %v25, %v57
  %vm62 = vcmp.eq.s32.totalorder %v25, %v58
  %vm63 = vcmp.ne.s32.totalorder %v51, 0
  %vm64 = vcmp.ne.s32.totalorder %v52, 0
  %vm65 = vcmp.ne.s32.totalorder %v53, 0
  %vm66 = vcmp.ne.s32.totalorder %v54, 0
  %vm67 = vmand %vm59, %vm63
  %vm68 = vmand %vm60, %vm64
  %vm69 = vmand %vm61, %vm65
  %vm70 = vmand %vm62, %vm66
  %v71 = vsel %vm67, 1.0, 0.0
  %v72 = vsel %vm68, 1.0, 0.0
  %v73 = vsel %vm69, 1.0, 0.0
  %v74 = vsel %vm70, 1.0, 0.0
  %v75 = vadd.s32 %v47, 1
  %v76 = vadd.s32 %v48, 1
  %v77 = vadd.s32 %v49, 1
  %v78 = vadd.s32 %v50, 1
  %vm79 = vcmp.eq.s32.totalorder %v25, %v75
  %vm80 = vcmp.eq.s32.totalorder %v25, %v76
  %vm81 = vcmp.eq.s32.totalorder %v25, %v77
  %vm82 = vcmp.eq.s32.totalorder %v25, %v78
  %vm83 = vcmp.ne.s32.totalorder %v51, 7
  %vm84 = vcmp.ne.s32.totalorder %v52, 7
  %vm85 = vcmp.ne.s32.totalorder %v53, 7
  %vm86 = vcmp.ne.s32.totalorder %v54, 7
  %vm87 = vmand %vm79, %vm83
  %vm88 = vmand %vm80, %vm84
  %vm89 = vmand %vm81, %vm85
  %vm90 = vmand %vm82, %vm86
  %v91 = vsel %vm87, 1.0, 0.0
  %v92 = vsel %vm88, 1.0, 0.0
  %v93 = vsel %vm89, 1.0, 0.0
  %v94 = vsel %vm90, 1.0, 0.0
  %v95 = vmul.u32 %v47, 10
  %vm96 = vcmp.ge.s32.totalorder %v25, %v95
  %v97 = vmul.u32 %v75, 10
  %vm98 = vcmp.lt.s32.totalorder %v25, %v97
  %vm99 = vmand %vm96, %vm98
  %v100 = vsel %vm99, 1.0, 0.0
  %v101 = vld [vmem:[%s2] sm:$0xff]
  %v102 = vld [vmem:[%s2 + $0x8] sm:$0xff]
  %v103 = vld [vmem:[%s2 + $0x10] sm:$0xff]
  %v104 = vld [vmem:[%s2 + $0x18] sm:$0xff]
  %v105 = vld [vmem:[%s2 + $0x20] sm:$0xff]
  %v106 = vld [vmem:[%s2 + $0x28] sm:$0xff]
  %v107 = vld [vmem:[%s2 + $0x30] sm:$0xff]
  %v108 = vld [vmem:[%s2 + $0x38] sm:$0xff]
  %v109 = vld [vmem:[%s2 + $0x40] sm:$0xff]
  %v110 = vld [vmem:[%s2 + $0x48] sm:$0xff]
  %v111 = vld [vmem:[%s2 + $0x50] sm:$0xff]
  %v112 = vld [vmem:[%s2 + $0x58] sm:$0xff]
  %v113 = vld [vmem:[%s2 + $0x60] sm:$0xff]
  %v114 = vld [vmem:[%s2 + $0x68] sm:$0xff]
  %v115 = vld [vmem:[%s2 + $0x70] sm:$0xff]
  %v116 = vld [vmem:[%s2 + $0x78] sm:$0xff]
  %v117 = vld [vmem:[%s2 + $0x80] sm:$0xff]
  %v118 = vld [vmem:[%s2 + $0x88] sm:$0xff]
  %v119 = vld [vmem:[%s2 + $0x90] sm:$0x3]
  %v120 = vld [vmem:[%s2 + $0x98] sm:$0x3]
  %v121 = vld [vmem:[%s2 + $0xa0] sm:$0x3]
  %vm122 = vcmask 408576
  %v124 = vsel %vm122, %v42, 0
  %v127 = vsel %vm122, %v43, 0
  %v130 = vsel %vm122, %v44, 0
  %v133 = vsel %vm122, %v45, 0
  %vm135 = vcmask 1041408
  %v137 = vsel %vm135, %v119, 0
  %v140 = vsel %vm135, %v120, 0
  %v143 = vsel %vm135, %v121, 0
  %145 = vmatprep.subr.mxu0 %v102
  %146 = vmatpush1.msra.mxu0 %v101
  %147 = vmatprep.subr.mxu0 %v105
  %148 = vmatpush1.msra.mxu0 %v104
  %149 = vmatprep.subr.mxu0 %v108
  %150 = vmatpush1.msra.mxu0 %v107
  %151 = vmatprep.subr.mxu0 %v111
  %152 = vmatpush1.msra.mxu0 %v110
  %153 = vmatprep.subr.mxu0 %v114
  %154 = vmatpush1.msra.mxu0 %v113
  %155 = vmatprep.subr.mxu0 %v117
  %156 = vmatpush1.msra.mxu0 %v116
  %157 = vmatprep.subr.mxu0 %v140
  %158 = vmatpush1.msra.mxu0 %v137
  %159 = vmatprep.subr.mxu0 0.0
  %160 = vmatpush1.msra.mxu0 0.0
  %161 = vmatprep.subr.mxu0 0.0
  %162 = vmatpush1.msra.mxu0 0.0
  %163 = vmatprep.subr.mxu0 0.0
  %164 = vmatpush1.msra.mxu0 0.0
  %165 = vmatprep.subr.mxu0 0.0
  %166 = vmatpush1.msra.mxu0 0.0
  %167 = vmatprep.subr.mxu0 0.0
  %168 = vmatpush1.msra.mxu0 0.0
  %169 = vmatprep.subr.mxu0 0.0
  %170 = vmatpush1.msra.mxu0 0.0
  %171 = vmatprep.subr.mxu0 0.0
  %172 = vmatpush1.msra.mxu0 0.0
  %173 = vmatprep.subr.mxu0 0.0
  %174 = vmatpush1.msra.mxu0 0.0
  %175 = vmatprep.subr.mxu0 0.0
  %176 = vmatpush1.msra.mxu0 0.0
  %177 = vmatprep.subr.mxu0 0.0
  %178 = vmatpush1.msra.mxu0 0.0
  %179 = vmatprep.subr.mxu0 0.0
  %180 = vmatpush1.msra.mxu0 0.0
  %181 = vmatprep.subr.mxu0 0.0
  %182 = vmatpush1.msra.mxu0 0.0
  %183 = vmatprep.subr.mxu0 0.0
  %184 = vmatpush1.msra.mxu0 0.0
  %185 = vmatprep.subr.mxu0 0.0
  %186 = vmatpush1.msra.mxu0 0.0
  %187 = vmatprep.subr.mxu0 0.0
  %188 = vmatpush1.msra.mxu0 0.0
  %189 = vmatprep.subr.mxu0 0.0
  %190 = vmatpush1.msra.mxu0 0.0
  %191 = vmatprep.subr.mxu0 0.0
  %192 = vmatpush1.msra.mxu0 0.0
  %193 = vmatprep.subr.mxu0 0.0
  %194 = vmatpush1.msra.mxu0 0.0
  %195 = vmatprep.subr.mxu0 0.0
  %196 = vmatpush1.msra.mxu0 0.0
  %197 = vmatprep.subr.mxu0 0.0
  %198 = vmatpush1.msra.mxu0 0.0
  %199 = vmatprep.subr.mxu0 0.0
  %200 = vmatpush1.msra.mxu0 0.0
  %201 = vmatprep.subr.mxu0 0.0
  %202 = vmatpush1.msra.mxu0 0.0
  %203 = vmatprep.subr.mxu0 0.0
  %204 = vmatpush1.msra.mxu0 0.0
  %205 = vmatprep.subr.mxu0 0.0
  %206 = vmatpush1.msra.mxu0 0.0
  %207 = vmatprep.subr.mxu0 0.0
  %208 = vmatpush1.msra.mxu0 0.0
  %209 = vmatprep.mubr.f32.mxu0 0.0
  %210 = vmatmul.mubr.f32.gmra.mrb[0].mxu0 %v124
  %v211 = vpop.f32.mrb[0].mxu0
  %v212 = vadd.f32 0.0, %v211
  %v213 = vpop.f32.mrb[0].mxu0
  %v214 = vadd.f32 0.0, %v213
  %215 = vmatprep.mubr.f32.mxu0 0.0
  %216 = vmatmul.mubr.f32.gmra.mrb[0].mxu0 %v127
  %v217 = vpop.f32.mrb[0].mxu0
  %v218 = vadd.f32 0.0, %v217
  %v219 = vpop.f32.mrb[0].mxu0
  %v220 = vadd.f32 0.0, %v219
  %221 = vmatprep.mubr.f32.mxu0 0.0
  %222 = vmatmul.mubr.f32.gmra.mrb[0].mxu0 %v130
  %v223 = vpop.f32.mrb[0].mxu0
  %v224 = vadd.f32 0.0, %v223
  %v225 = vpop.f32.mrb[0].mxu0
  %v226 = vadd.f32 0.0, %v225
  %227 = vmatprep.mubr.f32.mxu0 0.0
  %228 = vmatmul.mubr.f32.gmra.mrb[0].mxu0 %v133
  %v229 = vpop.f32.mrb[0].mxu0
  %v230 = vadd.f32 0.0, %v229
  %v231 = vpop.f32.mrb[0].mxu0
  %v232 = vadd.f32 0.0, %v231
  %233 = vdwg.mxu0
  %234 = vmatprep.subr.mxu0 0.0
  %235 = vmatpush1.msra.mxu0 %v103
  %236 = vmatprep.subr.mxu0 0.0
  %237 = vmatpush1.msra.mxu0 %v106
  %238 = vmatprep.subr.mxu0 0.0
  %239 = vmatpush1.msra.mxu0 %v109
  %240 = vmatprep.subr.mxu0 0.0
  %241 = vmatpush1.msra.mxu0 %v112
  %242 = vmatprep.subr.mxu0 0.0
  %243 = vmatpush1.msra.mxu0 %v115
  %244 = vmatprep.subr.mxu0 0.0
  %245 = vmatpush1.msra.mxu0 %v118
  %246 = vmatprep.subr.mxu0 0.0
  %247 = vmatpush1.msra.mxu0 %v143
  %248 = vmatprep.subr.mxu0 0.0
  %249 = vmatpush1.msra.mxu0 0.0
  %250 = vmatprep.subr.mxu0 0.0
  %251 = vmatpush1.msra.mxu0 0.0
  %252 = vmatprep.subr.mxu0 0.0
  %253 = vmatpush1.msra.mxu0 0.0
  %254 = vmatprep.subr.mxu0 0.0
  %255 = vmatpush1.msra.mxu0 0.0
  %256 = vmatprep.subr.mxu0 0.0
  %257 = vmatpush1.msra.mxu0 0.0
  %258 = vmatprep.subr.mxu0 0.0
  %259 = vmatpush1.msra.mxu0 0.0
  %260 = vmatprep.subr.mxu0 0.0
  %261 = vmatpush1.msra.mxu0 0.0
  %262 = vmatprep.subr.mxu0 0.0
  %263 = vmatpush1.msra.mxu0 0.0
  %264 = vmatprep.subr.mxu0 0.0
  %265 = vmatpush1.msra.mxu0 0.0
  %266 = vmatprep.subr.mxu0 0.0
  %267 = vmatpush1.msra.mxu0 0.0
  %268 = vmatprep.subr.mxu0 0.0
  %269 = vmatpush1.msra.mxu0 0.0
  %270 = vmatprep.subr.mxu0 0.0
  %271 = vmatpush1.msra.mxu0 0.0
  %272 = vmatprep.subr.mxu0 0.0
  %273 = vmatpush1.msra.mxu0 0.0
  %274 = vmatprep.subr.mxu0 0.0
  %275 = vmatpush1.msra.mxu0 0.0
  %276 = vmatprep.subr.mxu0 0.0
  %277 = vmatpush1.msra.mxu0 0.0
  %278 = vmatprep.subr.mxu0 0.0
  %279 = vmatpush1.msra.mxu0 0.0
  %280 = vmatprep.subr.mxu0 0.0
  %281 = vmatpush1.msra.mxu0 0.0
  %282 = vmatprep.subr.mxu0 0.0
  %283 = vmatpush1.msra.mxu0 0.0
  %284 = vmatprep.subr.mxu0 0.0
  %285 = vmatpush1.msra.mxu0 0.0
  %286 = vmatprep.subr.mxu0 0.0
  %287 = vmatpush1.msra.mxu0 0.0
  %288 = vmatprep.subr.mxu0 0.0
  %289 = vmatpush1.msra.mxu0 0.0
  %290 = vmatprep.subr.mxu0 0.0
  %291 = vmatpush1.msra.mxu0 0.0
  %292 = vmatprep.subr.mxu0 0.0
  %293 = vmatpush1.msra.mxu0 0.0
  %294 = vmatprep.subr.mxu0 0.0
  %295 = vmatpush1.msra.mxu0 0.0
  %296 = vmatprep.subr.mxu0 0.0
  %297 = vmatpush1.msra.mxu0 0.0
  %298 = vmatprep.mubr.f32.mxu0 0.0
  %299 = vmatmul.mubr.f32.gmra.mrb[0].mxu0 %v124
  %v300 = vpop.f32.mrb[0].mxu0
  %v301 = vadd.f32 0.0, %v300
  %v302 = vpop.f32.mrb[0].mxu0
  %303 = vmatprep.mubr.f32.mxu0 0.0
  %304 = vmatmul.mubr.f32.gmra.mrb[0].mxu0 %v127
  %v305 = vpop.f32.mrb[0].mxu0
  %v306 = vadd.f32 0.0, %v305
  %v307 = vpop.f32.mrb[0].mxu0
  %308 = vmatprep.mubr.f32.mxu0 0.0
  %309 = vmatmul.mubr.f32.gmra.mrb[0].mxu0 %v130
  %v310 = vpop.f32.mrb[0].mxu0
  %v311 = vadd.f32 0.0, %v310
  %v312 = vpop.f32.mrb[0].mxu0
  %313 = vmatprep.mubr.f32.mxu0 0.0
  %314 = vmatmul.mubr.f32.gmra.mrb[0].mxu0 %v133
  %v315 = vpop.f32.mrb[0].mxu0
  %v316 = vadd.f32 0.0, %v315
  %v317 = vpop.f32.mrb[0].mxu0
  %318 = vdwg.mxu0
  %v319 = vld [vmem:[%s3] sm:$0xff]
  %v320 = vld [vmem:[%s3 + $0x8] sm:$0xff]
  %v321 = vld [vmem:[%s3 + $0x10] sm:$0xff]
  %v322 = vld [vmem:[%s3 + $0x18] sm:$0xff]
  %v323 = vld [vmem:[%s3 + $0x20] sm:$0xff]
  %v324 = vld [vmem:[%s3 + $0x28] sm:$0xff]
  %v325 = vld [vmem:[%s3 + $0x30] sm:$0xff]
  %v326 = vld [vmem:[%s3 + $0x38] sm:$0xff]
  %v327 = vld [vmem:[%s3 + $0x40] sm:$0xff]
  %v328 = vld [vmem:[%s3 + $0x48] sm:$0xff]
  %v329 = vld [vmem:[%s3 + $0x50] sm:$0xff]
  %v330 = vld [vmem:[%s3 + $0x58] sm:$0xff]
  %v331 = vld [vmem:[%s3 + $0x60] sm:$0xff]
  %v332 = vld [vmem:[%s3 + $0x68] sm:$0xff]
  %v333 = vld [vmem:[%s3 + $0x70] sm:$0xff]
  %v334 = vld [vmem:[%s3 + $0x78] sm:$0xff]
  %v335 = vld [vmem:[%s3 + $0x80] sm:$0xff]
  %v336 = vld [vmem:[%s3 + $0x88] sm:$0xff]
  %v337 = vld [vmem:[%s3 + $0x90] sm:$0xff]
  %v338 = vld [vmem:[%s3 + $0x98] sm:$0xff]
  %v339 = vld [vmem:[%s3 + $0xa0] sm:$0xff]
  %v340 = vld [vmem:[%s3 + $0xa8] sm:$0xff]
  %v341 = vld [vmem:[%s3 + $0xb0] sm:$0xff]
  %v342 = vld [vmem:[%s3 + $0xb8] sm:$0xff]
  %v343 = vld [vmem:[%s3 + $0xc0] sm:$0xff]
  %v344 = vld [vmem:[%s3 + $0xc8] sm:$0xff]
  %v345 = vld [vmem:[%s3 + $0xd0] sm:$0xff]
  %v346 = vld [vmem:[%s3 + $0xd8] sm:$0xff]
  %v347 = vld [vmem:[%s3 + $0xe0] sm:$0xff]
  %v348 = vld [vmem:[%s3 + $0xe8] sm:$0xff]
  %v349 = vld [vmem:[%s3 + $0xf0] sm:$0xff]
  %v350 = vld [vmem:[%s3 + $0xf8] sm:$0xff]
  %v351 = vld [vmem:[%s3 + $0x100] sm:$0xff]
  %v352 = vld [vmem:[%s3 + $0x108] sm:$0xff]
  %v353 = vld [vmem:[%s3 + $0x110] sm:$0xff]
  %v354 = vld [vmem:[%s3 + $0x118] sm:$0xff]
  %v355 = vld [vmem:[%s3 + $0x120] sm:$0xff]
  %v356 = vld [vmem:[%s3 + $0x128] sm:$0xf]
  %vm357 = vcmask 359424
  %v359 = vsel %vm357, %v301, 0
  %v362 = vsel %vm357, %v306, 0
  %v365 = vsel %vm357, %v311, 0
  %v368 = vsel %vm357, %v316, 0
  %vm370 = vcmask 1043456
  %v372 = vsel %vm370, %v356, 0
  %374 = vmatprep.subr.mxu0 0.0
  %375 = vmatpush1.msra.mxu0 %v319
  %376 = vmatprep.subr.mxu0 0.0
  %377 = vmatpush1.msra.mxu0 %v320
  %378 = vmatprep.subr.mxu0 0.0
  %379 = vmatpush1.msra.mxu0 %v321
  %380 = vmatprep.subr.mxu0 0.0
  %381 = vmatpush1.msra.mxu0 %v322
  %382 = vmatprep.subr.mxu0 0.0
  %383 = vmatpush1.msra.mxu0 %v323
  %384 = vmatprep.subr.mxu0 0.0
  %385 = vmatpush1.msra.mxu0 %v324
  %386 = vmatprep.subr.mxu0 0.0
  %387 = vmatpush1.msra.mxu0 %v325
  %388 = vmatprep.subr.mxu0 0.0
  %389 = vmatpush1.msra.mxu0 %v326
  %390 = vmatprep.subr.mxu0 0.0
  %391 = vmatpush1.msra.mxu0 %v327
  %392 = vmatprep.subr.mxu0 0.0
  %393 = vmatpush1.msra.mxu0 %v328
  %394 = vmatprep.subr.mxu0 0.0
  %395 = vmatpush1.msra.mxu0 %v329
  %396 = vmatprep.subr.mxu0 0.0
  %397 = vmatpush1.msra.mxu0 %v330
  %398 = vmatprep.subr.mxu0 0.0
  %399 = vmatpush1.msra.mxu0 %v331
  %400 = vmatprep.subr.mxu0 0.0
  %401 = vmatpush1.msra.mxu0 %v332
  %402 = vmatprep.subr.mxu0 0.0
  %403 = vmatpush1.msra.mxu0 %v333
  %404 = vmatprep.subr.mxu0 0.0
  %405 = vmatpush1.msra.mxu0 %v334
  %406 = vmatprep.subr.mxu0 0.0
  %407 = vmatpush1.msra.mxu0 %v335
  %408 = vmatprep.subr.mxu0 0.0
  %409 = vmatpush1.msra.mxu0 %v336
  %410 = vmatprep.subr.mxu0 0.0
  %411 = vmatpush1.msra.mxu0 %v337
  %412 = vmatprep.subr.mxu0 0.0
  %413 = vmatpush1.msra.mxu0 %v338
  %414 = vmatprep.subr.mxu0 0.0
  %415 = vmatpush1.msra.mxu0 %v339
  %416 = vmatprep.subr.mxu0 0.0
  %417 = vmatpush1.msra.mxu0 %v340
  %418 = vmatprep.subr.mxu0 0.0
  %419 = vmatpush1.msra.mxu0 %v341
  %420 = vmatprep.subr.mxu0 0.0
  %421 = vmatpush1.msra.mxu0 %v342
  %422 = vmatprep.subr.mxu0 0.0
  %423 = vmatpush1.msra.mxu0 %v343
  %424 = vmatprep.subr.mxu0 0.0
  %425 = vmatpush1.msra.mxu0 %v344
  %426 = vmatprep.subr.mxu0 0.0
  %427 = vmatpush1.msra.mxu0 %v345
  %428 = vmatprep.subr.mxu0 0.0
  %429 = vmatpush1.msra.mxu0 %v346
  %430 = vmatprep.subr.mxu0 0.0
  %431 = vmatpush1.msra.mxu0 %v347
  %432 = vmatprep.subr.mxu0 0.0
  %433 = vmatpush1.msra.mxu0 %v348
  %434 = vmatprep.subr.mxu0 0.0
  %435 = vmatpush1.msra.mxu0 %v349
  %436 = vmatprep.subr.mxu0 0.0
  %437 = vmatpush1.msra.mxu0 %v350
  %438 = vmatprep.mubr.f32.mxu0 %v214
  %439 = vmatmul.mubr.f32.gmra.mrb[0].mxu0 %v212
  %v440 = vpop.f32.mrb[0].mxu0
  %v441 = vadd.f32 0.0, %v440
  %v442 = vpop.f32.mrb[0].mxu0
  %443 = vmatprep.mubr.f32.mxu0 %v220
  %444 = vmatmul.mubr.f32.gmra.mrb[0].mxu0 %v218
  %v445 = vpop.f32.mrb[0].mxu0
  %v446 = vadd.f32 0.0, %v445
  %v447 = vpop.f32.mrb[0].mxu0
  %448 = vmatprep.mubr.f32.mxu0 %v226
  %449 = vmatmul.mubr.f32.gmra.mrb[0].mxu0 %v224
  %v450 = vpop.f32.mrb[0].mxu0
  %v451 = vadd.f32 0.0, %v450
  %v452 = vpop.f32.mrb[0].mxu0
  %453 = vmatprep.mubr.f32.mxu0 %v232
  %454 = vmatmul.mubr.f32.gmra.mrb[0].mxu0 %v230
  %v455 = vpop.f32.mrb[0].mxu0
  %v456 = vadd.f32 0.0, %v455
  %v457 = vpop.f32.mrb[0].mxu0
  %458 = vdwg.mxu0
  %459 = vmatprep.subr.mxu0 0.0
  %460 = vmatpush1.msra.mxu0 %v351
  %461 = vmatprep.subr.mxu0 0.0
  %462 = vmatpush1.msra.mxu0 %v352
  %463 = vmatprep.subr.mxu0 0.0
  %464 = vmatpush1.msra.mxu0 %v353
  %465 = vmatprep.subr.mxu0 0.0
  %466 = vmatpush1.msra.mxu0 %v354
  %467 = vmatprep.subr.mxu0 0.0
  %468 = vmatpush1.msra.mxu0 %v355
  %469 = vmatprep.subr.mxu0 0.0
  %470 = vmatpush1.msra.mxu0 %v372
  %471 = vmatprep.subr.mxu0 0.0
  %472 = vmatpush1.msra.mxu0 0.0
  %473 = vmatprep.subr.mxu0 0.0
  %474 = vmatpush1.msra.mxu0 0.0
  %475 = vmatprep.subr.mxu0 0.0
  %476 = vmatpush1.msra.mxu0 0.0
  %477 = vmatprep.subr.mxu0 0.0
  %478 = vmatpush1.msra.mxu0 0.0
  %479 = vmatprep.subr.mxu0 0.0
  %480 = vmatpush1.msra.mxu0 0.0
  %481 = vmatprep.subr.mxu0 0.0
  %482 = vmatpush1.msra.mxu0 0.0
  %483 = vmatprep.subr.mxu0 0.0
  %484 = vmatpush1.msra.mxu0 0.0
  %485 = vmatprep.subr.mxu0 0.0
  %486 = vmatpush1.msra.mxu0 0.0
  %487 = vmatprep.subr.mxu0 0.0
  %488 = vmatpush1.msra.mxu0 0.0
  %489 = vmatprep.subr.mxu0 0.0
  %490 = vmatpush1.msra.mxu0 0.0
  %491 = vmatprep.subr.mxu0 0.0
  %492 = vmatpush1.msra.mxu0 0.0
  %493 = vmatprep.subr.mxu0 0.0
  %494 = vmatpush1.msra.mxu0 0.0
  %495 = vmatprep.subr.mxu0 0.0
  %496 = vmatpush1.msra.mxu0 0.0
  %497 = vmatprep.subr.mxu0 0.0
  %498 = vmatpush1.msra.mxu0 0.0
  %499 = vmatprep.subr.mxu0 0.0
  %500 = vmatpush1.msra.mxu0 0.0
  %501 = vmatprep.subr.mxu0 0.0
  %502 = vmatpush1.msra.mxu0 0.0
  %503 = vmatprep.subr.mxu0 0.0
  %504 = vmatpush1.msra.mxu0 0.0
  %505 = vmatprep.subr.mxu0 0.0
  %506 = vmatpush1.msra.mxu0 0.0
  %507 = vmatprep.subr.mxu0 0.0
  %508 = vmatpush1.msra.mxu0 0.0
  %509 = vmatprep.subr.mxu0 0.0
  %510 = vmatpush1.msra.mxu0 0.0
  %511 = vmatprep.subr.mxu0 0.0
  %512 = vmatpush1.msra.mxu0 0.0
  %513 = vmatprep.subr.mxu0 0.0
  %514 = vmatpush1.msra.mxu0 0.0
  %515 = vmatprep.subr.mxu0 0.0
  %516 = vmatpush1.msra.mxu0 0.0
  %517 = vmatprep.subr.mxu0 0.0
  %518 = vmatpush1.msra.mxu0 0.0
  %519 = vmatprep.subr.mxu0 0.0
  %520 = vmatpush1.msra.mxu0 0.0
  %521 = vmatprep.subr.mxu0 0.0
  %522 = vmatpush1.msra.mxu0 0.0
  %523 = vmatprep.mubr.f32.mxu0 0.0
  %524 = vmatmul.mubr.f32.gmra.mrb[0].mxu0 %v359
  %v525 = vpop.f32.mrb[0].mxu0
  %v526 = vadd.f32 %v441, %v525
  %v527 = vpop.f32.mrb[0].mxu0
  %528 = vmatprep.mubr.f32.mxu0 0.0
  %529 = vmatmul.mubr.f32.gmra.mrb[0].mxu0 %v362
  %v530 = vpop.f32.mrb[0].mxu0
  %v531 = vadd.f32 %v446, %v530
  %v532 = vpop.f32.mrb[0].mxu0
  %533 = vmatprep.mubr.f32.mxu0 0.0
  %534 = vmatmul.mubr.f32.gmra.mrb[0].mxu0 %v365
  %v535 = vpop.f32.mrb[0].mxu0
  %v536 = vadd.f32 %v451, %v535
  %v537 = vpop.f32.mrb[0].mxu0
  %538 = vmatprep.mubr.f32.mxu0 0.0
  %539 = vmatmul.mubr.f32.gmra.mrb[0].mxu0 %v368
  %v540 = vpop.f32.mrb[0].mxu0
  %v541 = vadd.f32 %v456, %v540
  %v542 = vpop.f32.mrb[0].mxu0
  %543 = vdwg.mxu0
  %v544 = vld [vmem:[%s4] sm:$0xff]
  %v545 = vld [vmem:[%s4 + $0x8] sm:$0xff]
  %v546 = vld [vmem:[%s4 + $0x10] sm:$0xff]
  %v547 = vld [vmem:[%s4 + $0x18] sm:$0xff]
  %v548 = vld [vmem:[%s4 + $0x20] sm:$0xff]
  %v549 = vld [vmem:[%s4 + $0x28] sm:$0xff]
  %v550 = vld [vmem:[%s4 + $0x30] sm:$0x3]
  %v552 = vsel %vm122, %v526, 0
  %v555 = vsel %vm122, %v531, 0
  %v558 = vsel %vm122, %v536, 0
  %v561 = vsel %vm122, %v541, 0
  %v564 = vsel %vm135, %v550, 0
  %566 = vmatprep.subr.mxu0 0.0
  %567 = vmatpush1.msra.mxu0 %v544
  %568 = vmatprep.subr.mxu0 0.0
  %569 = vmatpush1.msra.mxu0 %v545
  %570 = vmatprep.subr.mxu0 0.0
  %571 = vmatpush1.msra.mxu0 %v546
  %572 = vmatprep.subr.mxu0 0.0
  %573 = vmatpush1.msra.mxu0 %v547
  %574 = vmatprep.subr.mxu0 0.0
  %575 = vmatpush1.msra.mxu0 %v548
  %576 = vmatprep.subr.mxu0 0.0
  %577 = vmatpush1.msra.mxu0 %v549
  %578 = vmatprep.subr.mxu0 0.0
  %579 = vmatpush1.msra.mxu0 %v564
  %580 = vmatprep.subr.mxu0 0.0
  %581 = vmatpush1.msra.mxu0 0.0
  %582 = vmatprep.subr.mxu0 0.0
  %583 = vmatpush1.msra.mxu0 0.0
  %584 = vmatprep.subr.mxu0 0.0
  %585 = vmatpush1.msra.mxu0 0.0
  %586 = vmatprep.subr.mxu0 0.0
  %587 = vmatpush1.msra.mxu0 0.0
  %588 = vmatprep.subr.mxu0 0.0
  %589 = vmatpush1.msra.mxu0 0.0
  %590 = vmatprep.subr.mxu0 0.0
  %591 = vmatpush1.msra.mxu0 0.0
  %592 = vmatprep.subr.mxu0 0.0
  %593 = vmatpush1.msra.mxu0 0.0
  %594 = vmatprep.subr.mxu0 0.0
  %595 = vmatpush1.msra.mxu0 0.0
  %596 = vmatprep.subr.mxu0 0.0
  %597 = vmatpush1.msra.mxu0 0.0
  %598 = vmatprep.subr.mxu0 0.0
  %599 = vmatpush1.msra.mxu0 0.0
  %600 = vmatprep.subr.mxu0 0.0
  %601 = vmatpush1.msra.mxu0 0.0
  %602 = vmatprep.subr.mxu0 0.0
  %603 = vmatpush1.msra.mxu0 0.0
  %604 = vmatprep.subr.mxu0 0.0
  %605 = vmatpush1.msra.mxu0 0.0
  %606 = vmatprep.subr.mxu0 0.0
  %607 = vmatpush1.msra.mxu0 0.0
  %608 = vmatprep.subr.mxu0 0.0
  %609 = vmatpush1.msra.mxu0 0.0
  %610 = vmatprep.subr.mxu0 0.0
  %611 = vmatpush1.msra.mxu0 0.0
  %612 = vmatprep.subr.mxu0 0.0
  %613 = vmatpush1.msra.mxu0 0.0
  %614 = vmatprep.subr.mxu0 0.0
  %615 = vmatpush1.msra.mxu0 0.0
  %616 = vmatprep.subr.mxu0 0.0
  %617 = vmatpush1.msra.mxu0 0.0
  %618 = vmatprep.subr.mxu0 0.0
  %619 = vmatpush1.msra.mxu0 0.0
  %620 = vmatprep.subr.mxu0 0.0
  %621 = vmatpush1.msra.mxu0 0.0
  %622 = vmatprep.subr.mxu0 0.0
  %623 = vmatpush1.msra.mxu0 0.0
  %624 = vmatprep.subr.mxu0 0.0
  %625 = vmatpush1.msra.mxu0 0.0
  %626 = vmatprep.subr.mxu0 0.0
  %627 = vmatpush1.msra.mxu0 0.0
  %628 = vmatprep.subr.mxu0 0.0
  %629 = vmatpush1.msra.mxu0 0.0
  %630 = vmatprep.mubr.f32.mxu0 0.0
  %631 = vmatmul.mubr.f32.gmra.mrb[0].mxu0 %v552
  %v632 = vpop.f32.mrb[0].mxu0
  %v633 = vadd.f32 0.0, %v632
  %v634 = vpop.f32.mrb[0].mxu0
  %635 = vmatprep.mubr.f32.mxu0 0.0
  %636 = vmatmul.mubr.f32.gmra.mrb[0].mxu0 %v555
  %v637 = vpop.f32.mrb[0].mxu0
  %v638 = vadd.f32 0.0, %v637
  %v639 = vpop.f32.mrb[0].mxu0
  %640 = vmatprep.mubr.f32.mxu0 0.0
  %641 = vmatmul.mubr.f32.gmra.mrb[0].mxu0 %v558
  %v642 = vpop.f32.mrb[0].mxu0
  %v643 = vadd.f32 0.0, %v642
  %v644 = vpop.f32.mrb[0].mxu0
  %645 = vmatprep.mubr.f32.mxu0 0.0
  %646 = vmatmul.mubr.f32.gmra.mrb[0].mxu0 %v561
  %v647 = vpop.f32.mrb[0].mxu0
  %v648 = vadd.f32 0.0, %v647
  %v649 = vpop.f32.mrb[0].mxu0
  %650 = vdwg.mxu0
  %655 = vrot.lane.b32.xlu0 %v633, 123
  %v656 = vpop.permute.xlu0 %655
  %657 = vrot.lane.b32.xlu0 %v638, 123
  %v658 = vpop.permute.xlu0 %657
  %659 = vrot.lane.b32.xlu0 %v643, 123
  %v660 = vpop.permute.xlu0 %659
  %661 = vrot.lane.b32.xlu0 %v648, 123
  %v662 = vpop.permute.xlu0 %661
  %vm667 = vcmask 261120
  %v669 = vsel %vm667, %v71, 0
  %v672 = vsel %vm667, %v72, 0
  %v675 = vsel %vm667, %v73, 0
  %v678 = vsel %vm667, %v74, 0
  %680 = vmatprep.subr.mxu0 0.0
  %681 = vmatpush1.msra.mxu0 %v633
  %682 = vmatprep.subr.mxu0 0.0
  %683 = vmatpush1.msra.mxu0 %v638
  %684 = vmatprep.subr.mxu0 0.0
  %685 = vmatpush1.msra.mxu0 %v643
  %686 = vmatprep.subr.mxu0 0.0
  %687 = vmatpush1.msra.mxu0 %v648
  %688 = vmatprep.subr.mxu0 0.0
  %689 = vmatpush1.msra.mxu0 0.0
  %690 = vmatprep.subr.mxu0 0.0
  %691 = vmatpush1.msra.mxu0 0.0
  %692 = vmatprep.subr.mxu0 0.0
  %693 = vmatpush1.msra.mxu0 0.0
  %694 = vmatprep.subr.mxu0 0.0
  %695 = vmatpush1.msra.mxu0 0.0
  %696 = vmatprep.subr.mxu0 0.0
  %697 = vmatpush1.msra.mxu0 0.0
  %698 = vmatprep.subr.mxu0 0.0
  %699 = vmatpush1.msra.mxu0 0.0
  %700 = vmatprep.subr.mxu0 0.0
  %701 = vmatpush1.msra.mxu0 0.0
  %702 = vmatprep.subr.mxu0 0.0
  %703 = vmatpush1.msra.mxu0 0.0
  %704 = vmatprep.subr.mxu0 0.0
  %705 = vmatpush1.msra.mxu0 0.0
  %706 = vmatprep.subr.mxu0 0.0
  %707 = vmatpush1.msra.mxu0 0.0
  %708 = vmatprep.subr.mxu0 0.0
  %709 = vmatpush1.msra.mxu0 0.0
  %710 = vmatprep.subr.mxu0 0.0
  %711 = vmatpush1.msra.mxu0 0.0
  %712 = vmatprep.subr.mxu0 0.0
  %713 = vmatpush1.msra.mxu0 0.0
  %714 = vmatprep.subr.mxu0 0.0
  %715 = vmatpush1.msra.mxu0 0.0
  %716 = vmatprep.subr.mxu0 0.0
  %717 = vmatpush1.msra.mxu0 0.0
  %718 = vmatprep.subr.mxu0 0.0
  %719 = vmatpush1.msra.mxu0 0.0
  %720 = vmatprep.subr.mxu0 0.0
  %721 = vmatpush1.msra.mxu0 0.0
  %722 = vmatprep.subr.mxu0 0.0
  %723 = vmatpush1.msra.mxu0 0.0
  %724 = vmatprep.subr.mxu0 0.0
  %725 = vmatpush1.msra.mxu0 0.0
  %726 = vmatprep.subr.mxu0 0.0
  %727 = vmatpush1.msra.mxu0 0.0
  %728 = vmatprep.subr.mxu0 0.0
  %729 = vmatpush1.msra.mxu0 0.0
  %730 = vmatprep.subr.mxu0 0.0
  %731 = vmatpush1.msra.mxu0 0.0
  %732 = vmatprep.subr.mxu0 0.0
  %733 = vmatpush1.msra.mxu0 0.0
  %734 = vmatprep.subr.mxu0 0.0
  %735 = vmatpush1.msra.mxu0 0.0
  %736 = vmatprep.subr.mxu0 0.0
  %737 = vmatpush1.msra.mxu0 0.0
  %738 = vmatprep.subr.mxu0 0.0
  %739 = vmatpush1.msra.mxu0 0.0
  %740 = vmatprep.subr.mxu0 0.0
  %741 = vmatpush1.msra.mxu0 0.0
  %742 = vmatprep.subr.mxu0 0.0
  %743 = vmatpush1.msra.mxu0 0.0
  %744 = vmatprep.mubr.f32.mxu0 0.0
  %745 = vmatmul.mubr.f32.gmra.mrb[0].mxu0 %v669
  %v746 = vpop.f32.mrb[0].mxu0
  %v747 = vadd.f32 %v656, %v746
  %v748 = vpop.f32.mrb[0].mxu0
  %749 = vmatprep.mubr.f32.mxu0 0.0
  %750 = vmatmul.mubr.f32.gmra.mrb[0].mxu0 %v672
  %v751 = vpop.f32.mrb[0].mxu0
  %v752 = vadd.f32 %v658, %v751
  %v753 = vpop.f32.mrb[0].mxu0
  %754 = vmatprep.mubr.f32.mxu0 0.0
  %755 = vmatmul.mubr.f32.gmra.mrb[0].mxu0 %v675
  %v756 = vpop.f32.mrb[0].mxu0
  %v757 = vadd.f32 %v660, %v756
  %v758 = vpop.f32.mrb[0].mxu0
  %759 = vmatprep.mubr.f32.mxu0 0.0
  %760 = vmatmul.mubr.f32.gmra.mrb[0].mxu0 %v678
  %v761 = vpop.f32.mrb[0].mxu0
  %v762 = vadd.f32 %v662, %v761
  %v763 = vpop.f32.mrb[0].mxu0
  %764 = vdwg.mxu0
  %765 = vrot.lane.b32.xlu0 %v633, 118
  %v766 = vpop.permute.xlu0 %765
  %767 = vrot.lane.b32.xlu0 %v638, 118
  %v768 = vpop.permute.xlu0 %767
  %769 = vrot.lane.b32.xlu0 %v643, 118
  %v770 = vpop.permute.xlu0 %769
  %771 = vrot.lane.b32.xlu0 %v648, 118
  %v772 = vpop.permute.xlu0 %771
  %v778 = vsel %vm667, %v91, 0
  %v781 = vsel %vm667, %v92, 0
  %v784 = vsel %vm667, %v93, 0
  %v787 = vsel %vm667, %v94, 0
  %789 = vmatprep.subr.mxu0 0.0
  %790 = vmatpush1.msra.mxu0 %v766
  %791 = vmatprep.subr.mxu0 0.0
  %792 = vmatpush1.msra.mxu0 %v768
  %793 = vmatprep.subr.mxu0 0.0
  %794 = vmatpush1.msra.mxu0 %v770
  %795 = vmatprep.subr.mxu0 0.0
  %796 = vmatpush1.msra.mxu0 %v772
  %797 = vmatprep.subr.mxu0 0.0
  %798 = vmatpush1.msra.mxu0 0.0
  %799 = vmatprep.subr.mxu0 0.0
  %800 = vmatpush1.msra.mxu0 0.0
  %801 = vmatprep.subr.mxu0 0.0
  %802 = vmatpush1.msra.mxu0 0.0
  %803 = vmatprep.subr.mxu0 0.0
  %804 = vmatpush1.msra.mxu0 0.0
  %805 = vmatprep.subr.mxu0 0.0
  %806 = vmatpush1.msra.mxu0 0.0
  %807 = vmatprep.subr.mxu0 0.0
  %808 = vmatpush1.msra.mxu0 0.0
  %809 = vmatprep.subr.mxu0 0.0
  %810 = vmatpush1.msra.mxu0 0.0
  %811 = vmatprep.subr.mxu0 0.0
  %812 = vmatpush1.msra.mxu0 0.0
  %813 = vmatprep.subr.mxu0 0.0
  %814 = vmatpush1.msra.mxu0 0.0
  %815 = vmatprep.subr.mxu0 0.0
  %816 = vmatpush1.msra.mxu0 0.0
  %817 = vmatprep.subr.mxu0 0.0
  %818 = vmatpush1.msra.mxu0 0.0
  %819 = vmatprep.subr.mxu0 0.0
  %820 = vmatpush1.msra.mxu0 0.0
  %821 = vmatprep.subr.mxu0 0.0
  %822 = vmatpush1.msra.mxu0 0.0
  %823 = vmatprep.subr.mxu0 0.0
  %824 = vmatpush1.msra.mxu0 0.0
  %825 = vmatprep.subr.mxu0 0.0
  %826 = vmatpush1.msra.mxu0 0.0
  %827 = vmatprep.subr.mxu0 0.0
  %828 = vmatpush1.msra.mxu0 0.0
  %829 = vmatprep.subr.mxu0 0.0
  %830 = vmatpush1.msra.mxu0 0.0
  %831 = vmatprep.subr.mxu0 0.0
  %832 = vmatpush1.msra.mxu0 0.0
  %833 = vmatprep.subr.mxu0 0.0
  %834 = vmatpush1.msra.mxu0 0.0
  %835 = vmatprep.subr.mxu0 0.0
  %836 = vmatpush1.msra.mxu0 0.0
  %837 = vmatprep.subr.mxu0 0.0
  %838 = vmatpush1.msra.mxu0 0.0
  %839 = vmatprep.subr.mxu0 0.0
  %840 = vmatpush1.msra.mxu0 0.0
  %841 = vmatprep.subr.mxu0 0.0
  %842 = vmatpush1.msra.mxu0 0.0
  %843 = vmatprep.subr.mxu0 0.0
  %844 = vmatpush1.msra.mxu0 0.0
  %845 = vmatprep.subr.mxu0 0.0
  %846 = vmatpush1.msra.mxu0 0.0
  %847 = vmatprep.subr.mxu0 0.0
  %848 = vmatpush1.msra.mxu0 0.0
  %849 = vmatprep.subr.mxu0 0.0
  %850 = vmatpush1.msra.mxu0 0.0
  %851 = vmatprep.subr.mxu0 0.0
  %852 = vmatpush1.msra.mxu0 0.0
  %853 = vmatprep.mubr.f32.mxu0 0.0
  %854 = vmatmul.mubr.f32.gmra.mrb[0].mxu0 %v778
  %v855 = vpop.f32.mrb[0].mxu0
  %v856 = vadd.f32 0.0, %v855
  %v857 = vpop.f32.mrb[0].mxu0
  %858 = vmatprep.mubr.f32.mxu0 0.0
  %859 = vmatmul.mubr.f32.gmra.mrb[0].mxu0 %v781
  %v860 = vpop.f32.mrb[0].mxu0
  %v861 = vadd.f32 0.0, %v860
  %v862 = vpop.f32.mrb[0].mxu0
  %863 = vmatprep.mubr.f32.mxu0 0.0
  %864 = vmatmul.mubr.f32.gmra.mrb[0].mxu0 %v784
  %v865 = vpop.f32.mrb[0].mxu0
  %v866 = vadd.f32 0.0, %v865
  %v867 = vpop.f32.mrb[0].mxu0
  %868 = vmatprep.mubr.f32.mxu0 0.0
  %869 = vmatmul.mubr.f32.gmra.mrb[0].mxu0 %v787
  %v870 = vpop.f32.mrb[0].mxu0
  %v871 = vadd.f32 0.0, %v870
  %v872 = vpop.f32.mrb[0].mxu0
  %873 = vdwg.mxu0
  %v874 = vadd.f32 %v747, %v856
  %v875 = vadd.f32 %v752, %v861
  %v876 = vadd.f32 %v757, %v866
  %v877 = vadd.f32 %v762, %v871
  %vm878 = vcmask 39936
  %v879 = vsel %vm878, %v874, -inf
  %v880 = vrot.slane %v879, 4
  %v881 = vmax.f32 %v879, %v880
  %v882 = vrot.slane %v881, 2
  %v883 = vmax.f32 %v881, %v882
  %v884 = vrot.slane %v883, 1
  %v885 = vmax.f32 %v883, %v884
  %v886 = vsel %vm878, %v875, -inf
  %v887 = vrot.slane %v886, 4
  %v888 = vmax.f32 %v886, %v887
  %v889 = vrot.slane %v888, 2
  %v890 = vmax.f32 %v888, %v889
  %v891 = vrot.slane %v890, 1
  %v892 = vmax.f32 %v890, %v891
  %v893 = vsel %vm878, %v876, -inf
  %v894 = vrot.slane %v893, 4
  %v895 = vmax.f32 %v893, %v894
  %v896 = vrot.slane %v895, 2
  %v897 = vmax.f32 %v895, %v896
  %v898 = vrot.slane %v897, 1
  %v899 = vmax.f32 %v897, %v898
  %v900 = vsel %vm878, %v877, -inf
  %v901 = vrot.slane %v900, 4
  %v902 = vmax.f32 %v900, %v901
  %v903 = vrot.slane %v902, 2
  %v904 = vmax.f32 %v902, %v903
  %v905 = vrot.slane %v904, 1
  %v906 = vmax.f32 %v904, %v905
  %v907 = vsub.f32 %v874, %v885
  %v908 = vsub.f32 %v875, %v892
  %v909 = vsub.f32 %v876, %v899
  %v910 = vsub.f32 %v877, %v906
  %v911 = vmul.f32 %v907, 1.442695
  %v912 = vpow.pop %v911
  %v913 = vmul.f32 %v908, 1.442695
  %v914 = vpow.pop %v913
  %v915 = vmul.f32 %v909, 1.442695
  %v916 = vpow.pop %v915
  %v917 = vmul.f32 %v910, 1.442695
  %v918 = vpow.pop %v917
  %v919 = vsel %vm878, %v912, 0.0
  %v920 = vrot.slane %v919, 4
  %v921 = vadd.f32 %v919, %v920
  %v922 = vrot.slane %v921, 2
  %v923 = vadd.f32 %v921, %v922
  %v924 = vrot.slane %v923, 1
  %v925 = vadd.f32 %v923, %v924
  %v926 = vsel %vm878, %v914, 0.0
  %v927 = vrot.slane %v926, 4
  %v928 = vadd.f32 %v926, %v927
  %v929 = vrot.slane %v928, 2
  %v930 = vadd.f32 %v928, %v929
  %v931 = vrot.slane %v930, 1
  %v932 = vadd.f32 %v930, %v931
  %v933 = vsel %vm878, %v916, 0.0
  %v934 = vrot.slane %v933, 4
  %v935 = vadd.f32 %v933, %v934
  %v936 = vrot.slane %v935, 2
  %v937 = vadd.f32 %v935, %v936
  %v938 = vrot.slane %v937, 1
  %v939 = vadd.f32 %v937, %v938
  %v940 = vsel %vm878, %v918, 0.0
  %v941 = vrot.slane %v940, 4
  %v942 = vadd.f32 %v940, %v941
  %v943 = vrot.slane %v942, 2
  %v944 = vadd.f32 %v942, %v943
  %v945 = vrot.slane %v944, 1
  %v946 = vadd.f32 %v944, %v945
  %v947 = vrcp.pop %v925
  %v948 = vmul.f32 %v912, %v947
  %v949 = vrcp.pop %v932
  %v950 = vmul.f32 %v914, %v949
  %v951 = vrcp.pop %v939
  %v952 = vmul.f32 %v916, %v951
  %v953 = vrcp.pop %v946
  %v954 = vmul.f32 %v918, %v953
  %v956 = vsel %vm878, %v948, 0
  %v959 = vsel %vm878, %v950, 0
  %v962 = vsel %vm878, %v952, 0
  %v965 = vsel %vm878, %v954, 0
  %vm967 = vcmask 1044480
  %v969 = vsel %vm967, %v100, 0
  %971 = vmatprep.subr.mxu0 0.0
  %972 = vmatpush1.msra.mxu0 %v969
  %973 = vmatprep.subr.mxu0 0.0
  %974 = vmatpush1.msra.mxu0 0.0
  %975 = vmatprep.subr.mxu0 0.0
  %976 = vmatpush1.msra.mxu0 0.0
  %977 = vmatprep.subr.mxu0 0.0
  %978 = vmatpush1.msra.mxu0 0.0
  %979 = vmatprep.subr.mxu0 0.0
  %980 = vmatpush1.msra.mxu0 0.0
  %981 = vmatprep.subr.mxu0 0.0
  %982 = vmatpush1.msra.mxu0 0.0
  %983 = vmatprep.subr.mxu0 0.0
  %984 = vmatpush1.msra.mxu0 0.0
  %985 = vmatprep.subr.mxu0 0.0
  %986 = vmatpush1.msra.mxu0 0.0
  %987 = vmatprep.subr.mxu0 0.0
  %988 = vmatpush1.msra.mxu0 0.0
  %989 = vmatprep.subr.mxu0 0.0
  %990 = vmatpush1.msra.mxu0 0.0
  %991 = vmatprep.subr.mxu0 0.0
  %992 = vmatpush1.msra.mxu0 0.0
  %993 = vmatprep.subr.mxu0 0.0
  %994 = vmatpush1.msra.mxu0 0.0
  %995 = vmatprep.subr.mxu0 0.0
  %996 = vmatpush1.msra.mxu0 0.0
  %997 = vmatprep.subr.mxu0 0.0
  %998 = vmatpush1.msra.mxu0 0.0
  %999 = vmatprep.subr.mxu0 0.0
  %1000 = vmatpush1.msra.mxu0 0.0
  %1001 = vmatprep.subr.mxu0 0.0
  %1002 = vmatpush1.msra.mxu0 0.0
  %1003 = vmatprep.subr.mxu0 0.0
  %1004 = vmatpush1.msra.mxu0 0.0
  %1005 = vmatprep.subr.mxu0 0.0
  %1006 = vmatpush1.msra.mxu0 0.0
  %1007 = vmatprep.subr.mxu0 0.0
  %1008 = vmatpush1.msra.mxu0 0.0
  %1009 = vmatprep.subr.mxu0 0.0
  %1010 = vmatpush1.msra.mxu0 0.0
  %1011 = vmatprep.subr.mxu0 0.0
  %1012 = vmatpush1.msra.mxu0 0.0
  %1013 = vmatprep.subr.mxu0 0.0
  %1014 = vmatpush1.msra.mxu0 0.0
  %1015 = vmatprep.subr.mxu0 0.0
  %1016 = vmatpush1.msra.mxu0 0.0
  %1017 = vmatprep.subr.mxu0 0.0
  %1018 = vmatpush1.msra.mxu0 0.0
  %1019 = vmatprep.subr.mxu0 0.0
  %1020 = vmatpush1.msra.mxu0 0.0
  %1021 = vmatprep.subr.mxu0 0.0
  %1022 = vmatpush1.msra.mxu0 0.0
  %1023 = vmatprep.subr.mxu0 0.0
  %1024 = vmatpush1.msra.mxu0 0.0
  %1025 = vmatprep.subr.mxu0 0.0
  %1026 = vmatpush1.msra.mxu0 0.0
  %1027 = vmatprep.subr.mxu0 0.0
  %1028 = vmatpush1.msra.mxu0 0.0
  %1029 = vmatprep.subr.mxu0 0.0
  %1030 = vmatpush1.msra.mxu0 0.0
  %1031 = vmatprep.subr.mxu0 0.0
  %1032 = vmatpush1.msra.mxu0 0.0
  %1033 = vmatprep.subr.mxu0 0.0
  %1034 = vmatpush1.msra.mxu0 0.0
  %1035 = vmatprep.mubr.f32.mxu0 0.0
  %1036 = vmatmul.mubr.f32.gmra.mrb[0].mxu0 %v956
  %v1037 = vpop.f32.mrb[0].mxu0
  %v1038 = vadd.f32 0.0, %v1037
  %v1039 = vpop.f32.mrb[0].mxu0
  %1040 = vmatprep.mubr.f32.mxu0 0.0
  %1041 = vmatmul.mubr.f32.gmra.mrb[0].mxu0 %v959
  %v1042 = vpop.f32.mrb[0].mxu0
  %v1043 = vadd.f32 0.0, %v1042
  %v1044 = vpop.f32.mrb[0].mxu0
  %1045 = vmatprep.mubr.f32.mxu0 0.0
  %1046 = vmatmul.mubr.f32.gmra.mrb[0].mxu0 %v962
  %v1047 = vpop.f32.mrb[0].mxu0
  %v1048 = vadd.f32 0.0, %v1047
  %v1049 = vpop.f32.mrb[0].mxu0
  %1050 = vmatprep.mubr.f32.mxu0 0.0
  %1051 = vmatmul.mubr.f32.gmra.mrb[0].mxu0 %v965
  %v1052 = vpop.f32.mrb[0].mxu0
  %v1053 = vadd.f32 0.0, %v1052
  %v1054 = vpop.f32.mrb[0].mxu0
  %1055 = vdwg.mxu0
  %v1056 = vmul.f32 %v1038, %v526
  %v1057 = vmul.f32 %v1043, %v531
  %v1058 = vmul.f32 %v1048, %v536
  %v1059 = vmul.f32 %v1053, %v541
  %v1060 = vsel %vm122, %v1056, 0.0
  %v1061 = vrot.slane %v1060, 4
  %v1062 = vadd.f32 %v1060, %v1061
  %v1063 = vrot.slane %v1062, 2
  %v1064 = vadd.f32 %v1062, %v1063
  %v1065 = vrot.slane %v1064, 1
  %v1066 = vadd.f32 %v1064, %v1065
  %v1067 = vsel %vm122, %v1057, 0.0
  %v1068 = vrot.slane %v1067, 4
  %v1069 = vadd.f32 %v1067, %v1068
  %v1070 = vrot.slane %v1069, 2
  %v1071 = vadd.f32 %v1069, %v1070
  %v1072 = vrot.slane %v1071, 1
  %v1073 = vadd.f32 %v1071, %v1072
  %v1074 = vsel %vm122, %v1058, 0.0
  %v1075 = vrot.slane %v1074, 4
  %v1076 = vadd.f32 %v1074, %v1075
  %v1077 = vrot.slane %v1076, 2
  %v1078 = vadd.f32 %v1076, %v1077
  %v1079 = vrot.slane %v1078, 1
  %v1080 = vadd.f32 %v1078, %v1079
  %v1081 = vsel %vm122, %v1059, 0.0
  %v1082 = vrot.slane %v1081, 4
  %v1083 = vadd.f32 %v1081, %v1082
  %v1084 = vrot.slane %v1083, 2
  %v1085 = vadd.f32 %v1083, %v1084
  %v1086 = vrot.slane %v1085, 1
  %v1087 = vadd.f32 %v1085, %v1086
  %vm1088 = vcmask 73728
  %1089 = vst.msk [vmem:[#allocation2] sm:$0x1] %vm1088, %v1066
  %1090 = vst.msk [vmem:[#allocation2 + $0x8] sm:$0x1] %vm1088, %v1073
  %1091 = vst.msk [vmem:[#allocation2 + $0x10] sm:$0x1] %vm1088, %v1080
  %1092 = vst.msk [vmem:[#allocation2 + $0x18] sm:$0x1] %vm1088, %v1087
  %1097 = vrot.lane.b32.xlu0 %v1066, 118
  %v1098 = vpop.permute.xlu0 %1097
  %1099 = vrot.lane.b32.xlu0 %v1073, 118
  %v1100 = vpop.permute.xlu0 %1099
  %1101 = vrot.lane.b32.xlu0 %v1080, 118
  %v1102 = vpop.permute.xlu0 %1101
  %1103 = vrot.lane.b32.xlu0 %v1087, 118
  %v1104 = vpop.permute.xlu0 %1103
  %1109 = vst.msk [vmem:[#allocation2 + $0x1] sm:$0x1] %vm1088, %v1098
  %1110 = vst.msk [vmem:[#allocation2 + $0x9] sm:$0x1] %vm1088, %v1100
  %1111 = vst.msk [vmem:[#allocation2 + $0x11] sm:$0x1] %vm1088, %v1102
  %1112 = vst.msk [vmem:[#allocation2 + $0x19] sm:$0x1] %vm1088, %v1104
  %1113 = vrot.lane.b32.xlu0 %v1066, 108
  %v1114 = vpop.permute.xlu0 %1113
  %1115 = vrot.lane.b32.xlu0 %v1073, 108
  %v1116 = vpop.permute.xlu0 %1115
  %1117 = vrot.lane.b32.xlu0 %v1080, 108
  %v1118 = vpop.permute.xlu0 %1117
  %1119 = vrot.lane.b32.xlu0 %v1087, 108
  %v1120 = vpop.permute.xlu0 %1119
  %1125 = vst.msk [vmem:[#allocation2 + $0x2] sm:$0x1] %vm1088, %v1114
  %1126 = vst.msk [vmem:[#allocation2 + $0xa] sm:$0x1] %vm1088, %v1116
  %1127 = vst.msk [vmem:[#allocation2 + $0x12] sm:$0x1] %vm1088, %v1118
  %1128 = vst.msk [vmem:[#allocation2 + $0x1a] sm:$0x1] %vm1088, %v1120
  %1129 = vrot.lane.b32.xlu0 %v1066, 98
  %v1130 = vpop.permute.xlu0 %1129
  %1131 = vrot.lane.b32.xlu0 %v1073, 98
  %v1132 = vpop.permute.xlu0 %1131
  %1133 = vrot.lane.b32.xlu0 %v1080, 98
  %v1134 = vpop.permute.xlu0 %1133
  %1135 = vrot.lane.b32.xlu0 %v1087, 98
  %v1136 = vpop.permute.xlu0 %1135
  %1141 = vst.msk [vmem:[#allocation2 + $0x3] sm:$0x1] %vm1088, %v1130
  %1142 = vst.msk [vmem:[#allocation2 + $0xb] sm:$0x1] %vm1088, %v1132
  %1143 = vst.msk [vmem:[#allocation2 + $0x13] sm:$0x1] %vm1088, %v1134
  %1144 = vst.msk [vmem:[#allocation2 + $0x1b] sm:$0x1] %vm1088, %v1136
  %1145 = vrot.lane.b32.xlu0 %v1066, 88
  %v1146 = vpop.permute.xlu0 %1145
  %1147 = vrot.lane.b32.xlu0 %v1073, 88
  %v1148 = vpop.permute.xlu0 %1147
  %1149 = vrot.lane.b32.xlu0 %v1080, 88
  %v1150 = vpop.permute.xlu0 %1149
  %1151 = vrot.lane.b32.xlu0 %v1087, 88
  %v1152 = vpop.permute.xlu0 %1151
  %1157 = vst.msk [vmem:[#allocation2 + $0x4] sm:$0x1] %vm1088, %v1146
  %1158 = vst.msk [vmem:[#allocation2 + $0xc] sm:$0x1] %vm1088, %v1148
  %1159 = vst.msk [vmem:[#allocation2 + $0x14] sm:$0x1] %vm1088, %v1150
  %1160 = vst.msk [vmem:[#allocation2 + $0x1c] sm:$0x1] %vm1088, %v1152
  %v1161 = vld [vmem:[#allocation2] sm:$0x1f]
  %v1162 = vld [vmem:[#allocation2 + $0x8] sm:$0x1f]
  %s1163 = scalar_lea.vmem [#allocation2], 16
  %v1164 = vld [vmem:[%s1163] sm:$0x1f]
  %v1165 = vld [vmem:[%s1163 + $0x8] sm:$0x1f]
  %v1166 = vld [vmem:[%s4 + $0x38] sm:$0xff]
  %v1167 = vld [vmem:[%s4 + $0x40] sm:$0x3]
  %v1168 = vld [vmem:[%s4 + $0x48] sm:$0xff]
  %v1169 = vld [vmem:[%s4 + $0x50] sm:$0xff]
  %v1170 = vld [vmem:[%s4 + $0x58] sm:$0x1]
  %v1171 = vld [vmem:[%s4 + $0x60] sm:$0x1]
  %v1174 = vcombine.high %v1161, %v1161
  %v1176 = vunpack.c.l.s4 1966171168
  %v1177 = vunpack.c.0.s8 %v1176
  %v1178 = vlaneseq
  %v1179 = vshrl.u32 %v1178, 7
  %v1180 = vsub.s32 %v1177, %v1179
  %v1181 = vrot.slane %v1161, %v1180
  %v1183 = vunpack.c.l.s4 1966171168
  %v1184 = vunpack.c.0.s8 %v1183
  %v1185 = vlaneseq
  %v1186 = vshrl.u32 %v1185, 7
  %v1187 = vsub.s32 %v1184, %v1186
  %v1188 = vrot.slane %v1174, %v1187
  %v1189 = vcombine.high %v1181, %v1181
  %v1191 = vunpack.c.l.s4 1966171168
  %v1192 = vunpack.c.0.s8 %v1191
  %v1193 = vlaneseq
  %v1194 = vshrl.u32 %v1193, 7
  %v1195 = vsub.s32 %v1192, %v1194
  %v1196 = vrot.slane %v1181, %v1195
  %v1198 = vunpack.c.l.s4 1966171168
  %v1199 = vunpack.c.0.s8 %v1198
  %v1200 = vlaneseq
  %v1201 = vshrl.u32 %v1200, 7
  %v1202 = vsub.s32 %v1199, %v1201
  %v1203 = vrot.slane %v1188, %v1202
  %v1205 = vunpack.c.l.s4 1966171168
  %v1206 = vunpack.c.0.s8 %v1205
  %v1207 = vlaneseq
  %v1208 = vshrl.u32 %v1207, 7
  %v1209 = vsub.s32 %v1206, %v1208
  %v1210 = vrot.slane %v1189, %v1209
  %v1211 = vcombine.high %v1196, %v1196
  %v1212 = vcombine.high %v1210, %v1210
  %v1213 = vcombine.high %v1162, %v1162
  %v1215 = vunpack.c.l.s4 1966171168
  %v1216 = vunpack.c.0.s8 %v1215
  %v1217 = vlaneseq
  %v1218 = vshrl.u32 %v1217, 7
  %v1219 = vsub.s32 %v1216, %v1218
  %v1220 = vrot.slane %v1162, %v1219
  %v1222 = vunpack.c.l.s4 1966171168
  %v1223 = vunpack.c.0.s8 %v1222
  %v1224 = vlaneseq
  %v1225 = vshrl.u32 %v1224, 7
  %v1226 = vsub.s32 %v1223, %v1225
  %v1227 = vrot.slane %v1213, %v1226
  %v1228 = vcombine.high %v1220, %v1220
  %v1230 = vunpack.c.l.s4 1966171168
  %v1231 = vunpack.c.0.s8 %v1230
  %v1232 = vlaneseq
  %v1233 = vshrl.u32 %v1232, 7
  %v1234 = vsub.s32 %v1231, %v1233
  %v1235 = vrot.slane %v1220, %v1234
  %v1237 = vunpack.c.l.s4 1966171168
  %v1238 = vunpack.c.0.s8 %v1237
  %v1239 = vlaneseq
  %v1240 = vshrl.u32 %v1239, 7
  %v1241 = vsub.s32 %v1238, %v1240
  %v1242 = vrot.slane %v1227, %v1241
  %v1244 = vunpack.c.l.s4 1966171168
  %v1245 = vunpack.c.0.s8 %v1244
  %v1246 = vlaneseq
  %v1247 = vshrl.u32 %v1246, 7
  %v1248 = vsub.s32 %v1245, %v1247
  %v1249 = vrot.slane %v1228, %v1248
  %v1250 = vcombine.high %v1235, %v1235
  %v1251 = vcombine.high %v1249, %v1249
  %v1252 = vcombine.low %v1196, %v1210
  %v1253 = vcombine.low %v1211, %v1212
  %v1254 = vcombine.low %v1203, %v1235
  %v1255 = vcombine.low %v1249, %v1250
  %v1257 = vunpack.c.l.s4 1966171168
  %v1258 = vunpack.c.0.s8 %v1257
  %v1259 = vlaneseq
  %v1260 = vshrl.u32 %v1259, 7
  %v1261 = vsub.s32 %v1258, %v1260
  %v1262 = vrot.slane %v1252, %v1261
  %v1264 = vunpack.c.l.s4 1966171168
  %v1265 = vunpack.c.0.s8 %v1264
  %v1266 = vlaneseq
  %v1267 = vshrl.u32 %v1266, 7
  %v1268 = vsub.s32 %v1265, %v1267
  %v1269 = vrot.slane %v1253, %v1268
  %v1271 = vunpack.c.l.s4 1966171168
  %v1272 = vunpack.c.0.s8 %v1271
  %v1273 = vlaneseq
  %v1274 = vshrl.u32 %v1273, 7
  %v1275 = vsub.s32 %v1272, %v1274
  %v1276 = vrot.slane %v1254, %v1275
  %v1278 = vunpack.c.l.s4 1966171168
  %v1279 = vunpack.c.0.s8 %v1278
  %v1280 = vlaneseq
  %v1281 = vshrl.u32 %v1280, 7
  %v1282 = vsub.s32 %v1279, %v1281
  %v1283 = vrot.slane %v1255, %v1282
  %v1284 = vcombine.low %v1262, %v1269
  %v1285 = vcombine.low %v1276, %v1283
  %v1287 = vunpack.c.l.s4 1966171168
  %v1288 = vunpack.c.0.s8 %v1287
  %v1289 = vlaneseq
  %v1290 = vshrl.u32 %v1289, 7
  %v1291 = vsub.s32 %v1288, %v1290
  %v1292 = vrot.slane %v1284, %v1291
  %v1294 = vunpack.c.l.s4 1966171168
  %v1295 = vunpack.c.0.s8 %v1294
  %v1296 = vlaneseq
  %v1297 = vshrl.u32 %v1296, 7
  %v1298 = vsub.s32 %v1295, %v1297
  %v1299 = vrot.slane %v1285, %v1298
  %v1300 = vcombine.low %v1292, %v1299
  %v1301 = vcombine.low %v1251, %v1242
  %v1303 = vunpack.c.l.s4 1966171168
  %v1304 = vunpack.c.0.s8 %v1303
  %v1305 = vlaneseq
  %v1306 = vshrl.u32 %v1305, 7
  %v1307 = vsub.s32 %v1304, %v1306
  %v1308 = vrot.slane %v1301, %v1307
  %v1310 = vunpack.c.l.s4 1966171168
  %v1311 = vunpack.c.0.s8 %v1310
  %v1312 = vlaneseq
  %v1313 = vshrl.u32 %v1312, 7
  %v1314 = vsub.s32 %v1311, %v1313
  %v1315 = vrot.slane %v1308, %v1314
  %vm1316 = vcmask 80896
  %v1317 = vsel %vm1316, %v1300, 0
  %v1319 = vsel %vm1316, %v1315, 0
  %v1322 = vsel %vm135, %v1167, 0
  %1324 = vmatprep.subr.mxu0 0.0
  %1325 = vmatpush1.msra.mxu0 %v1166
  %1326 = vmatprep.subr.mxu0 0.0
  %1327 = vmatpush1.msra.mxu0 %v1322
  %1328 = vmatprep.subr.mxu0 0.0
  %1329 = vmatpush1.msra.mxu0 0.0
  %1330 = vmatprep.subr.mxu0 0.0
  %1331 = vmatpush1.msra.mxu0 0.0
  %1332 = vmatprep.subr.mxu0 0.0
  %1333 = vmatpush1.msra.mxu0 0.0
  %1334 = vmatprep.subr.mxu0 0.0
  %1335 = vmatpush1.msra.mxu0 0.0
  %1336 = vmatprep.subr.mxu0 0.0
  %1337 = vmatpush1.msra.mxu0 0.0
  %1338 = vmatprep.subr.mxu0 0.0
  %1339 = vmatpush1.msra.mxu0 0.0
  %1340 = vmatprep.subr.mxu0 0.0
  %1341 = vmatpush1.msra.mxu0 0.0
  %1342 = vmatprep.subr.mxu0 0.0
  %1343 = vmatpush1.msra.mxu0 0.0
  %1344 = vmatprep.subr.mxu0 0.0
  %1345 = vmatpush1.msra.mxu0 0.0
  %1346 = vmatprep.subr.mxu0 0.0
  %1347 = vmatpush1.msra.mxu0 0.0
  %1348 = vmatprep.subr.mxu0 0.0
  %1349 = vmatpush1.msra.mxu0 0.0
  %1350 = vmatprep.subr.mxu0 0.0
  %1351 = vmatpush1.msra.mxu0 0.0
  %1352 = vmatprep.subr.mxu0 0.0
  %1353 = vmatpush1.msra.mxu0 0.0
  %1354 = vmatprep.subr.mxu0 0.0
  %1355 = vmatpush1.msra.mxu0 0.0
  %1356 = vmatprep.subr.mxu0 0.0
  %1357 = vmatpush1.msra.mxu0 0.0
  %1358 = vmatprep.subr.mxu0 0.0
  %1359 = vmatpush1.msra.mxu0 0.0
  %1360 = vmatprep.subr.mxu0 0.0
  %1361 = vmatpush1.msra.mxu0 0.0
  %1362 = vmatprep.subr.mxu0 0.0
  %1363 = vmatpush1.msra.mxu0 0.0
  %1364 = vmatprep.subr.mxu0 0.0
  %1365 = vmatpush1.msra.mxu0 0.0
  %1366 = vmatprep.subr.mxu0 0.0
  %1367 = vmatpush1.msra.mxu0 0.0
  %1368 = vmatprep.subr.mxu0 0.0
  %1369 = vmatpush1.msra.mxu0 0.0
  %1370 = vmatprep.subr.mxu0 0.0
  %1371 = vmatpush1.msra.mxu0 0.0
  %1372 = vmatprep.subr.mxu0 0.0
  %1373 = vmatpush1.msra.mxu0 0.0
  %1374 = vmatprep.subr.mxu0 0.0
  %1375 = vmatpush1.msra.mxu0 0.0
  %1376 = vmatprep.subr.mxu0 0.0
  %1377 = vmatpush1.msra.mxu0 0.0
  %1378 = vmatprep.subr.mxu0 0.0
  %1379 = vmatpush1.msra.mxu0 0.0
  %1380 = vmatprep.subr.mxu0 0.0
  %1381 = vmatpush1.msra.mxu0 0.0
  %1382 = vmatprep.subr.mxu0 0.0
  %1383 = vmatpush1.msra.mxu0 0.0
  %1384 = vmatprep.subr.mxu0 0.0
  %1385 = vmatpush1.msra.mxu0 0.0
  %1386 = vmatprep.subr.mxu0 0.0
  %1387 = vmatpush1.msra.mxu0 0.0
  %1388 = vmatprep.mubr.f32.mxu0 0.0
  %1389 = vmatmul.mubr.f32.gmra.mrb[0].mxu0 %v1317
  %v1390 = vpop.f32.mrb[0].mxu0
  %v1391 = vadd.f32 0.0, %v1390
  %v1392 = vpop.f32.mrb[0].mxu0
  %1393 = vmatprep.mubr.f32.mxu0 0.0
  %1394 = vmatmul.mubr.f32.gmra.mrb[0].mxu0 %v1319
  %v1395 = vpop.f32.mrb[0].mxu0
  %v1396 = vadd.f32 0.0, %v1395
  %v1397 = vpop.f32.mrb[0].mxu0
  %1398 = vdwg.mxu0
  %v1401 = vcombine.high %v1391, %v1391
  %v1403 = vunpack.c.l.s4 1966171168
  %v1404 = vunpack.c.0.s8 %v1403
  %v1405 = vlaneseq
  %v1406 = vshrl.u32 %v1405, 7
  %v1407 = vsub.s32 %v1404, %v1406
  %v1408 = vrot.slane %v1391, %v1407
  %v1410 = vunpack.c.l.s4 1966171168
  %v1411 = vunpack.c.0.s8 %v1410
  %v1412 = vlaneseq
  %v1413 = vshrl.u32 %v1412, 7
  %v1414 = vsub.s32 %v1411, %v1413
  %v1415 = vrot.slane %v1401, %v1414
  %v1416 = vcombine.high %v1408, %v1408
  %v1417 = vcombine.high %v1415, %v1415
  %v1419 = vunpack.c.l.s4 1966171168
  %v1420 = vunpack.c.0.s8 %v1419
  %v1421 = vlaneseq
  %v1422 = vshrl.u32 %v1421, 7
  %v1423 = vsub.s32 %v1420, %v1422
  %v1424 = vrot.slane %v1408, %v1423
  %v1426 = vunpack.c.l.s4 1966171168
  %v1427 = vunpack.c.0.s8 %v1426
  %v1428 = vlaneseq
  %v1429 = vshrl.u32 %v1428, 7
  %v1430 = vsub.s32 %v1427, %v1429
  %v1431 = vrot.slane %v1415, %v1430
  %v1433 = vunpack.c.l.s4 1966171168
  %v1434 = vunpack.c.0.s8 %v1433
  %v1435 = vlaneseq
  %v1436 = vshrl.u32 %v1435, 7
  %v1437 = vsub.s32 %v1434, %v1436
  %v1438 = vrot.slane %v1416, %v1437
  %v1440 = vunpack.c.l.s4 1966171168
  %v1441 = vunpack.c.0.s8 %v1440
  %v1442 = vlaneseq
  %v1443 = vshrl.u32 %v1442, 7
  %v1444 = vsub.s32 %v1441, %v1443
  %v1445 = vrot.slane %v1417, %v1444
  %v1446 = vcombine.high %v1424, %v1424
  %v1447 = vcombine.high %v1431, %v1431
  %v1448 = vcombine.high %v1438, %v1438
  %v1449 = vcombine.high %v1445, %v1445
  %v1451 = vunpack.c.l.s4 1966171168
  %v1452 = vunpack.c.0.s8 %v1451
  %v1453 = vlaneseq
  %v1454 = vshrl.u32 %v1453, 7
  %v1455 = vsub.s32 %v1452, %v1454
  %v1456 = vrot.slane %v1396, %v1455
  %v1457 = vcombine.high %v1456, %v1456
  %v1459 = vunpack.c.l.s4 1966171168
  %v1460 = vunpack.c.0.s8 %v1459
  %v1461 = vlaneseq
  %v1462 = vshrl.u32 %v1461, 7
  %v1463 = vsub.s32 %v1460, %v1462
  %v1464 = vrot.slane %v1456, %v1463
  %v1466 = vunpack.c.l.s4 1966171168
  %v1467 = vunpack.c.0.s8 %v1466
  %v1468 = vlaneseq
  %v1469 = vshrl.u32 %v1468, 7
  %v1470 = vsub.s32 %v1467, %v1469
  %v1471 = vrot.slane %v1457, %v1470
  %v1472 = vcombine.low %v1424, %v1438
  %v1473 = vcombine.low %v1446, %v1448
  %v1475 = vunpack.c.l.s4 1966171168
  %v1476 = vunpack.c.0.s8 %v1475
  %v1477 = vlaneseq
  %v1478 = vshrl.u32 %v1477, 7
  %v1479 = vsub.s32 %v1476, %v1478
  %v1480 = vrot.slane %v1472, %v1479
  %v1482 = vunpack.c.l.s4 1966171168
  %v1483 = vunpack.c.0.s8 %v1482
  %v1484 = vlaneseq
  %v1485 = vshrl.u32 %v1484, 7
  %v1486 = vsub.s32 %v1483, %v1485
  %v1487 = vrot.slane %v1473, %v1486
  %v1489 = vunpack.c.l.s4 1966171168
  %v1490 = vunpack.c.0.s8 %v1489
  %v1491 = vlaneseq
  %v1492 = vshrl.u32 %v1491, 7
  %v1493 = vsub.s32 %v1490, %v1492
  %v1494 = vrot.slane %v1431, %v1493
  %v1495 = vcombine.low %v1480, %v1487
  %v1497 = vunpack.c.l.s4 1966171168
  %v1498 = vunpack.c.0.s8 %v1497
  %v1499 = vlaneseq
  %v1500 = vshrl.u32 %v1499, 7
  %v1501 = vsub.s32 %v1498, %v1500
  %v1502 = vrot.slane %v1495, %v1501
  %v1504 = vunpack.c.l.s4 1966171168
  %v1505 = vunpack.c.0.s8 %v1504
  %v1506 = vlaneseq
  %v1507 = vshrl.u32 %v1506, 7
  %v1508 = vsub.s32 %v1505, %v1507
  %v1509 = vrot.slane %v1494, %v1508
  %v1510 = vcombine.low %v1502, %v1509
  %v1511 = vsel %vm1316, %v1510, 0
  %v1514 = vsel %vm1316, %v1164, 0
  %1516 = vmatprep.subr.mxu0 0.0
  %1517 = vmatpush1.xpose.msra.mxu0 %v1514
  %1518 = vmatprep.subr.mxu0 0.0
  %1519 = vmatpush1.xpose.msra.mxu0 0.0
  %1520 = vmatprep.subr.mxu0 0.0
  %1521 = vmatpush1.xpose.msra.mxu0 0.0
  %1522 = vmatprep.subr.mxu0 0.0
  %1523 = vmatpush1.xpose.msra.mxu0 0.0
  %1524 = vmatprep.subr.mxu0 0.0
  %1525 = vmatpush1.xpose.msra.mxu0 0.0
  %1526 = vmatprep.subr.mxu0 0.0
  %1527 = vmatpush1.xpose.msra.mxu0 0.0
  %1528 = vmatprep.subr.mxu0 0.0
  %1529 = vmatpush1.xpose.msra.mxu0 0.0
  %1530 = vmatprep.subr.mxu0 0.0
  %1531 = vmatpush1.xpose.msra.mxu0 0.0
  %1532 = vmatprep.subr.mxu0 0.0
  %1533 = vmatpush1.xpose.msra.mxu0 0.0
  %1534 = vmatprep.subr.mxu0 0.0
  %1535 = vmatpush1.xpose.msra.mxu0 0.0
  %1536 = vmatprep.subr.mxu0 0.0
  %1537 = vmatpush1.xpose.msra.mxu0 0.0
  %1538 = vmatprep.subr.mxu0 0.0
  %1539 = vmatpush1.xpose.msra.mxu0 0.0
  %1540 = vmatprep.subr.mxu0 0.0
  %1541 = vmatpush1.xpose.msra.mxu0 0.0
  %1542 = vmatprep.subr.mxu0 0.0
  %1543 = vmatpush1.xpose.msra.mxu0 0.0
  %1544 = vmatprep.subr.mxu0 0.0
  %1545 = vmatpush1.xpose.msra.mxu0 0.0
  %1546 = vmatprep.subr.mxu0 0.0
  %1547 = vmatpush1.xpose.msra.mxu0 0.0
  %1548 = vmatprep.subr.mxu0 0.0
  %1549 = vmatpush1.xpose.msra.mxu0 0.0
  %1550 = vmatprep.subr.mxu0 0.0
  %1551 = vmatpush1.xpose.msra.mxu0 0.0
  %1552 = vmatprep.subr.mxu0 0.0
  %1553 = vmatpush1.xpose.msra.mxu0 0.0
  %1554 = vmatprep.subr.mxu0 0.0
  %1555 = vmatpush1.xpose.msra.mxu0 0.0
  %1556 = vmatprep.subr.mxu0 0.0
  %1557 = vmatpush1.xpose.msra.mxu0 0.0
  %1558 = vmatprep.subr.mxu0 0.0
  %1559 = vmatpush1.xpose.msra.mxu0 0.0
  %1560 = vmatprep.subr.mxu0 0.0
  %1561 = vmatpush1.xpose.msra.mxu0 0.0
  %1562 = vmatprep.subr.mxu0 0.0
  %1563 = vmatpush1.xpose.msra.mxu0 0.0
  %1564 = vmatprep.subr.mxu0 0.0
  %1565 = vmatpush1.xpose.msra.mxu0 0.0
  %1566 = vmatprep.subr.mxu0 0.0
  %1567 = vmatpush1.xpose.msra.mxu0 0.0
  %1568 = vmatprep.subr.mxu0 0.0
  %1569 = vmatpush1.xpose.msra.mxu0 0.0
  %1570 = vmatprep.subr.mxu0 0.0
  %1571 = vmatpush1.xpose.msra.mxu0 0.0
  %1572 = vmatprep.subr.mxu0 0.0
  %1573 = vmatpush1.xpose.msra.mxu0 0.0
  %1574 = vmatprep.subr.mxu0 0.0
  %1575 = vmatpush1.xpose.msra.mxu0 0.0
  %1576 = vmatprep.subr.mxu0 0.0
  %1577 = vmatpush1.xpose.msra.mxu0 0.0
  %1578 = vmatprep.subr.mxu0 0.0
  %1579 = vmatpush1.xpose.msra.mxu0 0.0
  %1580 = vmatprep.mubr.f32.mxu0 0.0
  %1581 = vmatmul.mubr.f32.gmra.mrb[0].mxu0 %v1511
  %v1582 = vpop.f32.mrb[0].mxu0
  %v1583 = vadd.f32 0.0, %v1582
  %v1584 = vpop.f32.mrb[0].mxu0
  %1585 = vdwg.mxu0
  %v1586 = vcombine.low %v1445, %v1447
  %v1587 = vcombine.low %v1449, %v1464
  %v1589 = vunpack.c.l.s4 1966171168
  %v1590 = vunpack.c.0.s8 %v1589
  %v1591 = vlaneseq
  %v1592 = vshrl.u32 %v1591, 7
  %v1593 = vsub.s32 %v1590, %v1592
  %v1594 = vrot.slane %v1586, %v1593
  %v1596 = vunpack.c.l.s4 1966171168
  %v1597 = vunpack.c.0.s8 %v1596
  %v1598 = vlaneseq
  %v1599 = vshrl.u32 %v1598, 7
  %v1600 = vsub.s32 %v1597, %v1599
  %v1601 = vrot.slane %v1587, %v1600
  %v1603 = vunpack.c.l.s4 1966171168
  %v1604 = vunpack.c.0.s8 %v1603
  %v1605 = vlaneseq
  %v1606 = vshrl.u32 %v1605, 7
  %v1607 = vsub.s32 %v1604, %v1606
  %v1608 = vrot.slane %v1471, %v1607
  %v1609 = vcombine.low %v1594, %v1601
  %v1611 = vunpack.c.l.s4 1966171168
  %v1612 = vunpack.c.0.s8 %v1611
  %v1613 = vlaneseq
  %v1614 = vshrl.u32 %v1613, 7
  %v1615 = vsub.s32 %v1612, %v1614
  %v1616 = vrot.slane %v1609, %v1615
  %v1618 = vunpack.c.l.s4 1966171168
  %v1619 = vunpack.c.0.s8 %v1618
  %v1620 = vlaneseq
  %v1621 = vshrl.u32 %v1620, 7
  %v1622 = vsub.s32 %v1619, %v1621
  %v1623 = vrot.slane %v1608, %v1622
  %v1624 = vcombine.low %v1616, %v1623
  %v1625 = vsel %vm1316, %v1624, 0
  %v1628 = vsel %vm1316, %v1165, 0
  %1630 = vmatprep.subr.mxu0 0.0
  %1631 = vmatpush1.xpose.msra.mxu0 %v1628
  %1632 = vmatprep.subr.mxu0 0.0
  %1633 = vmatpush1.xpose.msra.mxu0 0.0
  %1634 = vmatprep.subr.mxu0 0.0
  %1635 = vmatpush1.xpose.msra.mxu0 0.0
  %1636 = vmatprep.subr.mxu0 0.0
  %1637 = vmatpush1.xpose.msra.mxu0 0.0
  %1638 = vmatprep.subr.mxu0 0.0
  %1639 = vmatpush1.xpose.msra.mxu0 0.0
  %1640 = vmatprep.subr.mxu0 0.0
  %1641 = vmatpush1.xpose.msra.mxu0 0.0
  %1642 = vmatprep.subr.mxu0 0.0
  %1643 = vmatpush1.xpose.msra.mxu0 0.0
  %1644 = vmatprep.subr.mxu0 0.0
  %1645 = vmatpush1.xpose.msra.mxu0 0.0
  %1646 = vmatprep.subr.mxu0 0.0
  %1647 = vmatpush1.xpose.msra.mxu0 0.0
  %1648 = vmatprep.subr.mxu0 0.0
  %1649 = vmatpush1.xpose.msra.mxu0 0.0
  %1650 = vmatprep.subr.mxu0 0.0
  %1651 = vmatpush1.xpose.msra.mxu0 0.0
  %1652 = vmatprep.subr.mxu0 0.0
  %1653 = vmatpush1.xpose.msra.mxu0 0.0
  %1654 = vmatprep.subr.mxu0 0.0
  %1655 = vmatpush1.xpose.msra.mxu0 0.0
  %1656 = vmatprep.subr.mxu0 0.0
  %1657 = vmatpush1.xpose.msra.mxu0 0.0
  %1658 = vmatprep.subr.mxu0 0.0
  %1659 = vmatpush1.xpose.msra.mxu0 0.0
  %1660 = vmatprep.subr.mxu0 0.0
  %1661 = vmatpush1.xpose.msra.mxu0 0.0
  %1662 = vmatprep.subr.mxu0 0.0
  %1663 = vmatpush1.xpose.msra.mxu0 0.0
  %1664 = vmatprep.subr.mxu0 0.0
  %1665 = vmatpush1.xpose.msra.mxu0 0.0
  %1666 = vmatprep.subr.mxu0 0.0
  %1667 = vmatpush1.xpose.msra.mxu0 0.0
  %1668 = vmatprep.subr.mxu0 0.0
  %1669 = vmatpush1.xpose.msra.mxu0 0.0
  %1670 = vmatprep.subr.mxu0 0.0
  %1671 = vmatpush1.xpose.msra.mxu0 0.0
  %1672 = vmatprep.subr.mxu0 0.0
  %1673 = vmatpush1.xpose.msra.mxu0 0.0
  %1674 = vmatprep.subr.mxu0 0.0
  %1675 = vmatpush1.xpose.msra.mxu0 0.0
  %1676 = vmatprep.subr.mxu0 0.0
  %1677 = vmatpush1.xpose.msra.mxu0 0.0
  %1678 = vmatprep.subr.mxu0 0.0
  %1679 = vmatpush1.xpose.msra.mxu0 0.0
  %1680 = vmatprep.subr.mxu0 0.0
  %1681 = vmatpush1.xpose.msra.mxu0 0.0
  %1682 = vmatprep.subr.mxu0 0.0
  %1683 = vmatpush1.xpose.msra.mxu0 0.0
  %1684 = vmatprep.subr.mxu0 0.0
  %1685 = vmatpush1.xpose.msra.mxu0 0.0
  %1686 = vmatprep.subr.mxu0 0.0
  %1687 = vmatpush1.xpose.msra.mxu0 0.0
  %1688 = vmatprep.subr.mxu0 0.0
  %1689 = vmatpush1.xpose.msra.mxu0 0.0
  %1690 = vmatprep.subr.mxu0 0.0
  %1691 = vmatpush1.xpose.msra.mxu0 0.0
  %1692 = vmatprep.subr.mxu0 0.0
  %1693 = vmatpush1.xpose.msra.mxu0 0.0
  %1694 = vmatprep.mubr.f32.mxu0 0.0
  %1695 = vmatmul.mubr.f32.gmra.mrb[0].mxu0 %v1625
  %v1696 = vpop.f32.mrb[0].mxu0
  %v1697 = vadd.f32 0.0, %v1696
  %v1698 = vpop.f32.mrb[0].mxu0
  %1699 = vdwg.mxu0
  %v1700 = vmax.f32 %v1583, 0.0
  %v1701 = vmax.f32 %v1697, 0.0
  %v1703 = vsel %vm1316, %v1168, 0
  %1705 = vmatprep.subr.mxu0 0.0
  %1706 = vmatpush1.xpose.msra.mxu0 %v1703
  %1707 = vmatprep.subr.mxu0 0.0
  %1708 = vmatpush1.xpose.msra.mxu0 0.0
  %1709 = vmatprep.subr.mxu0 0.0
  %1710 = vmatpush1.xpose.msra.mxu0 0.0
  %1711 = vmatprep.subr.mxu0 0.0
  %1712 = vmatpush1.xpose.msra.mxu0 0.0
  %1713 = vmatprep.subr.mxu0 0.0
  %1714 = vmatpush1.xpose.msra.mxu0 0.0
  %1715 = vmatprep.subr.mxu0 0.0
  %1716 = vmatpush1.xpose.msra.mxu0 0.0
  %1717 = vmatprep.subr.mxu0 0.0
  %1718 = vmatpush1.xpose.msra.mxu0 0.0
  %1719 = vmatprep.subr.mxu0 0.0
  %1720 = vmatpush1.xpose.msra.mxu0 0.0
  %1721 = vmatprep.subr.mxu0 0.0
  %1722 = vmatpush1.xpose.msra.mxu0 0.0
  %1723 = vmatprep.subr.mxu0 0.0
  %1724 = vmatpush1.xpose.msra.mxu0 0.0
  %1725 = vmatprep.subr.mxu0 0.0
  %1726 = vmatpush1.xpose.msra.mxu0 0.0
  %1727 = vmatprep.subr.mxu0 0.0
  %1728 = vmatpush1.xpose.msra.mxu0 0.0
  %1729 = vmatprep.subr.mxu0 0.0
  %1730 = vmatpush1.xpose.msra.mxu0 0.0
  %1731 = vmatprep.subr.mxu0 0.0
  %1732 = vmatpush1.xpose.msra.mxu0 0.0
  %1733 = vmatprep.subr.mxu0 0.0
  %1734 = vmatpush1.xpose.msra.mxu0 0.0
  %1735 = vmatprep.subr.mxu0 0.0
  %1736 = vmatpush1.xpose.msra.mxu0 0.0
  %1737 = vmatprep.subr.mxu0 0.0
  %1738 = vmatpush1.xpose.msra.mxu0 0.0
  %1739 = vmatprep.subr.mxu0 0.0
  %1740 = vmatpush1.xpose.msra.mxu0 0.0
  %1741 = vmatprep.subr.mxu0 0.0
  %1742 = vmatpush1.xpose.msra.mxu0 0.0
  %1743 = vmatprep.subr.mxu0 0.0
  %1744 = vmatpush1.xpose.msra.mxu0 0.0
  %1745 = vmatprep.subr.mxu0 0.0
  %1746 = vmatpush1.xpose.msra.mxu0 0.0
  %1747 = vmatprep.subr.mxu0 0.0
  %1748 = vmatpush1.xpose.msra.mxu0 0.0
  %1749 = vmatprep.subr.mxu0 0.0
  %1750 = vmatpush1.xpose.msra.mxu0 0.0
  %1751 = vmatprep.subr.mxu0 0.0
  %1752 = vmatpush1.xpose.msra.mxu0 0.0
  %1753 = vmatprep.subr.mxu0 0.0
  %1754 = vmatpush1.xpose.msra.mxu0 0.0
  %1755 = vmatprep.subr.mxu0 0.0
  %1756 = vmatpush1.xpose.msra.mxu0 0.0
  %1757 = vmatprep.subr.mxu0 0.0
  %1758 = vmatpush1.xpose.msra.mxu0 0.0
  %1759 = vmatprep.subr.mxu0 0.0
  %1760 = vmatpush1.xpose.msra.mxu0 0.0
  %1761 = vmatprep.subr.mxu0 0.0
  %1762 = vmatpush1.xpose.msra.mxu0 0.0
  %1763 = vmatprep.subr.mxu0 0.0
  %1764 = vmatpush1.xpose.msra.mxu0 0.0
  %1765 = vmatprep.subr.mxu0 0.0
  %1766 = vmatpush1.xpose.msra.mxu0 0.0
  %1767 = vmatprep.subr.mxu0 0.0
  %1768 = vmatpush1.xpose.msra.mxu0 0.0
  %1769 = vmatprep.mubr.f32.mxu0 0.0
  %1770 = vmatmul.mubr.f32.gmra.mrb[0].mxu0 %v1317
  %v1771 = vpop.f32.mrb[0].mxu0
  %v1772 = vadd.f32 0.0, %v1771
  %v1773 = vpop.f32.mrb[0].mxu0
  %1774 = vmatprep.mubr.f32.mxu0 0.0
  %1775 = vmatmul.mubr.f32.gmra.mrb[0].mxu0 %v1319
  %v1776 = vpop.f32.mrb[0].mxu0
  %v1777 = vadd.f32 0.0, %v1776
  %v1778 = vpop.f32.mrb[0].mxu0
  %1779 = vdwg.mxu0
  %v1782 = vcombine.high %v1772, %v1772
  %v1784 = vunpack.c.l.s4 1966171168
  %v1785 = vunpack.c.0.s8 %v1784
  %v1786 = vlaneseq
  %v1787 = vshrl.u32 %v1786, 7
  %v1788 = vsub.s32 %v1785, %v1787
  %v1789 = vrot.slane %v1772, %v1788
  %v1791 = vunpack.c.l.s4 1966171168
  %v1792 = vunpack.c.0.s8 %v1791
  %v1793 = vlaneseq
  %v1794 = vshrl.u32 %v1793, 7
  %v1795 = vsub.s32 %v1792, %v1794
  %v1796 = vrot.slane %v1782, %v1795
  %v1797 = vcombine.high %v1789, %v1789
  %v1798 = vcombine.high %v1796, %v1796
  %v1800 = vunpack.c.l.s4 1966171168
  %v1801 = vunpack.c.0.s8 %v1800
  %v1802 = vlaneseq
  %v1803 = vshrl.u32 %v1802, 7
  %v1804 = vsub.s32 %v1801, %v1803
  %v1805 = vrot.slane %v1789, %v1804
  %v1807 = vunpack.c.l.s4 1966171168
  %v1808 = vunpack.c.0.s8 %v1807
  %v1809 = vlaneseq
  %v1810 = vshrl.u32 %v1809, 7
  %v1811 = vsub.s32 %v1808, %v1810
  %v1812 = vrot.slane %v1796, %v1811
  %v1814 = vunpack.c.l.s4 1966171168
  %v1815 = vunpack.c.0.s8 %v1814
  %v1816 = vlaneseq
  %v1817 = vshrl.u32 %v1816, 7
  %v1818 = vsub.s32 %v1815, %v1817
  %v1819 = vrot.slane %v1797, %v1818
  %v1821 = vunpack.c.l.s4 1966171168
  %v1822 = vunpack.c.0.s8 %v1821
  %v1823 = vlaneseq
  %v1824 = vshrl.u32 %v1823, 7
  %v1825 = vsub.s32 %v1822, %v1824
  %v1826 = vrot.slane %v1798, %v1825
  %v1827 = vcombine.high %v1805, %v1805
  %v1828 = vcombine.high %v1812, %v1812
  %v1829 = vcombine.high %v1819, %v1819
  %v1830 = vcombine.high %v1826, %v1826
  %v1832 = vunpack.c.l.s4 1966171168
  %v1833 = vunpack.c.0.s8 %v1832
  %v1834 = vlaneseq
  %v1835 = vshrl.u32 %v1834, 7
  %v1836 = vsub.s32 %v1833, %v1835
  %v1837 = vrot.slane %v1777, %v1836
  %v1838 = vcombine.high %v1837, %v1837
  %v1840 = vunpack.c.l.s4 1966171168
  %v1841 = vunpack.c.0.s8 %v1840
  %v1842 = vlaneseq
  %v1843 = vshrl.u32 %v1842, 7
  %v1844 = vsub.s32 %v1841, %v1843
  %v1845 = vrot.slane %v1837, %v1844
  %v1847 = vunpack.c.l.s4 1966171168
  %v1848 = vunpack.c.0.s8 %v1847
  %v1849 = vlaneseq
  %v1850 = vshrl.u32 %v1849, 7
  %v1851 = vsub.s32 %v1848, %v1850
  %v1852 = vrot.slane %v1838, %v1851
  %v1863 = vcombine.high %v1164, %v1164
  %v1865 = vunpack.c.l.s4 1966171168
  %v1866 = vunpack.c.0.s8 %v1865
  %v1867 = vlaneseq
  %v1868 = vshrl.u32 %v1867, 7
  %v1869 = vsub.s32 %v1866, %v1868
  %v1870 = vrot.slane %v1164, %v1869
  %v1872 = vunpack.c.l.s4 1966171168
  %v1873 = vunpack.c.0.s8 %v1872
  %v1874 = vlaneseq
  %v1875 = vshrl.u32 %v1874, 7
  %v1876 = vsub.s32 %v1873, %v1875
  %v1877 = vrot.slane %v1863, %v1876
  %v1878 = vcombine.high %v1870, %v1870
  %v1880 = vunpack.c.l.s4 1966171168
  %v1881 = vunpack.c.0.s8 %v1880
  %v1882 = vlaneseq
  %v1883 = vshrl.u32 %v1882, 7
  %v1884 = vsub.s32 %v1881, %v1883
  %v1885 = vrot.slane %v1870, %v1884
  %v1887 = vunpack.c.l.s4 1966171168
  %v1888 = vunpack.c.0.s8 %v1887
  %v1889 = vlaneseq
  %v1890 = vshrl.u32 %v1889, 7
  %v1891 = vsub.s32 %v1888, %v1890
  %v1892 = vrot.slane %v1877, %v1891
  %v1894 = vunpack.c.l.s4 1966171168
  %v1895 = vunpack.c.0.s8 %v1894
  %v1896 = vlaneseq
  %v1897 = vshrl.u32 %v1896, 7
  %v1898 = vsub.s32 %v1895, %v1897
  %v1899 = vrot.slane %v1878, %v1898
  %v1900 = vcombine.high %v1885, %v1885
  %v1901 = vcombine.high %v1899, %v1899
  %v1902 = vcombine.high %v1165, %v1165
  %v1904 = vunpack.c.l.s4 1966171168
  %v1905 = vunpack.c.0.s8 %v1904
  %v1906 = vlaneseq
  %v1907 = vshrl.u32 %v1906, 7
  %v1908 = vsub.s32 %v1905, %v1907
  %v1909 = vrot.slane %v1165, %v1908
  %v1911 = vunpack.c.l.s4 1966171168
  %v1912 = vunpack.c.0.s8 %v1911
  %v1913 = vlaneseq
  %v1914 = vshrl.u32 %v1913, 7
  %v1915 = vsub.s32 %v1912, %v1914
  %v1916 = vrot.slane %v1902, %v1915
  %v1917 = vcombine.high %v1909, %v1909
  %v1919 = vunpack.c.l.s4 1966171168
  %v1920 = vunpack.c.0.s8 %v1919
  %v1921 = vlaneseq
  %v1922 = vshrl.u32 %v1921, 7
  %v1923 = vsub.s32 %v1920, %v1922
  %v1924 = vrot.slane %v1909, %v1923
  %v1926 = vunpack.c.l.s4 1966171168
  %v1927 = vunpack.c.0.s8 %v1926
  %v1928 = vlaneseq
  %v1929 = vshrl.u32 %v1928, 7
  %v1930 = vsub.s32 %v1927, %v1929
  %v1931 = vrot.slane %v1916, %v1930
  %v1933 = vunpack.c.l.s4 1966171168
  %v1934 = vunpack.c.0.s8 %v1933
  %v1935 = vlaneseq
  %v1936 = vshrl.u32 %v1935, 7
  %v1937 = vsub.s32 %v1934, %v1936
  %v1938 = vrot.slane %v1917, %v1937
  %v1939 = vcombine.high %v1924, %v1924
  %v1940 = vcombine.high %v1938, %v1938
  %v1941 = vcombine.low %v1885, %v1899
  %v1942 = vcombine.low %v1900, %v1901
  %v1943 = vcombine.low %v1892, %v1924
  %v1944 = vcombine.low %v1938, %v1939
  %v1946 = vunpack.c.l.s4 1966171168
  %v1947 = vunpack.c.0.s8 %v1946
  %v1948 = vlaneseq
  %v1949 = vshrl.u32 %v1948, 7
  %v1950 = vsub.s32 %v1947, %v1949
  %v1951 = vrot.slane %v1941, %v1950
  %v1953 = vunpack.c.l.s4 1966171168
  %v1954 = vunpack.c.0.s8 %v1953
  %v1955 = vlaneseq
  %v1956 = vshrl.u32 %v1955, 7
  %v1957 = vsub.s32 %v1954, %v1956
  %v1958 = vrot.slane %v1942, %v1957
  %v1960 = vunpack.c.l.s4 1966171168
  %v1961 = vunpack.c.0.s8 %v1960
  %v1962 = vlaneseq
  %v1963 = vshrl.u32 %v1962, 7
  %v1964 = vsub.s32 %v1961, %v1963
  %v1965 = vrot.slane %v1943, %v1964
  %v1967 = vunpack.c.l.s4 1966171168
  %v1968 = vunpack.c.0.s8 %v1967
  %v1969 = vlaneseq
  %v1970 = vshrl.u32 %v1969, 7
  %v1971 = vsub.s32 %v1968, %v1970
  %v1972 = vrot.slane %v1944, %v1971
  %v1973 = vcombine.low %v1951, %v1958
  %v1974 = vcombine.low %v1965, %v1972
  %v1976 = vunpack.c.l.s4 1966171168
  %v1977 = vunpack.c.0.s8 %v1976
  %v1978 = vlaneseq
  %v1979 = vshrl.u32 %v1978, 7
  %v1980 = vsub.s32 %v1977, %v1979
  %v1981 = vrot.slane %v1973, %v1980
  %v1983 = vunpack.c.l.s4 1966171168
  %v1984 = vunpack.c.0.s8 %v1983
  %v1985 = vlaneseq
  %v1986 = vshrl.u32 %v1985, 7
  %v1987 = vsub.s32 %v1984, %v1986
  %v1988 = vrot.slane %v1974, %v1987
  %v1989 = vcombine.low %v1981, %v1988
  %v1990 = vcombine.low %v1940, %v1931
  %v1992 = vunpack.c.l.s4 1966171168
  %v1993 = vunpack.c.0.s8 %v1992
  %v1994 = vlaneseq
  %v1995 = vshrl.u32 %v1994, 7
  %v1996 = vsub.s32 %v1993, %v1995
  %v1997 = vrot.slane %v1990, %v1996
  %v1999 = vunpack.c.l.s4 1966171168
  %v2000 = vunpack.c.0.s8 %v1999
  %v2001 = vlaneseq
  %v2002 = vshrl.u32 %v2001, 7
  %v2003 = vsub.s32 %v2000, %v2002
  %v2004 = vrot.slane %v1997, %v2003
  %v2005 = vsel %vm1316, %v1989, 0
  %v2007 = vsel %vm1316, %v2004, 0
  %v2010 = vsel %vm1316, %v1169, 0
  %2012 = vmatprep.subr.mxu0 0.0
  %2013 = vmatpush1.xpose.msra.mxu0 %v2010
  %2014 = vmatprep.subr.mxu0 0.0
  %2015 = vmatpush1.xpose.msra.mxu0 0.0
  %2016 = vmatprep.subr.mxu0 0.0
  %2017 = vmatpush1.xpose.msra.mxu0 0.0
  %2018 = vmatprep.subr.mxu0 0.0
  %2019 = vmatpush1.xpose.msra.mxu0 0.0
  %2020 = vmatprep.subr.mxu0 0.0
  %2021 = vmatpush1.xpose.msra.mxu0 0.0
  %2022 = vmatprep.subr.mxu0 0.0
  %2023 = vmatpush1.xpose.msra.mxu0 0.0
  %2024 = vmatprep.subr.mxu0 0.0
  %2025 = vmatpush1.xpose.msra.mxu0 0.0
  %2026 = vmatprep.subr.mxu0 0.0
  %2027 = vmatpush1.xpose.msra.mxu0 0.0
  %2028 = vmatprep.subr.mxu0 0.0
  %2029 = vmatpush1.xpose.msra.mxu0 0.0
  %2030 = vmatprep.subr.mxu0 0.0
  %2031 = vmatpush1.xpose.msra.mxu0 0.0
  %2032 = vmatprep.subr.mxu0 0.0
  %2033 = vmatpush1.xpose.msra.mxu0 0.0
  %2034 = vmatprep.subr.mxu0 0.0
  %2035 = vmatpush1.xpose.msra.mxu0 0.0
  %2036 = vmatprep.subr.mxu0 0.0
  %2037 = vmatpush1.xpose.msra.mxu0 0.0
  %2038 = vmatprep.subr.mxu0 0.0
  %2039 = vmatpush1.xpose.msra.mxu0 0.0
  %2040 = vmatprep.subr.mxu0 0.0
  %2041 = vmatpush1.xpose.msra.mxu0 0.0
  %2042 = vmatprep.subr.mxu0 0.0
  %2043 = vmatpush1.xpose.msra.mxu0 0.0
  %2044 = vmatprep.subr.mxu0 0.0
  %2045 = vmatpush1.xpose.msra.mxu0 0.0
  %2046 = vmatprep.subr.mxu0 0.0
  %2047 = vmatpush1.xpose.msra.mxu0 0.0
  %2048 = vmatprep.subr.mxu0 0.0
  %2049 = vmatpush1.xpose.msra.mxu0 0.0
  %2050 = vmatprep.subr.mxu0 0.0
  %2051 = vmatpush1.xpose.msra.mxu0 0.0
  %2052 = vmatprep.subr.mxu0 0.0
  %2053 = vmatpush1.xpose.msra.mxu0 0.0
  %2054 = vmatprep.subr.mxu0 0.0
  %2055 = vmatpush1.xpose.msra.mxu0 0.0
  %2056 = vmatprep.subr.mxu0 0.0
  %2057 = vmatpush1.xpose.msra.mxu0 0.0
  %2058 = vmatprep.subr.mxu0 0.0
  %2059 = vmatpush1.xpose.msra.mxu0 0.0
  %2060 = vmatprep.subr.mxu0 0.0
  %2061 = vmatpush1.xpose.msra.mxu0 0.0
  %2062 = vmatprep.subr.mxu0 0.0
  %2063 = vmatpush1.xpose.msra.mxu0 0.0
  %2064 = vmatprep.subr.mxu0 0.0
  %2065 = vmatpush1.xpose.msra.mxu0 0.0
  %2066 = vmatprep.subr.mxu0 0.0
  %2067 = vmatpush1.xpose.msra.mxu0 0.0
  %2068 = vmatprep.subr.mxu0 0.0
  %2069 = vmatpush1.xpose.msra.mxu0 0.0
  %2070 = vmatprep.subr.mxu0 0.0
  %2071 = vmatpush1.xpose.msra.mxu0 0.0
  %2072 = vmatprep.subr.mxu0 0.0
  %2073 = vmatpush1.xpose.msra.mxu0 0.0
  %2074 = vmatprep.subr.mxu0 0.0
  %2075 = vmatpush1.xpose.msra.mxu0 0.0
  %2076 = vmatprep.mubr.f32.mxu0 0.0
  %2077 = vmatmul.mubr.f32.gmra.mrb[0].mxu0 %v2005
  %v2078 = vpop.f32.mrb[0].mxu0
  %v2079 = vadd.f32 0.0, %v2078
  %v2080 = vpop.f32.mrb[0].mxu0
  %2081 = vmatprep.mubr.f32.mxu0 0.0
  %2082 = vmatmul.mubr.f32.gmra.mrb[0].mxu0 %v2007
  %v2083 = vpop.f32.mrb[0].mxu0
  %v2084 = vadd.f32 0.0, %v2083
  %v2085 = vpop.f32.mrb[0].mxu0
  %2086 = vdwg.mxu0
  %v2089 = vcombine.high %v2079, %v2079
  %v2091 = vunpack.c.l.s4 1966171168
  %v2092 = vunpack.c.0.s8 %v2091
  %v2093 = vlaneseq
  %v2094 = vshrl.u32 %v2093, 7
  %v2095 = vsub.s32 %v2092, %v2094
  %v2096 = vrot.slane %v2079, %v2095
  %v2098 = vunpack.c.l.s4 1966171168
  %v2099 = vunpack.c.0.s8 %v2098
  %v2100 = vlaneseq
  %v2101 = vshrl.u32 %v2100, 7
  %v2102 = vsub.s32 %v2099, %v2101
  %v2103 = vrot.slane %v2089, %v2102
  %v2104 = vcombine.high %v2096, %v2096
  %v2105 = vcombine.high %v2103, %v2103
  %v2107 = vunpack.c.l.s4 1966171168
  %v2108 = vunpack.c.0.s8 %v2107
  %v2109 = vlaneseq
  %v2110 = vshrl.u32 %v2109, 7
  %v2111 = vsub.s32 %v2108, %v2110
  %v2112 = vrot.slane %v2096, %v2111
  %v2114 = vunpack.c.l.s4 1966171168
  %v2115 = vunpack.c.0.s8 %v2114
  %v2116 = vlaneseq
  %v2117 = vshrl.u32 %v2116, 7
  %v2118 = vsub.s32 %v2115, %v2117
  %v2119 = vrot.slane %v2103, %v2118
  %v2121 = vunpack.c.l.s4 1966171168
  %v2122 = vunpack.c.0.s8 %v2121
  %v2123 = vlaneseq
  %v2124 = vshrl.u32 %v2123, 7
  %v2125 = vsub.s32 %v2122, %v2124
  %v2126 = vrot.slane %v2104, %v2125
  %v2128 = vunpack.c.l.s4 1966171168
  %v2129 = vunpack.c.0.s8 %v2128
  %v2130 = vlaneseq
  %v2131 = vshrl.u32 %v2130, 7
  %v2132 = vsub.s32 %v2129, %v2131
  %v2133 = vrot.slane %v2105, %v2132
  %v2134 = vcombine.high %v2112, %v2112
  %v2135 = vcombine.high %v2119, %v2119
  %v2136 = vcombine.high %v2126, %v2126
  %v2137 = vcombine.high %v2133, %v2133
  %v2139 = vunpack.c.l.s4 1966171168
  %v2140 = vunpack.c.0.s8 %v2139
  %v2141 = vlaneseq
  %v2142 = vshrl.u32 %v2141, 7
  %v2143 = vsub.s32 %v2140, %v2142
  %v2144 = vrot.slane %v2084, %v2143
  %v2145 = vcombine.high %v2144, %v2144
  %v2147 = vunpack.c.l.s4 1966171168
  %v2148 = vunpack.c.0.s8 %v2147
  %v2149 = vlaneseq
  %v2150 = vshrl.u32 %v2149, 7
  %v2151 = vsub.s32 %v2148, %v2150
  %v2152 = vrot.slane %v2144, %v2151
  %v2154 = vunpack.c.l.s4 1966171168
  %v2155 = vunpack.c.0.s8 %v2154
  %v2156 = vlaneseq
  %v2157 = vshrl.u32 %v2156, 7
  %v2158 = vsub.s32 %v2155, %v2157
  %v2159 = vrot.slane %v2145, %v2158
  %v2170 = vcombine.low %v2112, %v2126
  %v2171 = vcombine.low %v2134, %v2136
  %v2173 = vunpack.c.l.s4 1966171168
  %v2174 = vunpack.c.0.s8 %v2173
  %v2175 = vlaneseq
  %v2176 = vshrl.u32 %v2175, 7
  %v2177 = vsub.s32 %v2174, %v2176
  %v2178 = vrot.slane %v2170, %v2177
  %v2180 = vunpack.c.l.s4 1966171168
  %v2181 = vunpack.c.0.s8 %v2180
  %v2182 = vlaneseq
  %v2183 = vshrl.u32 %v2182, 7
  %v2184 = vsub.s32 %v2181, %v2183
  %v2185 = vrot.slane %v2171, %v2184
  %v2187 = vunpack.c.l.s4 1966171168
  %v2188 = vunpack.c.0.s8 %v2187
  %v2189 = vlaneseq
  %v2190 = vshrl.u32 %v2189, 7
  %v2191 = vsub.s32 %v2188, %v2190
  %v2192 = vrot.slane %v2119, %v2191
  %v2193 = vcombine.low %v2178, %v2185
  %v2195 = vunpack.c.l.s4 1966171168
  %v2196 = vunpack.c.0.s8 %v2195
  %v2197 = vlaneseq
  %v2198 = vshrl.u32 %v2197, 7
  %v2199 = vsub.s32 %v2196, %v2198
  %v2200 = vrot.slane %v2193, %v2199
  %v2202 = vunpack.c.l.s4 1966171168
  %v2203 = vunpack.c.0.s8 %v2202
  %v2204 = vlaneseq
  %v2205 = vshrl.u32 %v2204, 7
  %v2206 = vsub.s32 %v2203, %v2205
  %v2207 = vrot.slane %v2192, %v2206
  %v2208 = vcombine.low %v2200, %v2207
  %v2210 = vsel %vm878, %v1700, 0
  %v2212 = vsel %vm967, %v2208, 0
  %2214 = vmatprep.subr.mxu0 0.0
  %2215 = vmatpush1.msra.mxu0 %v2212
  %2216 = vmatprep.subr.mxu0 0.0
  %2217 = vmatpush1.msra.mxu0 0.0
  %2218 = vmatprep.subr.mxu0 0.0
  %2219 = vmatpush1.msra.mxu0 0.0
  %2220 = vmatprep.subr.mxu0 0.0
  %2221 = vmatpush1.msra.mxu0 0.0
  %2222 = vmatprep.subr.mxu0 0.0
  %2223 = vmatpush1.msra.mxu0 0.0
  %2224 = vmatprep.subr.mxu0 0.0
  %2225 = vmatpush1.msra.mxu0 0.0
  %2226 = vmatprep.subr.mxu0 0.0
  %2227 = vmatpush1.msra.mxu0 0.0
  %2228 = vmatprep.subr.mxu0 0.0
  %2229 = vmatpush1.msra.mxu0 0.0
  %2230 = vmatprep.subr.mxu0 0.0
  %2231 = vmatpush1.msra.mxu0 0.0
  %2232 = vmatprep.subr.mxu0 0.0
  %2233 = vmatpush1.msra.mxu0 0.0
  %2234 = vmatprep.subr.mxu0 0.0
  %2235 = vmatpush1.msra.mxu0 0.0
  %2236 = vmatprep.subr.mxu0 0.0
  %2237 = vmatpush1.msra.mxu0 0.0
  %2238 = vmatprep.subr.mxu0 0.0
  %2239 = vmatpush1.msra.mxu0 0.0
  %2240 = vmatprep.subr.mxu0 0.0
  %2241 = vmatpush1.msra.mxu0 0.0
  %2242 = vmatprep.subr.mxu0 0.0
  %2243 = vmatpush1.msra.mxu0 0.0
  %2244 = vmatprep.subr.mxu0 0.0
  %2245 = vmatpush1.msra.mxu0 0.0
  %2246 = vmatprep.subr.mxu0 0.0
  %2247 = vmatpush1.msra.mxu0 0.0
  %2248 = vmatprep.subr.mxu0 0.0
  %2249 = vmatpush1.msra.mxu0 0.0
  %2250 = vmatprep.subr.mxu0 0.0
  %2251 = vmatpush1.msra.mxu0 0.0
  %2252 = vmatprep.subr.mxu0 0.0
  %2253 = vmatpush1.msra.mxu0 0.0
  %2254 = vmatprep.subr.mxu0 0.0
  %2255 = vmatpush1.msra.mxu0 0.0
  %2256 = vmatprep.subr.mxu0 0.0
  %2257 = vmatpush1.msra.mxu0 0.0
  %2258 = vmatprep.subr.mxu0 0.0
  %2259 = vmatpush1.msra.mxu0 0.0
  %2260 = vmatprep.subr.mxu0 0.0
  %2261 = vmatpush1.msra.mxu0 0.0
  %2262 = vmatprep.subr.mxu0 0.0
  %2263 = vmatpush1.msra.mxu0 0.0
  %2264 = vmatprep.subr.mxu0 0.0
  %2265 = vmatpush1.msra.mxu0 0.0
  %2266 = vmatprep.subr.mxu0 0.0
  %2267 = vmatpush1.msra.mxu0 0.0
  %2268 = vmatprep.subr.mxu0 0.0
  %2269 = vmatpush1.msra.mxu0 0.0
  %2270 = vmatprep.subr.mxu0 0.0
  %2271 = vmatpush1.msra.mxu0 0.0
  %2272 = vmatprep.subr.mxu0 0.0
  %2273 = vmatpush1.msra.mxu0 0.0
  %2274 = vmatprep.subr.mxu0 0.0
  %2275 = vmatpush1.msra.mxu0 0.0
  %2276 = vmatprep.subr.mxu0 0.0
  %2277 = vmatpush1.msra.mxu0 0.0
  %2278 = vmatprep.mubr.f32.mxu0 0.0
  %2279 = vmatmul.mubr.f32.gmra.mrb[0].mxu0 %v2210
  %v2280 = vpop.f32.mrb[0].mxu0
  %v2281 = vadd.f32 0.0, %v2280
  %v2282 = vpop.f32.mrb[0].mxu0
  %2283 = vdwg.mxu0
  %v2284 = vcombine.low %v2133, %v2135
  %v2285 = vcombine.low %v2137, %v2152
  %v2287 = vunpack.c.l.s4 1966171168
  %v2288 = vunpack.c.0.s8 %v2287
  %v2289 = vlaneseq
  %v2290 = vshrl.u32 %v2289, 7
  %v2291 = vsub.s32 %v2288, %v2290
  %v2292 = vrot.slane %v2284, %v2291
  %v2294 = vunpack.c.l.s4 1966171168
  %v2295 = vunpack.c.0.s8 %v2294
  %v2296 = vlaneseq
  %v2297 = vshrl.u32 %v2296, 7
  %v2298 = vsub.s32 %v2295, %v2297
  %v2299 = vrot.slane %v2285, %v2298
  %v2301 = vunpack.c.l.s4 1966171168
  %v2302 = vunpack.c.0.s8 %v2301
  %v2303 = vlaneseq
  %v2304 = vshrl.u32 %v2303, 7
  %v2305 = vsub.s32 %v2302, %v2304
  %v2306 = vrot.slane %v2159, %v2305
  %v2307 = vcombine.low %v2292, %v2299
  %v2309 = vunpack.c.l.s4 1966171168
  %v2310 = vunpack.c.0.s8 %v2309
  %v2311 = vlaneseq
  %v2312 = vshrl.u32 %v2311, 7
  %v2313 = vsub.s32 %v2310, %v2312
  %v2314 = vrot.slane %v2307, %v2313
  %v2316 = vunpack.c.l.s4 1966171168
  %v2317 = vunpack.c.0.s8 %v2316
  %v2318 = vlaneseq
  %v2319 = vshrl.u32 %v2318, 7
  %v2320 = vsub.s32 %v2317, %v2319
  %v2321 = vrot.slane %v2306, %v2320
  %v2322 = vcombine.low %v2314, %v2321
  %v2324 = vsel %vm878, %v1701, 0
  %v2326 = vsel %vm967, %v2322, 0
  %2328 = vmatprep.subr.mxu0 0.0
  %2329 = vmatpush1.msra.mxu0 %v2326
  %2330 = vmatprep.subr.mxu0 0.0
  %2331 = vmatpush1.msra.mxu0 0.0
  %2332 = vmatprep.subr.mxu0 0.0
  %2333 = vmatpush1.msra.mxu0 0.0
  %2334 = vmatprep.subr.mxu0 0.0
  %2335 = vmatpush1.msra.mxu0 0.0
  %2336 = vmatprep.subr.mxu0 0.0
  %2337 = vmatpush1.msra.mxu0 0.0
  %2338 = vmatprep.subr.mxu0 0.0
  %2339 = vmatpush1.msra.mxu0 0.0
  %2340 = vmatprep.subr.mxu0 0.0
  %2341 = vmatpush1.msra.mxu0 0.0
  %2342 = vmatprep.subr.mxu0 0.0
  %2343 = vmatpush1.msra.mxu0 0.0
  %2344 = vmatprep.subr.mxu0 0.0
  %2345 = vmatpush1.msra.mxu0 0.0
  %2346 = vmatprep.subr.mxu0 0.0
  %2347 = vmatpush1.msra.mxu0 0.0
  %2348 = vmatprep.subr.mxu0 0.0
  %2349 = vmatpush1.msra.mxu0 0.0
  %2350 = vmatprep.subr.mxu0 0.0
  %2351 = vmatpush1.msra.mxu0 0.0
  %2352 = vmatprep.subr.mxu0 0.0
  %2353 = vmatpush1.msra.mxu0 0.0
  %2354 = vmatprep.subr.mxu0 0.0
  %2355 = vmatpush1.msra.mxu0 0.0
  %2356 = vmatprep.subr.mxu0 0.0
  %2357 = vmatpush1.msra.mxu0 0.0
  %2358 = vmatprep.subr.mxu0 0.0
  %2359 = vmatpush1.msra.mxu0 0.0
  %2360 = vmatprep.subr.mxu0 0.0
  %2361 = vmatpush1.msra.mxu0 0.0
  %2362 = vmatprep.subr.mxu0 0.0
  %2363 = vmatpush1.msra.mxu0 0.0
  %2364 = vmatprep.subr.mxu0 0.0
  %2365 = vmatpush1.msra.mxu0 0.0
  %2366 = vmatprep.subr.mxu0 0.0
  %2367 = vmatpush1.msra.mxu0 0.0
  %2368 = vmatprep.subr.mxu0 0.0
  %2369 = vmatpush1.msra.mxu0 0.0
  %2370 = vmatprep.subr.mxu0 0.0
  %2371 = vmatpush1.msra.mxu0 0.0
  %2372 = vmatprep.subr.mxu0 0.0
  %2373 = vmatpush1.msra.mxu0 0.0
  %2374 = vmatprep.subr.mxu0 0.0
  %2375 = vmatpush1.msra.mxu0 0.0
  %2376 = vmatprep.subr.mxu0 0.0
  %2377 = vmatpush1.msra.mxu0 0.0
  %2378 = vmatprep.subr.mxu0 0.0
  %2379 = vmatpush1.msra.mxu0 0.0
  %2380 = vmatprep.subr.mxu0 0.0
  %2381 = vmatpush1.msra.mxu0 0.0
  %2382 = vmatprep.subr.mxu0 0.0
  %2383 = vmatpush1.msra.mxu0 0.0
  %2384 = vmatprep.subr.mxu0 0.0
  %2385 = vmatpush1.msra.mxu0 0.0
  %2386 = vmatprep.subr.mxu0 0.0
  %2387 = vmatpush1.msra.mxu0 0.0
  %2388 = vmatprep.subr.mxu0 0.0
  %2389 = vmatpush1.msra.mxu0 0.0
  %2390 = vmatprep.subr.mxu0 0.0
  %2391 = vmatpush1.msra.mxu0 0.0
  %2392 = vmatprep.mubr.f32.mxu0 0.0
  %2393 = vmatmul.mubr.f32.gmra.mrb[0].mxu0 %v2324
  %v2394 = vpop.f32.mrb[0].mxu0
  %v2395 = vadd.f32 0.0, %v2394
  %v2396 = vpop.f32.mrb[0].mxu0
  %2397 = vdwg.mxu0
  %v2400 = vcombine.high %v2281, %v2281
  %v2402 = vunpack.c.l.s4 1966171168
  %v2403 = vunpack.c.0.s8 %v2402
  %v2404 = vlaneseq
  %v2405 = vshrl.u32 %v2404, 7
  %v2406 = vsub.s32 %v2403, %v2405
  %v2407 = vrot.slane %v2281, %v2406
  %v2409 = vunpack.c.l.s4 1966171168
  %v2410 = vunpack.c.0.s8 %v2409
  %v2411 = vlaneseq
  %v2412 = vshrl.u32 %v2411, 7
  %v2413 = vsub.s32 %v2410, %v2412
  %v2414 = vrot.slane %v2400, %v2413
  %v2415 = vcombine.high %v2407, %v2407
  %v2417 = vunpack.c.l.s4 1966171168
  %v2418 = vunpack.c.0.s8 %v2417
  %v2419 = vlaneseq
  %v2420 = vshrl.u32 %v2419, 7
  %v2421 = vsub.s32 %v2418, %v2420
  %v2422 = vrot.slane %v2407, %v2421
  %v2424 = vunpack.c.l.s4 1966171168
  %v2425 = vunpack.c.0.s8 %v2424
  %v2426 = vlaneseq
  %v2427 = vshrl.u32 %v2426, 7
  %v2428 = vsub.s32 %v2425, %v2427
  %v2429 = vrot.slane %v2414, %v2428
  %v2431 = vunpack.c.l.s4 1966171168
  %v2432 = vunpack.c.0.s8 %v2431
  %v2433 = vlaneseq
  %v2434 = vshrl.u32 %v2433, 7
  %v2435 = vsub.s32 %v2432, %v2434
  %v2436 = vrot.slane %v2415, %v2435
  %v2437 = vcombine.high %v2422, %v2422
  %v2438 = vcombine.high %v2436, %v2436
  %v2439 = vcombine.high %v2395, %v2395
  %v2441 = vunpack.c.l.s4 1966171168
  %v2442 = vunpack.c.0.s8 %v2441
  %v2443 = vlaneseq
  %v2444 = vshrl.u32 %v2443, 7
  %v2445 = vsub.s32 %v2442, %v2444
  %v2446 = vrot.slane %v2395, %v2445
  %v2448 = vunpack.c.l.s4 1966171168
  %v2449 = vunpack.c.0.s8 %v2448
  %v2450 = vlaneseq
  %v2451 = vshrl.u32 %v2450, 7
  %v2452 = vsub.s32 %v2449, %v2451
  %v2453 = vrot.slane %v2439, %v2452
  %v2454 = vcombine.high %v2446, %v2446
  %v2456 = vunpack.c.l.s4 1966171168
  %v2457 = vunpack.c.0.s8 %v2456
  %v2458 = vlaneseq
  %v2459 = vshrl.u32 %v2458, 7
  %v2460 = vsub.s32 %v2457, %v2459
  %v2461 = vrot.slane %v2446, %v2460
  %v2463 = vunpack.c.l.s4 1966171168
  %v2464 = vunpack.c.0.s8 %v2463
  %v2465 = vlaneseq
  %v2466 = vshrl.u32 %v2465, 7
  %v2467 = vsub.s32 %v2464, %v2466
  %v2468 = vrot.slane %v2453, %v2467
  %v2470 = vunpack.c.l.s4 1966171168
  %v2471 = vunpack.c.0.s8 %v2470
  %v2472 = vlaneseq
  %v2473 = vshrl.u32 %v2472, 7
  %v2474 = vsub.s32 %v2471, %v2473
  %v2475 = vrot.slane %v2454, %v2474
  %v2476 = vcombine.high %v2461, %v2461
  %v2477 = vcombine.high %v2475, %v2475
  %v2488 = vadd.f32 %v1805, %v2422
  %v2489 = vadd.f32 %v1819, %v2436
  %v2490 = vadd.f32 %v1827, %v2437
  %v2491 = vadd.f32 %v1829, %v2438
  %v2492 = vadd.f32 %v1812, %v2429
  %v2493 = vadd.f32 %v1826, %v2461
  %v2494 = vadd.f32 %v1828, %v2475
  %v2495 = vadd.f32 %v1830, %v2476
  %v2496 = vadd.f32 %v1845, %v2477
  %v2497 = vadd.f32 %v1852, %v2468
  %v2498 = vmax.f32 %v2488, 0.0
  %v2499 = vmax.f32 %v2489, 0.0
  %v2500 = vmax.f32 %v2490, 0.0
  %v2501 = vmax.f32 %v2491, 0.0
  %v2502 = vmax.f32 %v2492, 0.0
  %v2503 = vmax.f32 %v2493, 0.0
  %v2504 = vmax.f32 %v2494, 0.0
  %v2505 = vmax.f32 %v2495, 0.0
  %v2506 = vmax.f32 %v2496, 0.0
  %v2507 = vmax.f32 %v2497, 0.0
  %2508 = vxpose.xlu0.b32.start [1/16] %v1700, 128
  %2509 = vxpose.xlu0.b32.cont [2/16] 0.0, 128
  %2510 = vxpose.xlu0.b32.cont [3/16] 0.0, 128
  %2511 = vxpose.xlu0.b32.cont [4/16] 0.0, 128
  %2512 = vxpose.xlu0.b32.cont [5/16] 0.0, 128
  %2513 = vxpose.xlu0.b32.cont [6/16] 0.0, 128
  %2514 = vxpose.xlu0.b32.cont [7/16] 0.0, 128
  %2515 = vxpose.xlu0.b32.cont [8/16] 0.0, 128
  %2516 = vxpose.xlu0.b32.cont [9/16] 0.0, 128
  %2517 = vxpose.xlu0.b32.cont [10/16] 0.0, 128
  %2518 = vxpose.xlu0.b32.cont [11/16] 0.0, 128
  %2519 = vxpose.xlu0.b32.cont [12/16] 0.0, 128
  %2520 = vxpose.xlu0.b32.cont [13/16] 0.0, 128
  %2521 = vxpose.xlu0.b32.cont [14/16] 0.0, 128
  %2522 = vxpose.xlu0.b32.cont [15/16] 0.0, 128
  %2523 = vxpose.xlu0.b32.end [16/16] 0.0, 128
  %v2524 = vpop.trf.xlu0
  %v2525 = vpop.trf.xlu0
  %v2526 = vpop.trf.xlu0
  %v2527 = vpop.trf.xlu0
  %v2528 = vpop.trf.xlu0
  %v2529 = vpop.trf.xlu0
  %v2530 = vpop.trf.xlu0
  %v2531 = vpop.trf.xlu0
  %v2532 = vpop.trf.xlu0
  %v2533 = vpop.trf.xlu0
  %v2534 = vpop.trf.xlu0
  %v2535 = vpop.trf.xlu0
  %v2536 = vpop.trf.xlu0
  %v2537 = vpop.trf.xlu0
  %v2538 = vpop.trf.xlu0
  %v2539 = vpop.trf.xlu0
  %v2540 = vcombine.low %v1805, %v1819
  %v2541 = vcombine.low %v1827, %v1829
  %v2543 = vunpack.c.l.s4 1966171168
  %v2544 = vunpack.c.0.s8 %v2543
  %v2545 = vlaneseq
  %v2546 = vshrl.u32 %v2545, 7
  %v2547 = vsub.s32 %v2544, %v2546
  %v2548 = vrot.slane %v2540, %v2547
  %v2550 = vunpack.c.l.s4 1966171168
  %v2551 = vunpack.c.0.s8 %v2550
  %v2552 = vlaneseq
  %v2553 = vshrl.u32 %v2552, 7
  %v2554 = vsub.s32 %v2551, %v2553
  %v2555 = vrot.slane %v2541, %v2554
  %v2557 = vunpack.c.l.s4 1966171168
  %v2558 = vunpack.c.0.s8 %v2557
  %v2559 = vlaneseq
  %v2560 = vshrl.u32 %v2559, 7
  %v2561 = vsub.s32 %v2558, %v2560
  %v2562 = vrot.slane %v1812, %v2561
  %v2563 = vcombine.low %v2548, %v2555
  %v2565 = vunpack.c.l.s4 1966171168
  %v2566 = vunpack.c.0.s8 %v2565
  %v2567 = vlaneseq
  %v2568 = vshrl.u32 %v2567, 7
  %v2569 = vsub.s32 %v2566, %v2568
  %v2570 = vrot.slane %v2563, %v2569
  %v2572 = vunpack.c.l.s4 1966171168
  %v2573 = vunpack.c.0.s8 %v2572
  %v2574 = vlaneseq
  %v2575 = vshrl.u32 %v2574, 7
  %v2576 = vsub.s32 %v2573, %v2575
  %v2577 = vrot.slane %v2562, %v2576
  %v2578 = vcombine.low %v2570, %v2577
  %v2580 = vsel %vm878, %v2524, 0
  %v2582 = vsel %vm967, %v2578, 0
  %2584 = vmatprep.subr.mxu0 0.0
  %2585 = vmatpush1.msra.mxu0 %v2582
  %2586 = vmatprep.subr.mxu0 0.0
  %2587 = vmatpush1.msra.mxu0 0.0
  %2588 = vmatprep.subr.mxu0 0.0
  %2589 = vmatpush1.msra.mxu0 0.0
  %2590 = vmatprep.subr.mxu0 0.0
  %2591 = vmatpush1.msra.mxu0 0.0
  %2592 = vmatprep.subr.mxu0 0.0
  %2593 = vmatpush1.msra.mxu0 0.0
  %2594 = vmatprep.subr.mxu0 0.0
  %2595 = vmatpush1.msra.mxu0 0.0
  %2596 = vmatprep.subr.mxu0 0.0
  %2597 = vmatpush1.msra.mxu0 0.0
  %2598 = vmatprep.subr.mxu0 0.0
  %2599 = vmatpush1.msra.mxu0 0.0
  %2600 = vmatprep.subr.mxu0 0.0
  %2601 = vmatpush1.msra.mxu0 0.0
  %2602 = vmatprep.subr.mxu0 0.0
  %2603 = vmatpush1.msra.mxu0 0.0
  %2604 = vmatprep.subr.mxu0 0.0
  %2605 = vmatpush1.msra.mxu0 0.0
  %2606 = vmatprep.subr.mxu0 0.0
  %2607 = vmatpush1.msra.mxu0 0.0
  %2608 = vmatprep.subr.mxu0 0.0
  %2609 = vmatpush1.msra.mxu0 0.0
  %2610 = vmatprep.subr.mxu0 0.0
  %2611 = vmatpush1.msra.mxu0 0.0
  %2612 = vmatprep.subr.mxu0 0.0
  %2613 = vmatpush1.msra.mxu0 0.0
  %2614 = vmatprep.subr.mxu0 0.0
  %2615 = vmatpush1.msra.mxu0 0.0
  %2616 = vmatprep.subr.mxu0 0.0
  %2617 = vmatpush1.msra.mxu0 0.0
  %2618 = vmatprep.subr.mxu0 0.0
  %2619 = vmatpush1.msra.mxu0 0.0
  %2620 = vmatprep.subr.mxu0 0.0
  %2621 = vmatpush1.msra.mxu0 0.0
  %2622 = vmatprep.subr.mxu0 0.0
  %2623 = vmatpush1.msra.mxu0 0.0
  %2624 = vmatprep.subr.mxu0 0.0
  %2625 = vmatpush1.msra.mxu0 0.0
  %2626 = vmatprep.subr.mxu0 0.0
  %2627 = vmatpush1.msra.mxu0 0.0
  %2628 = vmatprep.subr.mxu0 0.0
  %2629 = vmatpush1.msra.mxu0 0.0
  %2630 = vmatprep.subr.mxu0 0.0
  %2631 = vmatpush1.msra.mxu0 0.0
  %2632 = vmatprep.subr.mxu0 0.0
  %2633 = vmatpush1.msra.mxu0 0.0
  %2634 = vmatprep.subr.mxu0 0.0
  %2635 = vmatpush1.msra.mxu0 0.0
  %2636 = vmatprep.subr.mxu0 0.0
  %2637 = vmatpush1.msra.mxu0 0.0
  %2638 = vmatprep.subr.mxu0 0.0
  %2639 = vmatpush1.msra.mxu0 0.0
  %2640 = vmatprep.subr.mxu0 0.0
  %2641 = vmatpush1.msra.mxu0 0.0
  %2642 = vmatprep.subr.mxu0 0.0
  %2643 = vmatpush1.msra.mxu0 0.0
  %2644 = vmatprep.subr.mxu0 0.0
  %2645 = vmatpush1.msra.mxu0 0.0
  %2646 = vmatprep.subr.mxu0 0.0
  %2647 = vmatpush1.msra.mxu0 0.0
  %2648 = vmatprep.mubr.f32.mxu0 0.0
  %2649 = vmatmul.mubr.f32.gmra.mrb[0].mxu0 %v2580
  %v2650 = vpop.f32.mrb[0].mxu0
  %v2651 = vadd.f32 0.0, %v2650
  %v2652 = vpop.f32.mrb[0].mxu0
  %2653 = vdwg.mxu0
  %2654 = vxpose.xlu0.b32.start [1/16] %v1701, 128
  %2655 = vxpose.xlu0.b32.cont [2/16] 0.0, 128
  %2656 = vxpose.xlu0.b32.cont [3/16] 0.0, 128
  %2657 = vxpose.xlu0.b32.cont [4/16] 0.0, 128
  %2658 = vxpose.xlu0.b32.cont [5/16] 0.0, 128
  %2659 = vxpose.xlu0.b32.cont [6/16] 0.0, 128
  %2660 = vxpose.xlu0.b32.cont [7/16] 0.0, 128
  %2661 = vxpose.xlu0.b32.cont [8/16] 0.0, 128
  %2662 = vxpose.xlu0.b32.cont [9/16] 0.0, 128
  %2663 = vxpose.xlu0.b32.cont [10/16] 0.0, 128
  %2664 = vxpose.xlu0.b32.cont [11/16] 0.0, 128
  %2665 = vxpose.xlu0.b32.cont [12/16] 0.0, 128
  %2666 = vxpose.xlu0.b32.cont [13/16] 0.0, 128
  %2667 = vxpose.xlu0.b32.cont [14/16] 0.0, 128
  %2668 = vxpose.xlu0.b32.cont [15/16] 0.0, 128
  %2669 = vxpose.xlu0.b32.end [16/16] 0.0, 128
  %v2670 = vpop.trf.xlu0
  %v2671 = vpop.trf.xlu0
  %v2672 = vpop.trf.xlu0
  %v2673 = vpop.trf.xlu0
  %v2674 = vpop.trf.xlu0
  %v2675 = vpop.trf.xlu0
  %v2676 = vpop.trf.xlu0
  %v2677 = vpop.trf.xlu0
  %v2678 = vpop.trf.xlu0
  %v2679 = vpop.trf.xlu0
  %v2680 = vpop.trf.xlu0
  %v2681 = vpop.trf.xlu0
  %v2682 = vpop.trf.xlu0
  %v2683 = vpop.trf.xlu0
  %v2684 = vpop.trf.xlu0
  %v2685 = vpop.trf.xlu0
  %v2686 = vcombine.low %v1826, %v1828
  %v2687 = vcombine.low %v1830, %v1845
  %v2689 = vunpack.c.l.s4 1966171168
  %v2690 = vunpack.c.0.s8 %v2689
  %v2691 = vlaneseq
  %v2692 = vshrl.u32 %v2691, 7
  %v2693 = vsub.s32 %v2690, %v2692
  %v2694 = vrot.slane %v2686, %v2693
  %v2696 = vunpack.c.l.s4 1966171168
  %v2697 = vunpack.c.0.s8 %v2696
  %v2698 = vlaneseq
  %v2699 = vshrl.u32 %v2698, 7
  %v2700 = vsub.s32 %v2697, %v2699
  %v2701 = vrot.slane %v2687, %v2700
  %v2703 = vunpack.c.l.s4 1966171168
  %v2704 = vunpack.c.0.s8 %v2703
  %v2705 = vlaneseq
  %v2706 = vshrl.u32 %v2705, 7
  %v2707 = vsub.s32 %v2704, %v2706
  %v2708 = vrot.slane %v1852, %v2707
  %v2709 = vcombine.low %v2694, %v2701
  %v2711 = vunpack.c.l.s4 1966171168
  %v2712 = vunpack.c.0.s8 %v2711
  %v2713 = vlaneseq
  %v2714 = vshrl.u32 %v2713, 7
  %v2715 = vsub.s32 %v2712, %v2714
  %v2716 = vrot.slane %v2709, %v2715
  %v2718 = vunpack.c.l.s4 1966171168
  %v2719 = vunpack.c.0.s8 %v2718
  %v2720 = vlaneseq
  %v2721 = vshrl.u32 %v2720, 7
  %v2722 = vsub.s32 %v2719, %v2721
  %v2723 = vrot.slane %v2708, %v2722
  %v2724 = vcombine.low %v2716, %v2723
  %v2726 = vsel %vm878, %v2670, 0
  %v2728 = vsel %vm967, %v2724, 0
  %2730 = vmatprep.subr.mxu0 0.0
  %2731 = vmatpush1.msra.mxu0 %v2728
  %2732 = vmatprep.subr.mxu0 0.0
  %2733 = vmatpush1.msra.mxu0 0.0
  %2734 = vmatprep.subr.mxu0 0.0
  %2735 = vmatpush1.msra.mxu0 0.0
  %2736 = vmatprep.subr.mxu0 0.0
  %2737 = vmatpush1.msra.mxu0 0.0
  %2738 = vmatprep.subr.mxu0 0.0
  %2739 = vmatpush1.msra.mxu0 0.0
  %2740 = vmatprep.subr.mxu0 0.0
  %2741 = vmatpush1.msra.mxu0 0.0
  %2742 = vmatprep.subr.mxu0 0.0
  %2743 = vmatpush1.msra.mxu0 0.0
  %2744 = vmatprep.subr.mxu0 0.0
  %2745 = vmatpush1.msra.mxu0 0.0
  %2746 = vmatprep.subr.mxu0 0.0
  %2747 = vmatpush1.msra.mxu0 0.0
  %2748 = vmatprep.subr.mxu0 0.0
  %2749 = vmatpush1.msra.mxu0 0.0
  %2750 = vmatprep.subr.mxu0 0.0
  %2751 = vmatpush1.msra.mxu0 0.0
  %2752 = vmatprep.subr.mxu0 0.0
  %2753 = vmatpush1.msra.mxu0 0.0
  %2754 = vmatprep.subr.mxu0 0.0
  %2755 = vmatpush1.msra.mxu0 0.0
  %2756 = vmatprep.subr.mxu0 0.0
  %2757 = vmatpush1.msra.mxu0 0.0
  %2758 = vmatprep.subr.mxu0 0.0
  %2759 = vmatpush1.msra.mxu0 0.0
  %2760 = vmatprep.subr.mxu0 0.0
  %2761 = vmatpush1.msra.mxu0 0.0
  %2762 = vmatprep.subr.mxu0 0.0
  %2763 = vmatpush1.msra.mxu0 0.0
  %2764 = vmatprep.subr.mxu0 0.0
  %2765 = vmatpush1.msra.mxu0 0.0
  %2766 = vmatprep.subr.mxu0 0.0
  %2767 = vmatpush1.msra.mxu0 0.0
  %2768 = vmatprep.subr.mxu0 0.0
  %2769 = vmatpush1.msra.mxu0 0.0
  %2770 = vmatprep.subr.mxu0 0.0
  %2771 = vmatpush1.msra.mxu0 0.0
  %2772 = vmatprep.subr.mxu0 0.0
  %2773 = vmatpush1.msra.mxu0 0.0
  %2774 = vmatprep.subr.mxu0 0.0
  %2775 = vmatpush1.msra.mxu0 0.0
  %2776 = vmatprep.subr.mxu0 0.0
  %2777 = vmatpush1.msra.mxu0 0.0
  %2778 = vmatprep.subr.mxu0 0.0
  %2779 = vmatpush1.msra.mxu0 0.0
  %2780 = vmatprep.subr.mxu0 0.0
  %2781 = vmatpush1.msra.mxu0 0.0
  %2782 = vmatprep.subr.mxu0 0.0
  %2783 = vmatpush1.msra.mxu0 0.0
  %2784 = vmatprep.subr.mxu0 0.0
  %2785 = vmatpush1.msra.mxu0 0.0
  %2786 = vmatprep.subr.mxu0 0.0
  %2787 = vmatpush1.msra.mxu0 0.0
  %2788 = vmatprep.subr.mxu0 0.0
  %2789 = vmatpush1.msra.mxu0 0.0
  %2790 = vmatprep.subr.mxu0 0.0
  %2791 = vmatpush1.msra.mxu0 0.0
  %2792 = vmatprep.subr.mxu0 0.0
  %2793 = vmatpush1.msra.mxu0 0.0
  %2794 = vmatprep.mubr.f32.mxu0 0.0
  %2795 = vmatmul.mubr.f32.gmra.mrb[0].mxu0 %v2726
  %v2796 = vpop.f32.mrb[0].mxu0
  %v2797 = vadd.f32 0.0, %v2796
  %v2798 = vpop.f32.mrb[0].mxu0
  %2799 = vdwg.mxu0
  %v2802 = vcombine.high %v2651, %v2651
  %v2804 = vunpack.c.l.s4 1966171168
  %v2805 = vunpack.c.0.s8 %v2804
  %v2806 = vlaneseq
  %v2807 = vshrl.u32 %v2806, 7
  %v2808 = vsub.s32 %v2805, %v2807
  %v2809 = vrot.slane %v2651, %v2808
  %v2811 = vunpack.c.l.s4 1966171168
  %v2812 = vunpack.c.0.s8 %v2811
  %v2813 = vlaneseq
  %v2814 = vshrl.u32 %v2813, 7
  %v2815 = vsub.s32 %v2812, %v2814
  %v2816 = vrot.slane %v2802, %v2815
  %v2817 = vcombine.high %v2809, %v2809
  %v2819 = vunpack.c.l.s4 1966171168
  %v2820 = vunpack.c.0.s8 %v2819
  %v2821 = vlaneseq
  %v2822 = vshrl.u32 %v2821, 7
  %v2823 = vsub.s32 %v2820, %v2822
  %v2824 = vrot.slane %v2809, %v2823
  %v2826 = vunpack.c.l.s4 1966171168
  %v2827 = vunpack.c.0.s8 %v2826
  %v2828 = vlaneseq
  %v2829 = vshrl.u32 %v2828, 7
  %v2830 = vsub.s32 %v2827, %v2829
  %v2831 = vrot.slane %v2816, %v2830
  %v2833 = vunpack.c.l.s4 1966171168
  %v2834 = vunpack.c.0.s8 %v2833
  %v2835 = vlaneseq
  %v2836 = vshrl.u32 %v2835, 7
  %v2837 = vsub.s32 %v2834, %v2836
  %v2838 = vrot.slane %v2817, %v2837
  %v2839 = vcombine.high %v2824, %v2824
  %v2840 = vcombine.high %v2838, %v2838
  %v2841 = vcombine.high %v2797, %v2797
  %v2843 = vunpack.c.l.s4 1966171168
  %v2844 = vunpack.c.0.s8 %v2843
  %v2845 = vlaneseq
  %v2846 = vshrl.u32 %v2845, 7
  %v2847 = vsub.s32 %v2844, %v2846
  %v2848 = vrot.slane %v2797, %v2847
  %v2850 = vunpack.c.l.s4 1966171168
  %v2851 = vunpack.c.0.s8 %v2850
  %v2852 = vlaneseq
  %v2853 = vshrl.u32 %v2852, 7
  %v2854 = vsub.s32 %v2851, %v2853
  %v2855 = vrot.slane %v2841, %v2854
  %v2856 = vcombine.high %v2848, %v2848
  %v2858 = vunpack.c.l.s4 1966171168
  %v2859 = vunpack.c.0.s8 %v2858
  %v2860 = vlaneseq
  %v2861 = vshrl.u32 %v2860, 7
  %v2862 = vsub.s32 %v2859, %v2861
  %v2863 = vrot.slane %v2848, %v2862
  %v2865 = vunpack.c.l.s4 1966171168
  %v2866 = vunpack.c.0.s8 %v2865
  %v2867 = vlaneseq
  %v2868 = vshrl.u32 %v2867, 7
  %v2869 = vsub.s32 %v2866, %v2868
  %v2870 = vrot.slane %v2855, %v2869
  %v2872 = vunpack.c.l.s4 1966171168
  %v2873 = vunpack.c.0.s8 %v2872
  %v2874 = vlaneseq
  %v2875 = vshrl.u32 %v2874, 7
  %v2876 = vsub.s32 %v2873, %v2875
  %v2877 = vrot.slane %v2856, %v2876
  %v2878 = vcombine.high %v2863, %v2863
  %v2879 = vcombine.high %v2877, %v2877
  %v2890 = vadd.f32 %v2112, %v2824
  %v2891 = vadd.f32 %v2126, %v2838
  %v2892 = vadd.f32 %v2134, %v2839
  %v2893 = vadd.f32 %v2136, %v2840
  %v2894 = vadd.f32 %v2119, %v2831
  %v2895 = vadd.f32 %v2133, %v2863
  %v2896 = vadd.f32 %v2135, %v2877
  %v2897 = vadd.f32 %v2137, %v2878
  %v2898 = vadd.f32 %v2152, %v2879
  %v2899 = vadd.f32 %v2159, %v2870
  %v2900 = vmax.f32 %v2890, 0.0
  %v2901 = vmax.f32 %v2891, 0.0
  %v2902 = vmax.f32 %v2892, 0.0
  %v2903 = vmax.f32 %v2893, 0.0
  %v2904 = vmax.f32 %v2894, 0.0
  %v2905 = vmax.f32 %v2895, 0.0
  %v2906 = vmax.f32 %v2896, 0.0
  %v2907 = vmax.f32 %v2897, 0.0
  %v2908 = vmax.f32 %v2898, 0.0
  %v2909 = vmax.f32 %v2899, 0.0
  %v2910 = vlaneseq
  %v2911 = vshrl.u32 %v2910, 7
  %v2912 = vsub.s32 0, %v2911
  %v2913 = vrot.slane %v1170, %v2912
  %v2915 = vcombine.high %v2913, %v2913
  %v2917 = vunpack.c.l.s4 1966171168
  %v2918 = vunpack.c.0.s8 %v2917
  %v2919 = vlaneseq
  %v2920 = vshrl.u32 %v2919, 7
  %v2921 = vsub.s32 %v2918, %v2920
  %v2922 = vrot.slane %v2913, %v2921
  %v2924 = vunpack.c.l.s4 1966171168
  %v2925 = vunpack.c.0.s8 %v2924
  %v2926 = vlaneseq
  %v2927 = vshrl.u32 %v2926, 7
  %v2928 = vsub.s32 %v2925, %v2927
  %v2929 = vrot.slane %v2915, %v2928
  %v2930 = vcombine.high %v2922, %v2922
  %v2932 = vunpack.c.l.s4 1966171168
  %v2933 = vunpack.c.0.s8 %v2932
  %v2934 = vlaneseq
  %v2935 = vshrl.u32 %v2934, 7
  %v2936 = vsub.s32 %v2933, %v2935
  %v2937 = vrot.slane %v2922, %v2936
  %v2939 = vunpack.c.l.s4 1966171168
  %v2940 = vunpack.c.0.s8 %v2939
  %v2941 = vlaneseq
  %v2942 = vshrl.u32 %v2941, 7
  %v2943 = vsub.s32 %v2940, %v2942
  %v2944 = vrot.slane %v2929, %v2943
  %v2946 = vunpack.c.l.s4 1966171168
  %v2947 = vunpack.c.0.s8 %v2946
  %v2948 = vlaneseq
  %v2949 = vshrl.u32 %v2948, 7
  %v2950 = vsub.s32 %v2947, %v2949
  %v2951 = vrot.slane %v2930, %v2950
  %v2952 = vcombine.high %v2937, %v2937
  %v2953 = vcombine.high %v2951, %v2951
  %v2959 = vmul.f32 %v2498, %v2937
  %v2960 = vmul.f32 %v2499, %v2951
  %v2961 = vmul.f32 %v2500, %v2952
  %v2962 = vmul.f32 %v2501, %v2953
  %v2963 = vmul.f32 %v2502, %v2944
  %v2964 = vmul.f32 %v2503, %v2937
  %v2965 = vmul.f32 %v2504, %v2951
  %v2966 = vmul.f32 %v2505, %v2952
  %v2967 = vmul.f32 %v2506, %v2953
  %v2968 = vmul.f32 %v2507, %v2944
  %v2979 = vcombine.low %v2959, %v2960
  %v2980 = vcombine.low %v2961, %v2962
  %v2982 = vunpack.c.l.s4 1966171168
  %v2983 = vunpack.c.0.s8 %v2982
  %v2984 = vlaneseq
  %v2985 = vshrl.u32 %v2984, 7
  %v2986 = vsub.s32 %v2983, %v2985
  %v2987 = vrot.slane %v2979, %v2986
  %v2989 = vunpack.c.l.s4 1966171168
  %v2990 = vunpack.c.0.s8 %v2989
  %v2991 = vlaneseq
  %v2992 = vshrl.u32 %v2991, 7
  %v2993 = vsub.s32 %v2990, %v2992
  %v2994 = vrot.slane %v2980, %v2993
  %v2996 = vunpack.c.l.s4 1966171168
  %v2997 = vunpack.c.0.s8 %v2996
  %v2998 = vlaneseq
  %v2999 = vshrl.u32 %v2998, 7
  %v3000 = vsub.s32 %v2997, %v2999
  %v3001 = vrot.slane %v2963, %v3000
  %v3002 = vcombine.low %v2987, %v2994
  %v3004 = vunpack.c.l.s4 1966171168
  %v3005 = vunpack.c.0.s8 %v3004
  %v3006 = vlaneseq
  %v3007 = vshrl.u32 %v3006, 7
  %v3008 = vsub.s32 %v3005, %v3007
  %v3009 = vrot.slane %v3002, %v3008
  %v3011 = vunpack.c.l.s4 1966171168
  %v3012 = vunpack.c.0.s8 %v3011
  %v3013 = vlaneseq
  %v3014 = vshrl.u32 %v3013, 7
  %v3015 = vsub.s32 %v3012, %v3014
  %v3016 = vrot.slane %v3001, %v3015
  %v3017 = vcombine.low %v3009, %v3016
  %v3018 = vcombine.low %v2964, %v2965
  %v3019 = vcombine.low %v2966, %v2967
  %v3021 = vunpack.c.l.s4 1966171168
  %v3022 = vunpack.c.0.s8 %v3021
  %v3023 = vlaneseq
  %v3024 = vshrl.u32 %v3023, 7
  %v3025 = vsub.s32 %v3022, %v3024
  %v3026 = vrot.slane %v3018, %v3025
  %v3028 = vunpack.c.l.s4 1966171168
  %v3029 = vunpack.c.0.s8 %v3028
  %v3030 = vlaneseq
  %v3031 = vshrl.u32 %v3030, 7
  %v3032 = vsub.s32 %v3029, %v3031
  %v3033 = vrot.slane %v3019, %v3032
  %v3035 = vunpack.c.l.s4 1966171168
  %v3036 = vunpack.c.0.s8 %v3035
  %v3037 = vlaneseq
  %v3038 = vshrl.u32 %v3037, 7
  %v3039 = vsub.s32 %v3036, %v3038
  %v3040 = vrot.slane %v2968, %v3039
  %v3041 = vcombine.low %v3026, %v3033
  %v3043 = vunpack.c.l.s4 1966171168
  %v3044 = vunpack.c.0.s8 %v3043
  %v3045 = vlaneseq
  %v3046 = vshrl.u32 %v3045, 7
  %v3047 = vsub.s32 %v3044, %v3046
  %v3048 = vrot.slane %v3041, %v3047
  %v3050 = vunpack.c.l.s4 1966171168
  %v3051 = vunpack.c.0.s8 %v3050
  %v3052 = vlaneseq
  %v3053 = vshrl.u32 %v3052, 7
  %v3054 = vsub.s32 %v3051, %v3053
  %v3055 = vrot.slane %v3040, %v3054
  %v3056 = vcombine.low %v3048, %v3055
  %vm3059 = vcmask 61440
  %v3060 = vsel %vm3059, %v3017, 0.0
  %3061 = vadd.xlane.f32.xlu0 %v3060
  %v3062 = vpop.xlane.xlu0 %3061
  %v3063 = vsel %vm3059, %v3056, 0.0
  %3064 = vadd.xlane.f32.xlu0 %v3063
  %v3065 = vpop.xlane.xlu0 %3064
  %v3066 = vlaneseq
  %v3067 = vshrl.u32 %v3066, 7
  %v3068 = vsub.s32 0, %v3067
  %v3069 = vrot.slane %v1171, %v3068
  %v3071 = vcombine.high %v3069, %v3069
  %v3073 = vunpack.c.l.s4 1966171168
  %v3074 = vunpack.c.0.s8 %v3073
  %v3075 = vlaneseq
  %v3076 = vshrl.u32 %v3075, 7
  %v3077 = vsub.s32 %v3074, %v3076
  %v3078 = vrot.slane %v3069, %v3077
  %v3080 = vunpack.c.l.s4 1966171168
  %v3081 = vunpack.c.0.s8 %v3080
  %v3082 = vlaneseq
  %v3083 = vshrl.u32 %v3082, 7
  %v3084 = vsub.s32 %v3081, %v3083
  %v3085 = vrot.slane %v3071, %v3084
  %v3086 = vcombine.high %v3078, %v3078
  %v3088 = vunpack.c.l.s4 1966171168
  %v3089 = vunpack.c.0.s8 %v3088
  %v3090 = vlaneseq
  %v3091 = vshrl.u32 %v3090, 7
  %v3092 = vsub.s32 %v3089, %v3091
  %v3093 = vrot.slane %v3078, %v3092
  %v3095 = vunpack.c.l.s4 1966171168
  %v3096 = vunpack.c.0.s8 %v3095
  %v3097 = vlaneseq
  %v3098 = vshrl.u32 %v3097, 7
  %v3099 = vsub.s32 %v3096, %v3098
  %v3100 = vrot.slane %v3085, %v3099
  %v3102 = vunpack.c.l.s4 1966171168
  %v3103 = vunpack.c.0.s8 %v3102
  %v3104 = vlaneseq
  %v3105 = vshrl.u32 %v3104, 7
  %v3106 = vsub.s32 %v3103, %v3105
  %v3107 = vrot.slane %v3086, %v3106
  %v3108 = vcombine.high %v3093, %v3093
  %v3109 = vcombine.high %v3107, %v3107
  %v3115 = vmul.f32 %v2900, %v3093
  %v3116 = vmul.f32 %v2901, %v3107
  %v3117 = vmul.f32 %v2902, %v3108
  %v3118 = vmul.f32 %v2903, %v3109
  %v3119 = vmul.f32 %v2904, %v3100
  %v3120 = vmul.f32 %v2905, %v3093
  %v3121 = vmul.f32 %v2906, %v3107
  %v3122 = vmul.f32 %v2907, %v3108
  %v3123 = vmul.f32 %v2908, %v3109
  %v3124 = vmul.f32 %v2909, %v3100
  %v3135 = vcombine.low %v3115, %v3116
  %v3136 = vcombine.low %v3117, %v3118
  %v3138 = vunpack.c.l.s4 1966171168
  %v3139 = vunpack.c.0.s8 %v3138
  %v3140 = vlaneseq
  %v3141 = vshrl.u32 %v3140, 7
  %v3142 = vsub.s32 %v3139, %v3141
  %v3143 = vrot.slane %v3135, %v3142
  %v3145 = vunpack.c.l.s4 1966171168
  %v3146 = vunpack.c.0.s8 %v3145
  %v3147 = vlaneseq
  %v3148 = vshrl.u32 %v3147, 7
  %v3149 = vsub.s32 %v3146, %v3148
  %v3150 = vrot.slane %v3136, %v3149
  %v3152 = vunpack.c.l.s4 1966171168
  %v3153 = vunpack.c.0.s8 %v3152
  %v3154 = vlaneseq
  %v3155 = vshrl.u32 %v3154, 7
  %v3156 = vsub.s32 %v3153, %v3155
  %v3157 = vrot.slane %v3119, %v3156
  %v3158 = vcombine.low %v3143, %v3150
  %v3160 = vunpack.c.l.s4 1966171168
  %v3161 = vunpack.c.0.s8 %v3160
  %v3162 = vlaneseq
  %v3163 = vshrl.u32 %v3162, 7
  %v3164 = vsub.s32 %v3161, %v3163
  %v3165 = vrot.slane %v3158, %v3164
  %v3167 = vunpack.c.l.s4 1966171168
  %v3168 = vunpack.c.0.s8 %v3167
  %v3169 = vlaneseq
  %v3170 = vshrl.u32 %v3169, 7
  %v3171 = vsub.s32 %v3168, %v3170
  %v3172 = vrot.slane %v3157, %v3171
  %v3173 = vcombine.low %v3165, %v3172
  %v3174 = vcombine.low %v3120, %v3121
  %v3175 = vcombine.low %v3122, %v3123
  %v3177 = vunpack.c.l.s4 1966171168
  %v3178 = vunpack.c.0.s8 %v3177
  %v3179 = vlaneseq
  %v3180 = vshrl.u32 %v3179, 7
  %v3181 = vsub.s32 %v3178, %v3180
  %v3182 = vrot.slane %v3174, %v3181
  %v3184 = vunpack.c.l.s4 1966171168
  %v3185 = vunpack.c.0.s8 %v3184
  %v3186 = vlaneseq
  %v3187 = vshrl.u32 %v3186, 7
  %v3188 = vsub.s32 %v3185, %v3187
  %v3189 = vrot.slane %v3175, %v3188
  %v3191 = vunpack.c.l.s4 1966171168
  %v3192 = vunpack.c.0.s8 %v3191
  %v3193 = vlaneseq
  %v3194 = vshrl.u32 %v3193, 7
  %v3195 = vsub.s32 %v3192, %v3194
  %v3196 = vrot.slane %v3124, %v3195
  %v3197 = vcombine.low %v3182, %v3189
  %v3199 = vunpack.c.l.s4 1966171168
  %v3200 = vunpack.c.0.s8 %v3199
  %v3201 = vlaneseq
  %v3202 = vshrl.u32 %v3201, 7
  %v3203 = vsub.s32 %v3200, %v3202
  %v3204 = vrot.slane %v3197, %v3203
  %v3206 = vunpack.c.l.s4 1966171168
  %v3207 = vunpack.c.0.s8 %v3206
  %v3208 = vlaneseq
  %v3209 = vshrl.u32 %v3208, 7
  %v3210 = vsub.s32 %v3207, %v3209
  %v3211 = vrot.slane %v3196, %v3210
  %v3212 = vcombine.low %v3204, %v3211
  %v3215 = vsel %vm3059, %v3173, 0.0
  %3216 = vadd.xlane.f32.xlu0 %v3215
  %v3217 = vpop.xlane.xlu0 %3216
  %v3218 = vsel %vm3059, %v3212, 0.0
  %3219 = vadd.xlane.f32.xlu0 %v3218
  %v3220 = vpop.xlane.xlu0 %3219
  %v3223 = vlaneseq
  %v3224 = vshrl.u32 %v3223, 7
  %v3225 = vsub.s32 %v25, %v3224
  %v3226 = vrot.slane %v3062, %v3225
  %v3227 = vlaneseq
  %v3228 = vshrl.u32 %v3227, 7
  %v3229 = vsub.s32 %v25, %v3228
  %v3230 = vrot.slane %v3065, %v3229
  %vm3231 = vcmask 1041409
  %v3232 = vsel %vm3231, %v3230, %v3226
  %vm3234 = vcmask 33792
  %v3235 = vsel %vm3234, %v3232, -inf
  %3236 = vmax.xlane.f32.xlu0 %v3235
  %v3237 = vpop.xlane.xlu0 %3236
  %v3239 = vlaneseq
  %v3240 = vshrl.u32 %v3239, 7
  %v3241 = vsub.s32 0, %v3240
  %v3242 = vrot.slane %v3237, %v3241
  %v3243 = vlaneseq
  %v3244 = vshrl.u32 %v3243, 7
  %v3245 = vsub.s32 1, %v3244
  %v3246 = vrot.slane %v3237, %v3245
  %v3249 = vsub.f32 %v3062, %v3242
  %v3250 = vsub.f32 %v3065, %v3246
  %v3251 = vmul.f32 %v3249, 1.442695
  %v3252 = vpow.pop %v3251
  %v3253 = vmul.f32 %v3250, 1.442695
  %v3254 = vpow.pop %v3253
  %3257 = vset.pattern.permute.xlu0 0
  %3258 = vperm.xlu0 %3257, %v3252
  %v3259 = vpop.permute.xlu0 %3258
  %3260 = vset.pattern.permute.xlu0 0
  %3261 = vperm.xlu0 %3260, %v3254
  %v3262 = vpop.permute.xlu0 %3261
  %v3263 = vlaneseq
  %v3264 = vshrl.u32 %v3263, 7
  %v3265 = vsub.s32 %v25, %v3264
  %v3266 = vrot.slane %v3259, %v3265
  %v3267 = vlaneseq
  %v3268 = vshrl.u32 %v3267, 7
  %v3269 = vsub.s32 %v25, %v3268
  %v3270 = vrot.slane %v3262, %v3269
  %v3271 = vsel %vm3231, %v3270, %v3266
  %v3273 = vsel %vm3234, %v3271, 0.0
  %3274 = vadd.xlane.f32.xlu0 %v3273
  %v3275 = vpop.xlane.xlu0 %3274
  %v3277 = vlaneseq
  %v3278 = vshrl.u32 %v3277, 7
  %v3279 = vsub.s32 0, %v3278
  %v3280 = vrot.slane %v3275, %v3279
  %v3281 = vlaneseq
  %v3282 = vshrl.u32 %v3281, 7
  %v3283 = vsub.s32 1, %v3282
  %v3284 = vrot.slane %v3275, %v3283
  %v3287 = vrcp.pop %v3280
  %v3288 = vmul.f32 %v3252, %v3287
  %v3289 = vrcp.pop %v3284
  %v3290 = vmul.f32 %v3254, %v3289
  %v3293 = vlaneseq
  %v3294 = vshrl.u32 %v3293, 7
  %v3295 = vsub.s32 %v25, %v3294
  %v3296 = vrot.slane %v3217, %v3295
  %v3297 = vlaneseq
  %v3298 = vshrl.u32 %v3297, 7
  %v3299 = vsub.s32 %v25, %v3298
  %v3300 = vrot.slane %v3220, %v3299
  %v3301 = vsel %vm3231, %v3300, %v3296
  %v3303 = vsel %vm3234, %v3301, -inf
  %3304 = vmax.xlane.f32.xlu0 %v3303
  %v3305 = vpop.xlane.xlu0 %3304
  %v3307 = vlaneseq
  %v3308 = vshrl.u32 %v3307, 7
  %v3309 = vsub.s32 0, %v3308
  %v3310 = vrot.slane %v3305, %v3309
  %v3311 = vlaneseq
  %v3312 = vshrl.u32 %v3311, 7
  %v3313 = vsub.s32 1, %v3312
  %v3314 = vrot.slane %v3305, %v3313
  %v3317 = vsub.f32 %v3217, %v3310
  %v3318 = vsub.f32 %v3220, %v3314
  %v3319 = vmul.f32 %v3317, 1.442695
  %v3320 = vpow.pop %v3319
  %v3321 = vmul.f32 %v3318, 1.442695
  %v3322 = vpow.pop %v3321
  %3325 = vset.pattern.permute.xlu0 0
  %3326 = vperm.xlu0 %3325, %v3320
  %v3327 = vpop.permute.xlu0 %3326
  %3328 = vset.pattern.permute.xlu0 0
  %3329 = vperm.xlu0 %3328, %v3322
  %v3330 = vpop.permute.xlu0 %3329
  %v3331 = vlaneseq
  %v3332 = vshrl.u32 %v3331, 7
  %v3333 = vsub.s32 %v25, %v3332
  %v3334 = vrot.slane %v3327, %v3333
  %v3335 = vlaneseq
  %v3336 = vshrl.u32 %v3335, 7
  %v3337 = vsub.s32 %v25, %v3336
  %v3338 = vrot.slane %v3330, %v3337
  %v3339 = vsel %vm3231, %v3338, %v3334
  %v3341 = vsel %vm3234, %v3339, 0.0
  %3342 = vadd.xlane.f32.xlu0 %v3341
  %v3343 = vpop.xlane.xlu0 %3342
  %v3345 = vlaneseq
  %v3346 = vshrl.u32 %v3345, 7
  %v3347 = vsub.s32 0, %v3346
  %v3348 = vrot.slane %v3343, %v3347
  %v3349 = vlaneseq
  %v3350 = vshrl.u32 %v3349, 7
  %v3351 = vsub.s32 1, %v3350
  %v3352 = vrot.slane %v3343, %v3351
  %v3355 = vrcp.pop %v3348
  %v3356 = vmul.f32 %v3320, %v3355
  %v3357 = vrcp.pop %v3352
  %v3358 = vmul.f32 %v3322, %v3357
  %v3359 = vmul.f32 %v1161, %v1164
  %v3360 = vmul.f32 %v1162, %v1165
  %vm3361 = vcmask 77824
  %v3362 = vsel %vm3361, %v3359, 0.0
  %3363 = vadd.xlane.f32.xlu0 %v3362
  %v3364 = vpop.xlane.xlu0 %3363
  %v3365 = vsel %vm3361, %v3360, 0.0
  %3366 = vadd.xlane.f32.xlu0 %v3365
  %v3367 = vpop.xlane.xlu0 %3366
  %v3368 = vld [vmem:[%s4 + $0x68] sm:$0x1f]
  %v3369 = vld [vmem:[%s4 + $0x70] sm:$0x1f]
  %3372 = vset.pattern.permute.xlu0 0
  %3373 = vperm.xlu0 %3372, %v3356
  %v3374 = vpop.permute.xlu0 %3373
  %3375 = vset.pattern.permute.xlu0 0
  %3376 = vperm.xlu0 %3375, %v3358
  %v3377 = vpop.permute.xlu0 %3376
  %v3378 = vlaneseq
  %v3379 = vshrl.u32 %v3378, 7
  %v3380 = vsub.s32 %v25, %v3379
  %v3381 = vrot.slane %v3374, %v3380
  %v3382 = vlaneseq
  %v3383 = vshrl.u32 %v3382, 7
  %v3384 = vsub.s32 %v25, %v3383
  %v3385 = vrot.slane %v3377, %v3384
  %v3386 = vsel %vm3231, %v3385, %v3381
  %v3387 = vsel %vm878, %v3386, 0
  %v3390 = vsel %vm967, %v3369, 0
  %3392 = vmatprep.subr.mxu0 0.0
  %3393 = vmatpush1.msra.mxu0 %v3390
  %3394 = vmatprep.subr.mxu0 0.0
  %3395 = vmatpush1.msra.mxu0 0.0
  %3396 = vmatprep.subr.mxu0 0.0
  %3397 = vmatpush1.msra.mxu0 0.0
  %3398 = vmatprep.subr.mxu0 0.0
  %3399 = vmatpush1.msra.mxu0 0.0
  %3400 = vmatprep.subr.mxu0 0.0
  %3401 = vmatpush1.msra.mxu0 0.0
  %3402 = vmatprep.subr.mxu0 0.0
  %3403 = vmatpush1.msra.mxu0 0.0
  %3404 = vmatprep.subr.mxu0 0.0
  %3405 = vmatpush1.msra.mxu0 0.0
  %3406 = vmatprep.subr.mxu0 0.0
  %3407 = vmatpush1.msra.mxu0 0.0
  %3408 = vmatprep.subr.mxu0 0.0
  %3409 = vmatpush1.msra.mxu0 0.0
  %3410 = vmatprep.subr.mxu0 0.0
  %3411 = vmatpush1.msra.mxu0 0.0
  %3412 = vmatprep.subr.mxu0 0.0
  %3413 = vmatpush1.msra.mxu0 0.0
  %3414 = vmatprep.subr.mxu0 0.0
  %3415 = vmatpush1.msra.mxu0 0.0
  %3416 = vmatprep.subr.mxu0 0.0
  %3417 = vmatpush1.msra.mxu0 0.0
  %3418 = vmatprep.subr.mxu0 0.0
  %3419 = vmatpush1.msra.mxu0 0.0
  %3420 = vmatprep.subr.mxu0 0.0
  %3421 = vmatpush1.msra.mxu0 0.0
  %3422 = vmatprep.subr.mxu0 0.0
  %3423 = vmatpush1.msra.mxu0 0.0
  %3424 = vmatprep.subr.mxu0 0.0
  %3425 = vmatpush1.msra.mxu0 0.0
  %3426 = vmatprep.subr.mxu0 0.0
  %3427 = vmatpush1.msra.mxu0 0.0
  %3428 = vmatprep.subr.mxu0 0.0
  %3429 = vmatpush1.msra.mxu0 0.0
  %3430 = vmatprep.subr.mxu0 0.0
  %3431 = vmatpush1.msra.mxu0 0.0
  %3432 = vmatprep.subr.mxu0 0.0
  %3433 = vmatpush1.msra.mxu0 0.0
  %3434 = vmatprep.subr.mxu0 0.0
  %3435 = vmatpush1.msra.mxu0 0.0
  %3436 = vmatprep.subr.mxu0 0.0
  %3437 = vmatpush1.msra.mxu0 0.0
  %3438 = vmatprep.subr.mxu0 0.0
  %3439 = vmatpush1.msra.mxu0 0.0
  %3440 = vmatprep.subr.mxu0 0.0
  %3441 = vmatpush1.msra.mxu0 0.0
  %3442 = vmatprep.subr.mxu0 0.0
  %3443 = vmatpush1.msra.mxu0 0.0
  %3444 = vmatprep.subr.mxu0 0.0
  %3445 = vmatpush1.msra.mxu0 0.0
  %3446 = vmatprep.subr.mxu0 0.0
  %3447 = vmatpush1.msra.mxu0 0.0
  %3448 = vmatprep.subr.mxu0 0.0
  %3449 = vmatpush1.msra.mxu0 0.0
  %3450 = vmatprep.subr.mxu0 0.0
  %3451 = vmatpush1.msra.mxu0 0.0
  %3452 = vmatprep.subr.mxu0 0.0
  %3453 = vmatpush1.msra.mxu0 0.0
  %3454 = vmatprep.subr.mxu0 0.0
  %3455 = vmatpush1.msra.mxu0 0.0
  %3456 = vmatprep.mubr.f32.mxu0 0.0
  %3457 = vmatmul.mubr.f32.gmra.mrb[0].mxu0 %v3387
  %v3458 = vpop.f32.mrb[0].mxu0
  %v3459 = vadd.f32 0.0, %v3458
  %v3460 = vpop.f32.mrb[0].mxu0
  %3461 = vdwg.mxu0
  %3464 = vset.pattern.permute.xlu0 0
  %3465 = vperm.xlu0 %3464, %v3288
  %v3466 = vpop.permute.xlu0 %3465
  %3467 = vset.pattern.permute.xlu0 0
  %3468 = vperm.xlu0 %3467, %v3290
  %v3469 = vpop.permute.xlu0 %3468
  %v3470 = vlaneseq
  %v3471 = vshrl.u32 %v3470, 7
  %v3472 = vsub.s32 %v25, %v3471
  %v3473 = vrot.slane %v3466, %v3472
  %v3474 = vlaneseq
  %v3475 = vshrl.u32 %v3474, 7
  %v3476 = vsub.s32 %v25, %v3475
  %v3477 = vrot.slane %v3469, %v3476
  %v3478 = vsel %vm3231, %v3477, %v3473
  %v3479 = vsel %vm878, %v3478, 0
  %v3482 = vsel %vm967, %v3368, 0
  %3484 = vmatprep.subr.mxu0 0.0
  %3485 = vmatpush1.msra.mxu0 %v3482
  %3486 = vmatprep.subr.mxu0 0.0
  %3487 = vmatpush1.msra.mxu0 0.0
  %3488 = vmatprep.subr.mxu0 0.0
  %3489 = vmatpush1.msra.mxu0 0.0
  %3490 = vmatprep.subr.mxu0 0.0
  %3491 = vmatpush1.msra.mxu0 0.0
  %3492 = vmatprep.subr.mxu0 0.0
  %3493 = vmatpush1.msra.mxu0 0.0
  %3494 = vmatprep.subr.mxu0 0.0
  %3495 = vmatpush1.msra.mxu0 0.0
  %3496 = vmatprep.subr.mxu0 0.0
  %3497 = vmatpush1.msra.mxu0 0.0
  %3498 = vmatprep.subr.mxu0 0.0
  %3499 = vmatpush1.msra.mxu0 0.0
  %3500 = vmatprep.subr.mxu0 0.0
  %3501 = vmatpush1.msra.mxu0 0.0
  %3502 = vmatprep.subr.mxu0 0.0
  %3503 = vmatpush1.msra.mxu0 0.0
  %3504 = vmatprep.subr.mxu0 0.0
  %3505 = vmatpush1.msra.mxu0 0.0
  %3506 = vmatprep.subr.mxu0 0.0
  %3507 = vmatpush1.msra.mxu0 0.0
  %3508 = vmatprep.subr.mxu0 0.0
  %3509 = vmatpush1.msra.mxu0 0.0
  %3510 = vmatprep.subr.mxu0 0.0
  %3511 = vmatpush1.msra.mxu0 0.0
  %3512 = vmatprep.subr.mxu0 0.0
  %3513 = vmatpush1.msra.mxu0 0.0
  %3514 = vmatprep.subr.mxu0 0.0
  %3515 = vmatpush1.msra.mxu0 0.0
  %3516 = vmatprep.subr.mxu0 0.0
  %3517 = vmatpush1.msra.mxu0 0.0
  %3518 = vmatprep.subr.mxu0 0.0
  %3519 = vmatpush1.msra.mxu0 0.0
  %3520 = vmatprep.subr.mxu0 0.0
  %3521 = vmatpush1.msra.mxu0 0.0
  %3522 = vmatprep.subr.mxu0 0.0
  %3523 = vmatpush1.msra.mxu0 0.0
  %3524 = vmatprep.subr.mxu0 0.0
  %3525 = vmatpush1.msra.mxu0 0.0
  %3526 = vmatprep.subr.mxu0 0.0
  %3527 = vmatpush1.msra.mxu0 0.0
  %3528 = vmatprep.subr.mxu0 0.0
  %3529 = vmatpush1.msra.mxu0 0.0
  %3530 = vmatprep.subr.mxu0 0.0
  %3531 = vmatpush1.msra.mxu0 0.0
  %3532 = vmatprep.subr.mxu0 0.0
  %3533 = vmatpush1.msra.mxu0 0.0
  %3534 = vmatprep.subr.mxu0 0.0
  %3535 = vmatpush1.msra.mxu0 0.0
  %3536 = vmatprep.subr.mxu0 0.0
  %3537 = vmatpush1.msra.mxu0 0.0
  %3538 = vmatprep.subr.mxu0 0.0
  %3539 = vmatpush1.msra.mxu0 0.0
  %3540 = vmatprep.subr.mxu0 0.0
  %3541 = vmatpush1.msra.mxu0 0.0
  %3542 = vmatprep.subr.mxu0 0.0
  %3543 = vmatpush1.msra.mxu0 0.0
  %3544 = vmatprep.subr.mxu0 0.0
  %3545 = vmatpush1.msra.mxu0 0.0
  %3546 = vmatprep.subr.mxu0 0.0
  %3547 = vmatpush1.msra.mxu0 0.0
  %3548 = vmatprep.mubr.f32.mxu0 0.0
  %3549 = vmatmul.mubr.f32.gmra.mrb[0].mxu0 %v3479
  %v3550 = vpop.f32.mrb[0].mxu0
  %v3551 = vadd.f32 %v3459, %v3550
  %v3552 = vpop.f32.mrb[0].mxu0
  %3553 = vdwg.mxu0
  %v3554 = vld [vmem:[%s4 + $0x78] sm:$0x1f]
  %v3557 = vlaneseq
  %v3558 = vshrl.u32 %v3557, 7
  %v3559 = vsub.s32 %v25, %v3558
  %v3560 = vrot.slane %v3364, %v3559
  %v3561 = vlaneseq
  %v3562 = vshrl.u32 %v3561, 7
  %v3563 = vsub.s32 %v25, %v3562
  %v3564 = vrot.slane %v3367, %v3563
  %v3565 = vsel %vm3231, %v3564, %v3560
  %v3566 = vsel %vm878, %v3565, 0
  %v3569 = vsel %vm967, %v3554, 0
  %3571 = vmatprep.subr.mxu0 0.0
  %3572 = vmatpush1.msra.mxu0 %v3569
  %3573 = vmatprep.subr.mxu0 0.0
  %3574 = vmatpush1.msra.mxu0 0.0
  %3575 = vmatprep.subr.mxu0 0.0
  %3576 = vmatpush1.msra.mxu0 0.0
  %3577 = vmatprep.subr.mxu0 0.0
  %3578 = vmatpush1.msra.mxu0 0.0
  %3579 = vmatprep.subr.mxu0 0.0
  %3580 = vmatpush1.msra.mxu0 0.0
  %3581 = vmatprep.subr.mxu0 0.0
  %3582 = vmatpush1.msra.mxu0 0.0
  %3583 = vmatprep.subr.mxu0 0.0
  %3584 = vmatpush1.msra.mxu0 0.0
  %3585 = vmatprep.subr.mxu0 0.0
  %3586 = vmatpush1.msra.mxu0 0.0
  %3587 = vmatprep.subr.mxu0 0.0
  %3588 = vmatpush1.msra.mxu0 0.0
  %3589 = vmatprep.subr.mxu0 0.0
  %3590 = vmatpush1.msra.mxu0 0.0
  %3591 = vmatprep.subr.mxu0 0.0
  %3592 = vmatpush1.msra.mxu0 0.0
  %3593 = vmatprep.subr.mxu0 0.0
  %3594 = vmatpush1.msra.mxu0 0.0
  %3595 = vmatprep.subr.mxu0 0.0
  %3596 = vmatpush1.msra.mxu0 0.0
  %3597 = vmatprep.subr.mxu0 0.0
  %3598 = vmatpush1.msra.mxu0 0.0
  %3599 = vmatprep.subr.mxu0 0.0
  %3600 = vmatpush1.msra.mxu0 0.0
  %3601 = vmatprep.subr.mxu0 0.0
  %3602 = vmatpush1.msra.mxu0 0.0
  %3603 = vmatprep.subr.mxu0 0.0
  %3604 = vmatpush1.msra.mxu0 0.0
  %3605 = vmatprep.subr.mxu0 0.0
  %3606 = vmatpush1.msra.mxu0 0.0
  %3607 = vmatprep.subr.mxu0 0.0
  %3608 = vmatpush1.msra.mxu0 0.0
  %3609 = vmatprep.subr.mxu0 0.0
  %3610 = vmatpush1.msra.mxu0 0.0
  %3611 = vmatprep.subr.mxu0 0.0
  %3612 = vmatpush1.msra.mxu0 0.0
  %3613 = vmatprep.subr.mxu0 0.0
  %3614 = vmatpush1.msra.mxu0 0.0
  %3615 = vmatprep.subr.mxu0 0.0
  %3616 = vmatpush1.msra.mxu0 0.0
  %3617 = vmatprep.subr.mxu0 0.0
  %3618 = vmatpush1.msra.mxu0 0.0
  %3619 = vmatprep.subr.mxu0 0.0
  %3620 = vmatpush1.msra.mxu0 0.0
  %3621 = vmatprep.subr.mxu0 0.0
  %3622 = vmatpush1.msra.mxu0 0.0
  %3623 = vmatprep.subr.mxu0 0.0
  %3624 = vmatpush1.msra.mxu0 0.0
  %3625 = vmatprep.subr.mxu0 0.0
  %3626 = vmatpush1.msra.mxu0 0.0
  %3627 = vmatprep.subr.mxu0 0.0
  %3628 = vmatpush1.msra.mxu0 0.0
  %3629 = vmatprep.subr.mxu0 0.0
  %3630 = vmatpush1.msra.mxu0 0.0
  %3631 = vmatprep.subr.mxu0 0.0
  %3632 = vmatpush1.msra.mxu0 0.0
  %3633 = vmatprep.subr.mxu0 0.0
  %3634 = vmatpush1.msra.mxu0 0.0
  %3635 = vmatprep.mubr.f32.mxu0 0.0
  %3636 = vmatmul.mubr.f32.gmra.mrb[0].mxu0 %v3566
  %v3637 = vpop.f32.mrb[0].mxu0
  %v3638 = vadd.f32 0.0, %v3637
  %v3639 = vpop.f32.mrb[0].mxu0
  %3640 = vdwg.mxu0
  %v3641 = vadd.f32 %v3551, %v3638
  %v3642 = vld [vmem:[%s4 + $0x80] sm:$0x1]
  %v3643 = vlaneseq
  %v3644 = vshrl.u32 %v3643, 7
  %v3645 = vsub.s32 0, %v3644
  %v3646 = vrot.slane %v3642, %v3645
  %v3647 = vadd.f32 %v3641, %v3646
  %v3648 = vld [vmem:[%s4 + $0xd8] sm:$0x1]
  %v3649 = vld [vmem:[%s1] sm:$0xf]
  %v3650 = vld [vmem:[%s4 + $0x88] sm:$0x1f]
  %v3651 = vld [vmem:[%s4 + $0x90] sm:$0x1]
  %v3652 = vlaneseq
  %v3653 = vshrl.u32 %v3652, 7
  %v3654 = vsub.s32 0, %v3653
  %v3655 = vrot.slane %v3651, %v3654
  %v3657 = vsel %vm878, %v3649, 0
  %v3660 = vsel %vm967, %v3650, 0
  %3662 = vmatprep.subr.mxu0 0.0
  %3663 = vmatpush1.msra.mxu0 %v3660
  %3664 = vmatprep.subr.mxu0 0.0
  %3665 = vmatpush1.msra.mxu0 0.0
  %3666 = vmatprep.subr.mxu0 0.0
  %3667 = vmatpush1.msra.mxu0 0.0
  %3668 = vmatprep.subr.mxu0 0.0
  %3669 = vmatpush1.msra.mxu0 0.0
  %3670 = vmatprep.subr.mxu0 0.0
  %3671 = vmatpush1.msra.mxu0 0.0
  %3672 = vmatprep.subr.mxu0 0.0
  %3673 = vmatpush1.msra.mxu0 0.0
  %3674 = vmatprep.subr.mxu0 0.0
  %3675 = vmatpush1.msra.mxu0 0.0
  %3676 = vmatprep.subr.mxu0 0.0
  %3677 = vmatpush1.msra.mxu0 0.0
  %3678 = vmatprep.subr.mxu0 0.0
  %3679 = vmatpush1.msra.mxu0 0.0
  %3680 = vmatprep.subr.mxu0 0.0
  %3681 = vmatpush1.msra.mxu0 0.0
  %3682 = vmatprep.subr.mxu0 0.0
  %3683 = vmatpush1.msra.mxu0 0.0
  %3684 = vmatprep.subr.mxu0 0.0
  %3685 = vmatpush1.msra.mxu0 0.0
  %3686 = vmatprep.subr.mxu0 0.0
  %3687 = vmatpush1.msra.mxu0 0.0
  %3688 = vmatprep.subr.mxu0 0.0
  %3689 = vmatpush1.msra.mxu0 0.0
  %3690 = vmatprep.subr.mxu0 0.0
  %3691 = vmatpush1.msra.mxu0 0.0
  %3692 = vmatprep.subr.mxu0 0.0
  %3693 = vmatpush1.msra.mxu0 0.0
  %3694 = vmatprep.subr.mxu0 0.0
  %3695 = vmatpush1.msra.mxu0 0.0
  %3696 = vmatprep.subr.mxu0 0.0
  %3697 = vmatpush1.msra.mxu0 0.0
  %3698 = vmatprep.subr.mxu0 0.0
  %3699 = vmatpush1.msra.mxu0 0.0
  %3700 = vmatprep.subr.mxu0 0.0
  %3701 = vmatpush1.msra.mxu0 0.0
  %3702 = vmatprep.subr.mxu0 0.0
  %3703 = vmatpush1.msra.mxu0 0.0
  %3704 = vmatprep.subr.mxu0 0.0
  %3705 = vmatpush1.msra.mxu0 0.0
  %3706 = vmatprep.subr.mxu0 0.0
  %3707 = vmatpush1.msra.mxu0 0.0
  %3708 = vmatprep.subr.mxu0 0.0
  %3709 = vmatpush1.msra.mxu0 0.0
  %3710 = vmatprep.subr.mxu0 0.0
  %3711 = vmatpush1.msra.mxu0 0.0
  %3712 = vmatprep.subr.mxu0 0.0
  %3713 = vmatpush1.msra.mxu0 0.0
  %3714 = vmatprep.subr.mxu0 0.0
  %3715 = vmatpush1.msra.mxu0 0.0
  %3716 = vmatprep.subr.mxu0 0.0
  %3717 = vmatpush1.msra.mxu0 0.0
  %3718 = vmatprep.subr.mxu0 0.0
  %3719 = vmatpush1.msra.mxu0 0.0
  %3720 = vmatprep.subr.mxu0 0.0
  %3721 = vmatpush1.msra.mxu0 0.0
  %3722 = vmatprep.subr.mxu0 0.0
  %3723 = vmatpush1.msra.mxu0 0.0
  %3724 = vmatprep.subr.mxu0 0.0
  %3725 = vmatpush1.msra.mxu0 0.0
  %3726 = vmatprep.mubr.f32.mxu0 0.0
  %3727 = vmatmul.mubr.f32.gmra.mrb[0].mxu0 %v3657
  %v3728 = vpop.f32.mrb[0].mxu0
  %v3729 = vadd.f32 %v3655, %v3728
  %v3730 = vpop.f32.mrb[0].mxu0
  %3731 = vdwg.mxu0
  %v3732 = vmul.f32 %v3729, %v3729
  %v3733 = vadd.f32 %v3732, 0.2
  %v3734 = vlaneseq
  %v3735 = vshrl.u32 %v3734, 7
  %v3736 = vsub.s32 0, %v3735
  %v3737 = vrot.slane %v3648, %v3736
  %v3738 = vsub.f32 %v3737, %v3729
  %3740 = vrot.lane.b32.xlu0 %v3733, 123
  %v3741 = vpop.permute.xlu0 %3740
  %v3743 = vrcp.pop %v3741
  %v3744 = vmul.f32 %v3738, %v3743
  %v3745 = vmul.f32 %v3744, 1.442695
  %v3746 = vpow.pop %v3745
  %v3747 = vmul.f32 %v3746, -1.0
  %v3748 = vmul.f32 %v3747, 1.442695
  %v3749 = vpow.pop %v3748
  %v3750 = vrcp.pop %v3733
  %v3751 = vmul.f32 1.0, %v3750
  %3753 = vrot.lane.b32.xlu0 %v3746, 5
  %v3754 = vpop.permute.xlu0 %3753
  %v3756 = vmul.f32 %v3751, %v3754
  %3758 = vrot.lane.b32.xlu0 %v3749, 5
  %v3759 = vpop.permute.xlu0 %3758
  %v3761 = vmul.f32 %v3756, %v3759
  %v3762 = vld [vmem:[%s4 + $0x98] sm:$0x1f]
  %v3763 = vld [vmem:[%s4 + $0xa0] sm:$0x1f]
  %v3765 = vrot.slane %v3761, 2
  %3766 = vrot.lane.b32.xlu0 %v3765, 123
  %v3767 = vpop.permute.xlu0 %3766
  %v3768 = vsel %vm878, %v3767, 0
  %v3771 = vsel %vm967, %v3763, 0
  %3773 = vmatprep.subr.mxu0 0.0
  %3774 = vmatpush1.msra.mxu0 %v3771
  %3775 = vmatprep.subr.mxu0 0.0
  %3776 = vmatpush1.msra.mxu0 0.0
  %3777 = vmatprep.subr.mxu0 0.0
  %3778 = vmatpush1.msra.mxu0 0.0
  %3779 = vmatprep.subr.mxu0 0.0
  %3780 = vmatpush1.msra.mxu0 0.0
  %3781 = vmatprep.subr.mxu0 0.0
  %3782 = vmatpush1.msra.mxu0 0.0
  %3783 = vmatprep.subr.mxu0 0.0
  %3784 = vmatpush1.msra.mxu0 0.0
  %3785 = vmatprep.subr.mxu0 0.0
  %3786 = vmatpush1.msra.mxu0 0.0
  %3787 = vmatprep.subr.mxu0 0.0
  %3788 = vmatpush1.msra.mxu0 0.0
  %3789 = vmatprep.subr.mxu0 0.0
  %3790 = vmatpush1.msra.mxu0 0.0
  %3791 = vmatprep.subr.mxu0 0.0
  %3792 = vmatpush1.msra.mxu0 0.0
  %3793 = vmatprep.subr.mxu0 0.0
  %3794 = vmatpush1.msra.mxu0 0.0
  %3795 = vmatprep.subr.mxu0 0.0
  %3796 = vmatpush1.msra.mxu0 0.0
  %3797 = vmatprep.subr.mxu0 0.0
  %3798 = vmatpush1.msra.mxu0 0.0
  %3799 = vmatprep.subr.mxu0 0.0
  %3800 = vmatpush1.msra.mxu0 0.0
  %3801 = vmatprep.subr.mxu0 0.0
  %3802 = vmatpush1.msra.mxu0 0.0
  %3803 = vmatprep.subr.mxu0 0.0
  %3804 = vmatpush1.msra.mxu0 0.0
  %3805 = vmatprep.subr.mxu0 0.0
  %3806 = vmatpush1.msra.mxu0 0.0
  %3807 = vmatprep.subr.mxu0 0.0
  %3808 = vmatpush1.msra.mxu0 0.0
  %3809 = vmatprep.subr.mxu0 0.0
  %3810 = vmatpush1.msra.mxu0 0.0
  %3811 = vmatprep.subr.mxu0 0.0
  %3812 = vmatpush1.msra.mxu0 0.0
  %3813 = vmatprep.subr.mxu0 0.0
  %3814 = vmatpush1.msra.mxu0 0.0
  %3815 = vmatprep.subr.mxu0 0.0
  %3816 = vmatpush1.msra.mxu0 0.0
  %3817 = vmatprep.subr.mxu0 0.0
  %3818 = vmatpush1.msra.mxu0 0.0
  %3819 = vmatprep.subr.mxu0 0.0
  %3820 = vmatpush1.msra.mxu0 0.0
  %3821 = vmatprep.subr.mxu0 0.0
  %3822 = vmatpush1.msra.mxu0 0.0
  %3823 = vmatprep.subr.mxu0 0.0
  %3824 = vmatpush1.msra.mxu0 0.0
  %3825 = vmatprep.subr.mxu0 0.0
  %3826 = vmatpush1.msra.mxu0 0.0
  %3827 = vmatprep.subr.mxu0 0.0
  %3828 = vmatpush1.msra.mxu0 0.0
  %3829 = vmatprep.subr.mxu0 0.0
  %3830 = vmatpush1.msra.mxu0 0.0
  %3831 = vmatprep.subr.mxu0 0.0
  %3832 = vmatpush1.msra.mxu0 0.0
  %3833 = vmatprep.subr.mxu0 0.0
  %3834 = vmatpush1.msra.mxu0 0.0
  %3835 = vmatprep.subr.mxu0 0.0
  %3836 = vmatpush1.msra.mxu0 0.0
  %3837 = vmatprep.mubr.f32.mxu0 0.0
  %3838 = vmatmul.mubr.f32.gmra.mrb[0].mxu0 %v3768
  %v3839 = vpop.f32.mrb[0].mxu0
  %v3840 = vadd.f32 0.0, %v3839
  %v3841 = vpop.f32.mrb[0].mxu0
  %3842 = vdwg.mxu0
  %3843 = vrot.lane.b32.xlu0 %v3761, 123
  %v3844 = vpop.permute.xlu0 %3843
  %v3845 = vsel %vm878, %v3844, 0
  %v3848 = vsel %vm967, %v3762, 0
  %3850 = vmatprep.subr.mxu0 0.0
  %3851 = vmatpush1.msra.mxu0 %v3848
  %3852 = vmatprep.subr.mxu0 0.0
  %3853 = vmatpush1.msra.mxu0 0.0
  %3854 = vmatprep.subr.mxu0 0.0
  %3855 = vmatpush1.msra.mxu0 0.0
  %3856 = vmatprep.subr.mxu0 0.0
  %3857 = vmatpush1.msra.mxu0 0.0
  %3858 = vmatprep.subr.mxu0 0.0
  %3859 = vmatpush1.msra.mxu0 0.0
  %3860 = vmatprep.subr.mxu0 0.0
  %3861 = vmatpush1.msra.mxu0 0.0
  %3862 = vmatprep.subr.mxu0 0.0
  %3863 = vmatpush1.msra.mxu0 0.0
  %3864 = vmatprep.subr.mxu0 0.0
  %3865 = vmatpush1.msra.mxu0 0.0
  %3866 = vmatprep.subr.mxu0 0.0
  %3867 = vmatpush1.msra.mxu0 0.0
  %3868 = vmatprep.subr.mxu0 0.0
  %3869 = vmatpush1.msra.mxu0 0.0
  %3870 = vmatprep.subr.mxu0 0.0
  %3871 = vmatpush1.msra.mxu0 0.0
  %3872 = vmatprep.subr.mxu0 0.0
  %3873 = vmatpush1.msra.mxu0 0.0
  %3874 = vmatprep.subr.mxu0 0.0
  %3875 = vmatpush1.msra.mxu0 0.0
  %3876 = vmatprep.subr.mxu0 0.0
  %3877 = vmatpush1.msra.mxu0 0.0
  %3878 = vmatprep.subr.mxu0 0.0
  %3879 = vmatpush1.msra.mxu0 0.0
  %3880 = vmatprep.subr.mxu0 0.0
  %3881 = vmatpush1.msra.mxu0 0.0
  %3882 = vmatprep.subr.mxu0 0.0
  %3883 = vmatpush1.msra.mxu0 0.0
  %3884 = vmatprep.subr.mxu0 0.0
  %3885 = vmatpush1.msra.mxu0 0.0
  %3886 = vmatprep.subr.mxu0 0.0
  %3887 = vmatpush1.msra.mxu0 0.0
  %3888 = vmatprep.subr.mxu0 0.0
  %3889 = vmatpush1.msra.mxu0 0.0
  %3890 = vmatprep.subr.mxu0 0.0
  %3891 = vmatpush1.msra.mxu0 0.0
  %3892 = vmatprep.subr.mxu0 0.0
  %3893 = vmatpush1.msra.mxu0 0.0
  %3894 = vmatprep.subr.mxu0 0.0
  %3895 = vmatpush1.msra.mxu0 0.0
  %3896 = vmatprep.subr.mxu0 0.0
  %3897 = vmatpush1.msra.mxu0 0.0
  %3898 = vmatprep.subr.mxu0 0.0
  %3899 = vmatpush1.msra.mxu0 0.0
  %3900 = vmatprep.subr.mxu0 0.0
  %3901 = vmatpush1.msra.mxu0 0.0
  %3902 = vmatprep.subr.mxu0 0.0
  %3903 = vmatpush1.msra.mxu0 0.0
  %3904 = vmatprep.subr.mxu0 0.0
  %3905 = vmatpush1.msra.mxu0 0.0
  %3906 = vmatprep.subr.mxu0 0.0
  %3907 = vmatpush1.msra.mxu0 0.0
  %3908 = vmatprep.subr.mxu0 0.0
  %3909 = vmatpush1.msra.mxu0 0.0
  %3910 = vmatprep.subr.mxu0 0.0
  %3911 = vmatpush1.msra.mxu0 0.0
  %3912 = vmatprep.subr.mxu0 0.0
  %3913 = vmatpush1.msra.mxu0 0.0
  %3914 = vmatprep.mubr.f32.mxu0 0.0
  %3915 = vmatmul.mubr.f32.gmra.mrb[0].mxu0 %v3845
  %v3916 = vpop.f32.mrb[0].mxu0
  %v3917 = vadd.f32 %v3840, %v3916
  %v3918 = vpop.f32.mrb[0].mxu0
  %3919 = vdwg.mxu0
  %v3920 = vld [vmem:[%s4 + $0xa8] sm:$0x1f]
  %v3922 = vsel %vm878, %v3647, 0
  %v3925 = vsel %vm967, %v3920, 0
  %3927 = vmatprep.subr.mxu0 0.0
  %3928 = vmatpush1.msra.mxu0 %v3925
  %3929 = vmatprep.subr.mxu0 0.0
  %3930 = vmatpush1.msra.mxu0 0.0
  %3931 = vmatprep.subr.mxu0 0.0
  %3932 = vmatpush1.msra.mxu0 0.0
  %3933 = vmatprep.subr.mxu0 0.0
  %3934 = vmatpush1.msra.mxu0 0.0
  %3935 = vmatprep.subr.mxu0 0.0
  %3936 = vmatpush1.msra.mxu0 0.0
  %3937 = vmatprep.subr.mxu0 0.0
  %3938 = vmatpush1.msra.mxu0 0.0
  %3939 = vmatprep.subr.mxu0 0.0
  %3940 = vmatpush1.msra.mxu0 0.0
  %3941 = vmatprep.subr.mxu0 0.0
  %3942 = vmatpush1.msra.mxu0 0.0
  %3943 = vmatprep.subr.mxu0 0.0
  %3944 = vmatpush1.msra.mxu0 0.0
  %3945 = vmatprep.subr.mxu0 0.0
  %3946 = vmatpush1.msra.mxu0 0.0
  %3947 = vmatprep.subr.mxu0 0.0
  %3948 = vmatpush1.msra.mxu0 0.0
  %3949 = vmatprep.subr.mxu0 0.0
  %3950 = vmatpush1.msra.mxu0 0.0
  %3951 = vmatprep.subr.mxu0 0.0
  %3952 = vmatpush1.msra.mxu0 0.0
  %3953 = vmatprep.subr.mxu0 0.0
  %3954 = vmatpush1.msra.mxu0 0.0
  %3955 = vmatprep.subr.mxu0 0.0
  %3956 = vmatpush1.msra.mxu0 0.0
  %3957 = vmatprep.subr.mxu0 0.0
  %3958 = vmatpush1.msra.mxu0 0.0
  %3959 = vmatprep.subr.mxu0 0.0
  %3960 = vmatpush1.msra.mxu0 0.0
  %3961 = vmatprep.subr.mxu0 0.0
  %3962 = vmatpush1.msra.mxu0 0.0
  %3963 = vmatprep.subr.mxu0 0.0
  %3964 = vmatpush1.msra.mxu0 0.0
  %3965 = vmatprep.subr.mxu0 0.0
  %3966 = vmatpush1.msra.mxu0 0.0
  %3967 = vmatprep.subr.mxu0 0.0
  %3968 = vmatpush1.msra.mxu0 0.0
  %3969 = vmatprep.subr.mxu0 0.0
  %3970 = vmatpush1.msra.mxu0 0.0
  %3971 = vmatprep.subr.mxu0 0.0
  %3972 = vmatpush1.msra.mxu0 0.0
  %3973 = vmatprep.subr.mxu0 0.0
  %3974 = vmatpush1.msra.mxu0 0.0
  %3975 = vmatprep.subr.mxu0 0.0
  %3976 = vmatpush1.msra.mxu0 0.0
  %3977 = vmatprep.subr.mxu0 0.0
  %3978 = vmatpush1.msra.mxu0 0.0
  %3979 = vmatprep.subr.mxu0 0.0
  %3980 = vmatpush1.msra.mxu0 0.0
  %3981 = vmatprep.subr.mxu0 0.0
  %3982 = vmatpush1.msra.mxu0 0.0
  %3983 = vmatprep.subr.mxu0 0.0
  %3984 = vmatpush1.msra.mxu0 0.0
  %3985 = vmatprep.subr.mxu0 0.0
  %3986 = vmatpush1.msra.mxu0 0.0
  %3987 = vmatprep.subr.mxu0 0.0
  %3988 = vmatpush1.msra.mxu0 0.0
  %3989 = vmatprep.subr.mxu0 0.0
  %3990 = vmatpush1.msra.mxu0 0.0
  %3991 = vmatprep.mubr.f32.mxu0 0.0
  %3992 = vmatmul.mubr.f32.gmra.mrb[0].mxu0 %v3922
  %v3993 = vpop.f32.mrb[0].mxu0
  %v3994 = vadd.f32 0.0, %v3993
  %v3995 = vpop.f32.mrb[0].mxu0
  %3996 = vdwg.mxu0
  %v3997 = vadd.f32 %v3917, %v3994
  %v3998 = vld [vmem:[%s4 + $0xb0] sm:$0x1]
  %v3999 = vlaneseq
  %v4000 = vshrl.u32 %v3999, 7
  %v4001 = vsub.s32 0, %v4000
  %v4002 = vrot.slane %v3998, %v4001
  %v4003 = vadd.f32 %v3997, %v4002
  %v4004 = vld [vmem:[%s4 + $0xb8] sm:$0x1f]
  %v4005 = vld [vmem:[%s4 + $0xc8] sm:$0x1]
  %v4006 = vlaneseq
  %v4007 = vshrl.u32 %v4006, 7
  %v4008 = vsub.s32 0, %v4007
  %v4009 = vrot.slane %v4005, %v4008
  %v4011 = vsel %vm967, %v4004, 0
  %4013 = vmatprep.subr.mxu0 0.0
  %4014 = vmatpush1.msra.mxu0 %v4011
  %4015 = vmatprep.subr.mxu0 0.0
  %4016 = vmatpush1.msra.mxu0 0.0
  %4017 = vmatprep.subr.mxu0 0.0
  %4018 = vmatpush1.msra.mxu0 0.0
  %4019 = vmatprep.subr.mxu0 0.0
  %4020 = vmatpush1.msra.mxu0 0.0
  %4021 = vmatprep.subr.mxu0 0.0
  %4022 = vmatpush1.msra.mxu0 0.0
  %4023 = vmatprep.subr.mxu0 0.0
  %4024 = vmatpush1.msra.mxu0 0.0
  %4025 = vmatprep.subr.mxu0 0.0
  %4026 = vmatpush1.msra.mxu0 0.0
  %4027 = vmatprep.subr.mxu0 0.0
  %4028 = vmatpush1.msra.mxu0 0.0
  %4029 = vmatprep.subr.mxu0 0.0
  %4030 = vmatpush1.msra.mxu0 0.0
  %4031 = vmatprep.subr.mxu0 0.0
  %4032 = vmatpush1.msra.mxu0 0.0
  %4033 = vmatprep.subr.mxu0 0.0
  %4034 = vmatpush1.msra.mxu0 0.0
  %4035 = vmatprep.subr.mxu0 0.0
  %4036 = vmatpush1.msra.mxu0 0.0
  %4037 = vmatprep.subr.mxu0 0.0
  %4038 = vmatpush1.msra.mxu0 0.0
  %4039 = vmatprep.subr.mxu0 0.0
  %4040 = vmatpush1.msra.mxu0 0.0
  %4041 = vmatprep.subr.mxu0 0.0
  %4042 = vmatpush1.msra.mxu0 0.0
  %4043 = vmatprep.subr.mxu0 0.0
  %4044 = vmatpush1.msra.mxu0 0.0
  %4045 = vmatprep.subr.mxu0 0.0
  %4046 = vmatpush1.msra.mxu0 0.0
  %4047 = vmatprep.subr.mxu0 0.0
  %4048 = vmatpush1.msra.mxu0 0.0
  %4049 = vmatprep.subr.mxu0 0.0
  %4050 = vmatpush1.msra.mxu0 0.0
  %4051 = vmatprep.subr.mxu0 0.0
  %4052 = vmatpush1.msra.mxu0 0.0
  %4053 = vmatprep.subr.mxu0 0.0
  %4054 = vmatpush1.msra.mxu0 0.0
  %4055 = vmatprep.subr.mxu0 0.0
  %4056 = vmatpush1.msra.mxu0 0.0
  %4057 = vmatprep.subr.mxu0 0.0
  %4058 = vmatpush1.msra.mxu0 0.0
  %4059 = vmatprep.subr.mxu0 0.0
  %4060 = vmatpush1.msra.mxu0 0.0
  %4061 = vmatprep.subr.mxu0 0.0
  %4062 = vmatpush1.msra.mxu0 0.0
  %4063 = vmatprep.subr.mxu0 0.0
  %4064 = vmatpush1.msra.mxu0 0.0
  %4065 = vmatprep.subr.mxu0 0.0
  %4066 = vmatpush1.msra.mxu0 0.0
  %4067 = vmatprep.subr.mxu0 0.0
  %4068 = vmatpush1.msra.mxu0 0.0
  %4069 = vmatprep.subr.mxu0 0.0
  %4070 = vmatpush1.msra.mxu0 0.0
  %4071 = vmatprep.subr.mxu0 0.0
  %4072 = vmatpush1.msra.mxu0 0.0
  %4073 = vmatprep.subr.mxu0 0.0
  %4074 = vmatpush1.msra.mxu0 0.0
  %4075 = vmatprep.subr.mxu0 0.0
  %4076 = vmatpush1.msra.mxu0 0.0
  %4077 = vmatprep.mubr.f32.mxu0 0.0
  %4078 = vmatmul.mubr.f32.gmra.mrb[0].mxu0 %v3657
  %v4079 = vpop.f32.mrb[0].mxu0
  %v4080 = vadd.f32 %v4009, %v4079
  %v4081 = vpop.f32.mrb[0].mxu0
  %4082 = vdwg.mxu0
  %v4083 = vld [vmem:[%s4 + $0xc0] sm:$0x1f]
  %v4084 = vld [vmem:[%s4 + $0xd0] sm:$0x1]
  %v4085 = vlaneseq
  %v4086 = vshrl.u32 %v4085, 7
  %v4087 = vsub.s32 0, %v4086
  %v4088 = vrot.slane %v4084, %v4087
  %v4089 = vrot.slane %v3649, 2
  %v4090 = vsel %vm878, %v4089, 0
  %v4093 = vsel %vm967, %v4083, 0
  %4095 = vmatprep.subr.mxu0 0.0
  %4096 = vmatpush1.msra.mxu0 %v4093
  %4097 = vmatprep.subr.mxu0 0.0
  %4098 = vmatpush1.msra.mxu0 0.0
  %4099 = vmatprep.subr.mxu0 0.0
  %4100 = vmatpush1.msra.mxu0 0.0
  %4101 = vmatprep.subr.mxu0 0.0
  %4102 = vmatpush1.msra.mxu0 0.0
  %4103 = vmatprep.subr.mxu0 0.0
  %4104 = vmatpush1.msra.mxu0 0.0
  %4105 = vmatprep.subr.mxu0 0.0
  %4106 = vmatpush1.msra.mxu0 0.0
  %4107 = vmatprep.subr.mxu0 0.0
  %4108 = vmatpush1.msra.mxu0 0.0
  %4109 = vmatprep.subr.mxu0 0.0
  %4110 = vmatpush1.msra.mxu0 0.0
  %4111 = vmatprep.subr.mxu0 0.0
  %4112 = vmatpush1.msra.mxu0 0.0
  %4113 = vmatprep.subr.mxu0 0.0
  %4114 = vmatpush1.msra.mxu0 0.0
  %4115 = vmatprep.subr.mxu0 0.0
  %4116 = vmatpush1.msra.mxu0 0.0
  %4117 = vmatprep.subr.mxu0 0.0
  %4118 = vmatpush1.msra.mxu0 0.0
  %4119 = vmatprep.subr.mxu0 0.0
  %4120 = vmatpush1.msra.mxu0 0.0
  %4121 = vmatprep.subr.mxu0 0.0
  %4122 = vmatpush1.msra.mxu0 0.0
  %4123 = vmatprep.subr.mxu0 0.0
  %4124 = vmatpush1.msra.mxu0 0.0
  %4125 = vmatprep.subr.mxu0 0.0
  %4126 = vmatpush1.msra.mxu0 0.0
  %4127 = vmatprep.subr.mxu0 0.0
  %4128 = vmatpush1.msra.mxu0 0.0
  %4129 = vmatprep.subr.mxu0 0.0
  %4130 = vmatpush1.msra.mxu0 0.0
  %4131 = vmatprep.subr.mxu0 0.0
  %4132 = vmatpush1.msra.mxu0 0.0
  %4133 = vmatprep.subr.mxu0 0.0
  %4134 = vmatpush1.msra.mxu0 0.0
  %4135 = vmatprep.subr.mxu0 0.0
  %4136 = vmatpush1.msra.mxu0 0.0
  %4137 = vmatprep.subr.mxu0 0.0
  %4138 = vmatpush1.msra.mxu0 0.0
  %4139 = vmatprep.subr.mxu0 0.0
  %4140 = vmatpush1.msra.mxu0 0.0
  %4141 = vmatprep.subr.mxu0 0.0
  %4142 = vmatpush1.msra.mxu0 0.0
  %4143 = vmatprep.subr.mxu0 0.0
  %4144 = vmatpush1.msra.mxu0 0.0
  %4145 = vmatprep.subr.mxu0 0.0
  %4146 = vmatpush1.msra.mxu0 0.0
  %4147 = vmatprep.subr.mxu0 0.0
  %4148 = vmatpush1.msra.mxu0 0.0
  %4149 = vmatprep.subr.mxu0 0.0
  %4150 = vmatpush1.msra.mxu0 0.0
  %4151 = vmatprep.subr.mxu0 0.0
  %4152 = vmatpush1.msra.mxu0 0.0
  %4153 = vmatprep.subr.mxu0 0.0
  %4154 = vmatpush1.msra.mxu0 0.0
  %4155 = vmatprep.subr.mxu0 0.0
  %4156 = vmatpush1.msra.mxu0 0.0
  %4157 = vmatprep.subr.mxu0 0.0
  %4158 = vmatpush1.msra.mxu0 0.0
  %4159 = vmatprep.mubr.f32.mxu0 0.0
  %4160 = vmatmul.mubr.f32.gmra.mrb[0].mxu0 %v4090
  %v4161 = vpop.f32.mrb[0].mxu0
  %v4162 = vadd.f32 %v4088, %v4161
  %v4163 = vpop.f32.mrb[0].mxu0
  %4164 = vdwg.mxu0
  %v4165 = vmul.f32 %v4003, %v4080
  %v4166 = vmul.f32 %v4165, %v4162
  %v4167 = vsel %vm3234, %v4166, 0.0
  %4168 = vadd.xlane.f32.xlu0 %v4167
  %v4169 = vpop.xlane.xlu0 %4168
  %vm4170 = vcmask 1024
  %4171 = vst.msk [vmem:[%s5] sm:$0x3] %vm4170, %v4169
  // Predicated region
  $region22: #{anr_forward.1} parent=0 // pred_check
    _
  $region23: #{anr_forward.1} parent=0 // pred_check_branch
    %4173 = sbr.rel (0) target = $region25
  $region24: #{anr_forward.1} parent=0 // pred_region
    _
  $region25: #{anr_forward.1} parent=0 // pred_fallthru
    _
  // Predicated region
  $region26: #{anr_forward.1} parent=0 // pred_check
    _
  $region27: #{anr_forward.1} parent=0 // pred_check_branch
    %4175 = sbr.rel (0) target = $region29
  $region28: #{anr_forward.1} parent=0 // pred_region
    _
  $region29: #{anr_forward.1} parent=0 // pred_fallthru
    _

</llo_original>
